<compile_context>
chip_gen: v7x
topology: tpu7x:2x2x1
jax: 0.10.0
libtpu: 0.0.40
codegen_flags: <defaults>
</compile_context>

<pallas_src>
import math
from functools import partial

import jax
import jax.numpy as jnp
from jax.experimental import pallas as pl
from jax.experimental.pallas import tpu as pltpu


def _siren_kernel(n_layers, x_ref, *refs):
    """refs = (w0, b0, w1, b1, ..., w_{L-1}, b_{L-1}, out_ref).

    x_ref:   (in_f, tile_n)   -- batch on the lane axis
    w_l:     (out_l, in_l)    -- omega already folded in
    b_l:     (out_l, 1)       -- omega already folded in
    out_ref: (out_f, tile_n)
    """
    out_ref = refs[-1]
    h = x_ref[...]                                          # (in_f, tile_n), f32
    for l in range(n_layers):
        w = refs[2 * l][...]                                # (out_l, in_l)
        b = refs[2 * l + 1][...]                            # (out_l, 1)
        z = jnp.dot(w, h, preferred_element_type=jnp.float32) + b
        h = jnp.sin(z)                                      # (out_l, tile_n), lane-dense
    out_ref[...] = h.astype(out_ref.dtype)


def _choose_tile_n(N):
    """Lane-aligned tile (multiple of 128), capped for VMEM (v7x: 64 MiB),
    preferring >= 2 grid steps so both v7x TensorCores get work."""
    for t in (2048, 1024, 512, 256, 128):
        if N % t == 0 and N // t >= 2:
            return t
    for t in (2048, 1024, 512, 256, 128):
        if N % t == 0:
            return t
    return N  # small-N fallback: single full-extent block


def siren_forward(x, weights, biases, omegas, *, tile_n=None):
    """x: (N, in_f).  weights[l]: (out_l, in_l) (PyTorch nn.Linear layout).
    biases[l]: (out_l,).  Returns (N, out_f), matching the PyTorch module."""
    N, in_f = x.shape
    out_f = weights[-1].shape[0]
    n_layers = len(weights)

    if tile_n is None:
        tile_n = _choose_tile_n(N)
    assert N % tile_n == 0, "N must be divisible by tile_n"
    assert tile_n % 128 == 0 or tile_n == N, "tile_n must be lane-aligned (x128) or == N"

    # Fold omega into the parameters once (outside the kernel):
    # sin(omega*(W x + b)) == sin((omega*W) x + (omega*b)).
    ws = [w * float(o) for w, o in zip(weights, omegas)]
    bs = [(b * float(o)).reshape(-1, 1) for b, o in zip(biases, omegas)]

    # Batch on the lane axis inside the kernel (feature dims are tiny: 2 / 32 / 3).
    x_t = x.T  # (in_f, N)

    in_specs = [pl.BlockSpec((in_f, tile_n), lambda i: (0, i))]
    params = []
    for w, b in zip(ws, bs):
        # Constant index_map -> weights/biases are not re-fetched across grid
        # steps.  (At hidden sizes where resident-weight VMEM matters, add
        # pipeline_mode=pl.Buffered(1) here to single-buffer them.)
        in_specs.append(pl.BlockSpec(w.shape, lambda i: (0, 0)))
        in_specs.append(pl.BlockSpec(b.shape, lambda i: (0, 0)))
        params += [w, b]

    kernel = partial(_siren_kernel, n_layers)

    # Advisory cost hint: this kernel is sin/VPU-bound, not MXU-bound.
    flops = 2 * N * sum(int(w.shape[0]) * int(w.shape[1]) for w in ws)
    transcendentals = N * sum(int(w.shape[0]) for w in ws)
    bytes_accessed = 4 * (x.size + N * out_f
                          + sum(int(w.size) + int(b.size) for w, b in zip(ws, bs)))
    cost = pl.CostEstimate(flops=flops, transcendentals=transcendentals,
                           bytes_accessed=bytes_accessed)

    out_t = pl.pallas_call(
        kernel,
        out_shape=jax.ShapeDtypeStruct((out_f, N), x.dtype),
        grid=(N // tile_n,),
        in_specs=in_specs,
        out_specs=pl.BlockSpec((out_f, tile_n), lambda i: (0, i)),
        compiler_params=pltpu.CompilerParams(dimension_semantics=("parallel",)),
        cost_estimate=cost,
    )(x_t, *params)

    return out_t.T  # (N, out_f)


def init_siren_params(key, in_features, out_features, hidden_features,
                      hidden_layers, first_omega_0=30.0, hidden_omega_0=30.0):
    """Re-implementation of the PyTorch SIREN init, in PyTorch (out, in) layout.

    Weights: uniform(-1/in, 1/in) for the first layer, otherwise
             uniform(-sqrt(6/in)/omega, sqrt(6/in)/omega).
    Biases:  PyTorch nn.Linear default uniform(-1/sqrt(in), 1/sqrt(in)).
    """
    dims = [in_features] + [hidden_features] * (hidden_layers + 1) + [out_features]
    weights, biases, omegas = [], [], []
    for l in range(len(dims) - 1):
        fan_in, fan_out = dims[l], dims[l + 1]
        key, wk, bk = jax.random.split(key, 3)
        if l == 0:
            w_bound = 1.0 / fan_in
            omega = first_omega_0
        else:
            w_bound = math.sqrt(6.0 / fan_in) / hidden_omega_0
            omega = hidden_omega_0
        w = jax.random.uniform(wk, (fan_out, fan_in), jnp.float32,
                               minval=-w_bound, maxval=w_bound)
        b_bound = 1.0 / math.sqrt(fan_in)
        b = jax.random.uniform(bk, (fan_out,), jnp.float32,
                               minval=-b_bound, maxval=b_bound)
        weights.append(w)
        biases.append(b)
        omegas.append(omega)
    return weights, biases, omegas


def siren_reference(x, weights, biases, omegas):
    """Pure-JAX reference matching the PyTorch module: sin(omega * linear(x))."""
    h = x
    for w, b, omega in zip(weights, biases, omegas):
        h = jnp.sin(omega * (h @ w.T + b))
    return h


if __name__ == "__main__":
    # Small shapes consistent with the module: 2-D coords in, 3 channels out.
    # N = 256 with tile_n = 128 gives a 2-step grid (both v7x TCs busy) and
    # lane-dense (>=128-wide) activation tiles.
    N = 256
    in_features, out_features = 2, 3
    hidden_features, hidden_layers = 32, 4

    key = jax.random.PRNGKey(0)
    key, pkey, xkey = jax.random.split(key, 3)

    weights, biases, omegas = init_siren_params(
        pkey, in_features, out_features, hidden_features, hidden_layers,
        first_omega_0=30.0, hidden_omega_0=30.0)

    x = jax.random.uniform(xkey, (N, in_features), jnp.float32,
                           minval=-1.0, maxval=1.0)

    out = siren_forward(x, weights, biases, omegas, tile_n=128)
    out = jax.block_until_ready(out)

    ref = siren_reference(x, weights, biases, omegas)
    assert out.shape == (N, out_features)
    # f32 with omega folded + reordered accumulation: allow a slightly looser
    # (still tight, outputs are O(1)) tolerance than 1e-5.
    assert jnp.allclose(out, ref, atol=1e-4, rtol=1e-4), "mismatch vs reference"

    print("KERNEL_OK")
</pallas_src>

<mosaic_0001>
module attributes {stable_mosaic.version = 11 : i64} {
  func.func @_siren_kernel(%arg0: i32, %arg1: memref<2x128xf32, #tpu.memory_space<vmem>>, %arg2: memref<32x2xf32, #tpu.memory_space<vmem>>, %arg3: memref<32x1xf32, #tpu.memory_space<vmem>>, %arg4: memref<32x32xf32, #tpu.memory_space<vmem>>, %arg5: memref<32x1xf32, #tpu.memory_space<vmem>>, %arg6: memref<32x32xf32, #tpu.memory_space<vmem>>, %arg7: memref<32x1xf32, #tpu.memory_space<vmem>>, %arg8: memref<32x32xf32, #tpu.memory_space<vmem>>, %arg9: memref<32x1xf32, #tpu.memory_space<vmem>>, %arg10: memref<32x32xf32, #tpu.memory_space<vmem>>, %arg11: memref<32x1xf32, #tpu.memory_space<vmem>>, %arg12: memref<3x32xf32, #tpu.memory_space<vmem>>, %arg13: memref<3x1xf32, #tpu.memory_space<vmem>>, %arg14: memref<3x128xf32, #tpu.memory_space<vmem>>) attributes {dimension_semantics = [#tpu.dimension_semantics<parallel>], iteration_bounds = array<i64: 2>, scalar_prefetch = 0 : i64, scratch_operands = 0 : i64, tpu.core_type = #tpu.core_type<tc>, window_params = [{transform_indices = @transform_0, window_bounds = array<i64: 2, 128>}, {pipeline_mode = #tpu.pipeline_mode<synchronous>, transform_indices = @transform_1, window_bounds = array<i64: 32, 2>}, {pipeline_mode = #tpu.pipeline_mode<synchronous>, transform_indices = @transform_2, window_bounds = array<i64: 32, 1>}, {pipeline_mode = #tpu.pipeline_mode<synchronous>, transform_indices = @transform_3, window_bounds = array<i64: 32, 32>}, {pipeline_mode = #tpu.pipeline_mode<synchronous>, transform_indices = @transform_4, window_bounds = array<i64: 32, 1>}, {pipeline_mode = #tpu.pipeline_mode<synchronous>, transform_indices = @transform_5, window_bounds = array<i64: 32, 32>}, {pipeline_mode = #tpu.pipeline_mode<synchronous>, transform_indices = @transform_6, window_bounds = array<i64: 32, 1>}, {pipeline_mode = #tpu.pipeline_mode<synchronous>, transform_indices = @transform_7, window_bounds = array<i64: 32, 32>}, {pipeline_mode = #tpu.pipeline_mode<synchronous>, transform_indices = @transform_8, window_bounds = array<i64: 32, 1>}, {pipeline_mode = #tpu.pipeline_mode<synchronous>, transform_indices = @transform_9, window_bounds = array<i64: 32, 32>}, {pipeline_mode = #tpu.pipeline_mode<synchronous>, transform_indices = @transform_10, window_bounds = array<i64: 32, 1>}, {pipeline_mode = #tpu.pipeline_mode<synchronous>, transform_indices = @transform_11, window_bounds = array<i64: 3, 32>}, {pipeline_mode = #tpu.pipeline_mode<synchronous>, transform_indices = @transform_12, window_bounds = array<i64: 3, 1>}, {transform_indices = @transform_13, window_bounds = array<i64: 3, 128>}]} {
    %c0 = arith.constant 0 : index
    %c0_0 = arith.constant 0 : index
    %0 = vector.load %arg1[%c0, %c0_0] : memref<2x128xf32, #tpu.memory_space<vmem>>, vector<2x128xf32>
    %c0_1 = arith.constant 0 : index
    %c0_2 = arith.constant 0 : index
    %1 = vector.load %arg2[%c0_1, %c0_2] : memref<32x2xf32, #tpu.memory_space<vmem>>, vector<32x2xf32>
    %c0_3 = arith.constant 0 : index
    %c0_4 = arith.constant 0 : index
    %2 = vector.load %arg3[%c0_3, %c0_4] : memref<32x1xf32, #tpu.memory_space<vmem>>, vector<32x1xf32>
    %cst = arith.constant dense<0.000000e+00> : vector<32x128xf32>
    %3 = tpu.matmul %1, %0, %cst {dimension_numbers = #tpu.dot_dimension_numbers<[1], [0], [0], [1], [0, 0, 1, 1], [], []>} : vector<32x2xf32>, vector<2x128xf32>, vector<32x128xf32> -> vector<32x128xf32>
    %4 = vector.broadcast %2 : vector<32x1xf32> to vector<32x128xf32>
    %5 = arith.addf %3, %4 : vector<32x128xf32>
    %6 = math.sin %5 : vector<32x128xf32>
    %c0_5 = arith.constant 0 : index
    %c0_6 = arith.constant 0 : index
    %7 = vector.load %arg4[%c0_5, %c0_6] : memref<32x32xf32, #tpu.memory_space<vmem>>, vector<32x32xf32>
    %c0_7 = arith.constant 0 : index
    %c0_8 = arith.constant 0 : index
    %8 = vector.load %arg5[%c0_7, %c0_8] : memref<32x1xf32, #tpu.memory_space<vmem>>, vector<32x1xf32>
    %cst_9 = arith.constant dense<0.000000e+00> : vector<32x128xf32>
    %9 = tpu.matmul %7, %6, %cst_9 {dimension_numbers = #tpu.dot_dimension_numbers<[1], [0], [0], [1], [0, 0, 1, 1], [], []>} : vector<32x32xf32>, vector<32x128xf32>, vector<32x128xf32> -> vector<32x128xf32>
    %10 = vector.broadcast %8 : vector<32x1xf32> to vector<32x128xf32>
    %11 = arith.addf %9, %10 : vector<32x128xf32>
    %12 = math.sin %11 : vector<32x128xf32>
    %c0_10 = arith.constant 0 : index
    %c0_11 = arith.constant 0 : index
    %13 = vector.load %arg6[%c0_10, %c0_11] : memref<32x32xf32, #tpu.memory_space<vmem>>, vector<32x32xf32>
    %c0_12 = arith.constant 0 : index
    %c0_13 = arith.constant 0 : index
    %14 = vector.load %arg7[%c0_12, %c0_13] : memref<32x1xf32, #tpu.memory_space<vmem>>, vector<32x1xf32>
    %cst_14 = arith.constant dense<0.000000e+00> : vector<32x128xf32>
    %15 = tpu.matmul %13, %12, %cst_14 {dimension_numbers = #tpu.dot_dimension_numbers<[1], [0], [0], [1], [0, 0, 1, 1], [], []>} : vector<32x32xf32>, vector<32x128xf32>, vector<32x128xf32> -> vector<32x128xf32>
    %16 = vector.broadcast %14 : vector<32x1xf32> to vector<32x128xf32>
    %17 = arith.addf %15, %16 : vector<32x128xf32>
    %18 = math.sin %17 : vector<32x128xf32>
    %c0_15 = arith.constant 0 : index
    %c0_16 = arith.constant 0 : index
    %19 = vector.load %arg8[%c0_15, %c0_16] : memref<32x32xf32, #tpu.memory_space<vmem>>, vector<32x32xf32>
    %c0_17 = arith.constant 0 : index
    %c0_18 = arith.constant 0 : index
    %20 = vector.load %arg9[%c0_17, %c0_18] : memref<32x1xf32, #tpu.memory_space<vmem>>, vector<32x1xf32>
    %cst_19 = arith.constant dense<0.000000e+00> : vector<32x128xf32>
    %21 = tpu.matmul %19, %18, %cst_19 {dimension_numbers = #tpu.dot_dimension_numbers<[1], [0], [0], [1], [0, 0, 1, 1], [], []>} : vector<32x32xf32>, vector<32x128xf32>, vector<32x128xf32> -> vector<32x128xf32>
    %22 = vector.broadcast %20 : vector<32x1xf32> to vector<32x128xf32>
    %23 = arith.addf %21, %22 : vector<32x128xf32>
    %24 = math.sin %23 : vector<32x128xf32>
    %c0_20 = arith.constant 0 : index
    %c0_21 = arith.constant 0 : index
    %25 = vector.load %arg10[%c0_20, %c0_21] : memref<32x32xf32, #tpu.memory_space<vmem>>, vector<32x32xf32>
    %c0_22 = arith.constant 0 : index
    %c0_23 = arith.constant 0 : index
    %26 = vector.load %arg11[%c0_22, %c0_23] : memref<32x1xf32, #tpu.memory_space<vmem>>, vector<32x1xf32>
    %cst_24 = arith.constant dense<0.000000e+00> : vector<32x128xf32>
    %27 = tpu.matmul %25, %24, %cst_24 {dimension_numbers = #tpu.dot_dimension_numbers<[1], [0], [0], [1], [0, 0, 1, 1], [], []>} : vector<32x32xf32>, vector<32x128xf32>, vector<32x128xf32> -> vector<32x128xf32>
    %28 = vector.broadcast %26 : vector<32x1xf32> to vector<32x128xf32>
    %29 = arith.addf %27, %28 : vector<32x128xf32>
    %30 = math.sin %29 : vector<32x128xf32>
    %c0_25 = arith.constant 0 : index
    %c0_26 = arith.constant 0 : index
    %31 = vector.load %arg12[%c0_25, %c0_26] : memref<3x32xf32, #tpu.memory_space<vmem>>, vector<3x32xf32>
    %c0_27 = arith.constant 0 : index
    %c0_28 = arith.constant 0 : index
    %32 = vector.load %arg13[%c0_27, %c0_28] : memref<3x1xf32, #tpu.memory_space<vmem>>, vector<3x1xf32>
    %cst_29 = arith.constant dense<0.000000e+00> : vector<3x128xf32>
    %33 = tpu.matmul %31, %30, %cst_29 {dimension_numbers = #tpu.dot_dimension_numbers<[1], [0], [0], [1], [0, 0, 1, 1], [], []>} : vector<3x32xf32>, vector<32x128xf32>, vector<3x128xf32> -> vector<3x128xf32>
    %34 = vector.broadcast %32 : vector<3x1xf32> to vector<3x128xf32>
    %35 = arith.addf %33, %34 : vector<3x128xf32>
    %36 = math.sin %35 : vector<3x128xf32>
    %c0_30 = arith.constant 0 : index
    %c0_31 = arith.constant 0 : index
    %37 = vector.load %arg14[%c0_30, %c0_31] : memref<3x128xf32, #tpu.memory_space<vmem>>, vector<3x128xf32>
    tpu.vector_store %arg14[%c0_30, %c0_31], %36 {strides = array<i32>} : memref<3x128xf32, #tpu.memory_space<vmem>>, vector<3x128xf32>,
    return
  }
  func.func @transform_0(%arg0: i32) -> (i32, i32) {
    %c0_i32 = arith.constant 0 : i32
    %c0_i32_0 = arith.constant 0 : i32
    return %c0_i32, %arg0 : i32, i32
  }
  func.func @transform_1(%arg0: i32) -> (i32, i32) {
    %c0_i32 = arith.constant 0 : i32
    %c0_i32_0 = arith.constant 0 : i32
    %c0_i32_1 = arith.constant 0 : i32
    return %c0_i32, %c0_i32_0 : i32, i32
  }
  func.func @transform_2(%arg0: i32) -> (i32, i32) {
    %c0_i32 = arith.constant 0 : i32
    %c0_i32_0 = arith.constant 0 : i32
    %c0_i32_1 = arith.constant 0 : i32
    return %c0_i32, %c0_i32_0 : i32, i32
  }
  func.func @transform_3(%arg0: i32) -> (i32, i32) {
    %c0_i32 = arith.constant 0 : i32
    %c0_i32_0 = arith.constant 0 : i32
    %c0_i32_1 = arith.constant 0 : i32
    return %c0_i32, %c0_i32_0 : i32, i32
  }
  func.func @transform_4(%arg0: i32) -> (i32, i32) {
    %c0_i32 = arith.constant 0 : i32
    %c0_i32_0 = arith.constant 0 : i32
    %c0_i32_1 = arith.constant 0 : i32
    return %c0_i32, %c0_i32_0 : i32, i32
  }
  func.func @transform_5(%arg0: i32) -> (i32, i32) {
    %c0_i32 = arith.constant 0 : i32
    %c0_i32_0 = arith.constant 0 : i32
    %c0_i32_1 = arith.constant 0 : i32
    return %c0_i32, %c0_i32_0 : i32, i32
  }
  func.func @transform_6(%arg0: i32) -> (i32, i32) {
    %c0_i32 = arith.constant 0 : i32
    %c0_i32_0 = arith.constant 0 : i32
    %c0_i32_1 = arith.constant 0 : i32
    return %c0_i32, %c0_i32_0 : i32, i32
  }
  func.func @transform_7(%arg0: i32) -> (i32, i32) {
    %c0_i32 = arith.constant 0 : i32
    %c0_i32_0 = arith.constant 0 : i32
    %c0_i32_1 = arith.constant 0 : i32
    return %c0_i32, %c0_i32_0 : i32, i32
  }
  func.func @transform_8(%arg0: i32) -> (i32, i32) {
    %c0_i32 = arith.constant 0 : i32
    %c0_i32_0 = arith.constant 0 : i32
    %c0_i32_1 = arith.constant 0 : i32
    return %c0_i32, %c0_i32_0 : i32, i32
  }
  func.func @transform_9(%arg0: i32) -> (i32, i32) {
    %c0_i32 = arith.constant 0 : i32
    %c0_i32_0 = arith.constant 0 : i32
    %c0_i32_1 = arith.constant 0 : i32
    return %c0_i32, %c0_i32_0 : i32, i32
  }
  func.func @transform_10(%arg0: i32) -> (i32, i32) {
    %c0_i32 = arith.constant 0 : i32
    %c0_i32_0 = arith.constant 0 : i32
    %c0_i32_1 = arith.constant 0 : i32
    return %c0_i32, %c0_i32_0 : i32, i32
  }
  func.func @transform_11(%arg0: i32) -> (i32, i32) {
    %c0_i32 = arith.constant 0 : i32
    %c0_i32_0 = arith.constant 0 : i32
    %c0_i32_1 = arith.constant 0 : i32
    return %c0_i32, %c0_i32_0 : i32, i32
  }
  func.func @transform_12(%arg0: i32) -> (i32, i32) {
    %c0_i32 = arith.constant 0 : i32
    %c0_i32_0 = arith.constant 0 : i32
    %c0_i32_1 = arith.constant 0 : i32
    return %c0_i32, %c0_i32_0 : i32, i32
  }
  func.func @transform_13(%arg0: i32) -> (i32, i32) {
    %c0_i32 = arith.constant 0 : i32
    %c0_i32_0 = arith.constant 0 : i32
    return %c0_i32, %arg0 : i32, i32
  }
}

</mosaic_0001>

<llo_original>
// kernel: tpu_custom_call.1
$region0: #{tpu_custom_call.1}
  #allocation0 [shape = 'u32[]', space=smem, size = 0x4, offset = 0x4, fixed_abs, tag = 'smem constant byte address 0x4 - core index']
  #allocation1 [shape = 'u32[144,128]{1,0:T(1,128)}', space=vmem, size = 0x12000, scoped, tag = 'internal scratch']
  %s0 = inlined_call_operand.vmem [shape: f32[2,256], index: 0, kind: input, shape index: {}]
  %s1 = inlined_call_operand.vmem [shape: f32[32,2], index: 1, kind: input, shape index: {}]
  %s2 = inlined_call_operand.vmem [shape: f32[32,1], index: 2, kind: input, shape index: {}]
  %s3 = inlined_call_operand.vmem [shape: f32[32,32], index: 3, kind: input, shape index: {}]
  %s4 = inlined_call_operand.vmem [shape: f32[32,1], index: 4, kind: input, shape index: {}]
  %s5 = inlined_call_operand.vmem [shape: f32[32,32], index: 5, kind: input, shape index: {}]
  %s6 = inlined_call_operand.vmem [shape: f32[32,1], index: 6, kind: input, shape index: {}]
  %s7 = inlined_call_operand.vmem [shape: f32[32,32], index: 7, kind: input, shape index: {}]
  %s8 = inlined_call_operand.vmem [shape: f32[32,1], index: 8, kind: input, shape index: {}]
  %s9 = inlined_call_operand.vmem [shape: f32[32,32], index: 9, kind: input, shape index: {}]
  %s10 = inlined_call_operand.vmem [shape: f32[32,1], index: 10, kind: input, shape index: {}]
  %s11 = inlined_call_operand.vmem [shape: f32[3,32], index: 11, kind: input, shape index: {}]
  %s12 = inlined_call_operand.vmem [shape: f32[3,1], index: 12, kind: input, shape index: {}]
  %s13 = inlined_call_operand.hbm [shape: f32[3,256], index: 13, kind: output, shape index: {}]
  %s14 = sld [smem:[#allocation0]]
  $region85: #{tpu_custom_call.1} parent=0
    _
  %s16 = ssub.s32 1, %s14
  %s17 = scalar_select 0, %s16, %s14
  $region1: #{tpu_custom_call.1} parent=0
    #allocation2 [shape = 'u8[4096]{0}', space=vmem, size = 0x1000, scoped, tag = 'output window, operand 0']
    #allocation3 [shape = 's32[2]{0}', space=sflag, size = 0x8, scoped, tag = 'scoped memory for tpu_custom_call.1']
    %18 = vsyncpa [#allocation3], 0
    %s19 = scalar_lea.sflag [#allocation3], 1
    %20 = vsyncpa %s19, 0
    loop: start=0, step=1, limit=4
    $region2: #{tpu_custom_call.1} parent=1 // loop_pre_header
      _
    $region3: #{tpu_custom_call.1} parent=1 // loop_header
      %s22 = sphi 0, %s26
      %p23 = scmp.ge.s32.totalorder %s22, 4
      %s32 = sphi 0, %s34
      %s35 = sphi 0, %s32
      %s36 = sphi 0, %s35
      %s52 = sphi 0, %s36
      %s56 = sphi 0, %s56
      %s58 = sphi 0, %s56
      %s59 = sphi 0, %s58
      %s73 = sphi 0, %s59
      %s77 = sphi 0, %s77
      %s79 = sphi 0, %s77
      %s80 = sphi 0, %s79
      %s94 = sphi 0, %s80
      %s98 = sphi 0, %s98
      %s100 = sphi 0, %s98
      %s101 = sphi 0, %s100
      %s115 = sphi 0, %s101
      %s119 = sphi 0, %s119
      %s121 = sphi 0, %s119
      %s122 = sphi 0, %s121
      %s136 = sphi 0, %s122
      %s140 = sphi 0, %s140
      %s142 = sphi 0, %s140
      %s143 = sphi 0, %s142
      %s157 = sphi 0, %s143
      %s161 = sphi 0, %s161
      %s163 = sphi 0, %s161
      %s164 = sphi 0, %s163
      %s178 = sphi 0, %s164
      %s182 = sphi 0, %s182
      %s184 = sphi 0, %s182
      %s185 = sphi 0, %s184
      %s199 = sphi 0, %s185
      %s203 = sphi 0, %s203
      %s205 = sphi 0, %s203
      %s206 = sphi 0, %s205
      %s220 = sphi 0, %s206
      %s224 = sphi 0, %s224
      %s226 = sphi 0, %s224
      %s227 = sphi 0, %s226
      %s241 = sphi 0, %s227
      %s245 = sphi 0, %s245
      %s247 = sphi 0, %s245
      %s248 = sphi 0, %s247
      %s262 = sphi 0, %s248
      %s266 = sphi 0, %s266
      %s268 = sphi 0, %s266
      %s269 = sphi 0, %s268
      %s283 = sphi 0, %s269
      %s287 = sphi 0, %s287
      %s289 = sphi 0, %s287
      %s290 = sphi 0, %s289
      %s304 = sphi 0, %s290
      %s310 = sphi 0, %s312
      %s313 = sphi 0, %s310
      %s314 = sphi 0, %s313
      %s330 = sphi 0, %s314
    $region4: #{tpu_custom_call.1} parent=1 // loop_header_branch
      %25 = sbr.rel (%p23) target = $region8
    $region5: #{tpu_custom_call.1} parent=1 // loop_body
      %s27 = ssub.s32 %s22, 1
      %s28 = ssub.s32 %s22, 2
      %s29 = sadd.s32 %s22, 1
      %s30 = ssub.s32 %s22, %s29
      %p31 = scmp.eq.s32.totalorder %s30, 0
      %s33 = sadd.s32 %s32, 1
      %s34 = scalar_select %p31, %s32, %s33
      %p37 = pneg %p31
      %p38 = scmp.eq.s32.totalorder %s22, 1
      %p39 = por %p37, %p38
      %p40 = scmp.ne.s32.totalorder %s32, %s35
      %p41 = scmp.eq.s32.totalorder %s22, 0
      %p42 = por %p40, %p41
      %p43 = scmp.ne.s32.totalorder %s32, %s35
      %p44 = scmp.eq.s32.totalorder %s27, 1
      %p45 = por %p43, %p44
      %p46 = scmp.ne.s32.totalorder %s35, %s36
      %p47 = scmp.eq.s32.totalorder %s27, 0
      %p48 = por %p46, %p47
      %p49 = scmp.ne.s32.totalorder %s35, %s36
      %p50 = scmp.eq.s32.totalorder %s28, 1
      %p51 = por %p49, %p50
      %p53 = scmp.ne.s32.totalorder %s36, %s52
      %p54 = scmp.eq.s32.totalorder %s28, 0
      %p55 = por %p53, %p54
      %s57 = sadd.s32 %s56, 1
      %p60 = scmp.eq.s32.totalorder %s22, 1
      %p61 = scmp.ne.s32.totalorder %s56, %s58
      %p62 = scmp.eq.s32.totalorder %s22, 0
      %p63 = por %p61, %p62
      %p64 = scmp.ne.s32.totalorder %s56, %s58
      %p65 = scmp.eq.s32.totalorder %s27, 1
      %p66 = por %p64, %p65
      %p67 = scmp.ne.s32.totalorder %s58, %s59
      %p68 = scmp.eq.s32.totalorder %s27, 0
      %p69 = por %p67, %p68
      %p70 = scmp.ne.s32.totalorder %s58, %s59
      %p71 = scmp.eq.s32.totalorder %s28, 1
      %p72 = por %p70, %p71
      %p74 = scmp.ne.s32.totalorder %s59, %s73
      %p75 = scmp.eq.s32.totalorder %s28, 0
      %p76 = por %p74, %p75
      %s78 = sadd.s32 %s77, 1
      %p81 = scmp.eq.s32.totalorder %s22, 1
      %p82 = scmp.ne.s32.totalorder %s77, %s79
      %p83 = scmp.eq.s32.totalorder %s22, 0
      %p84 = por %p82, %p83
      %p85 = scmp.ne.s32.totalorder %s77, %s79
      %p86 = scmp.eq.s32.totalorder %s27, 1
      %p87 = por %p85, %p86
      %p88 = scmp.ne.s32.totalorder %s79, %s80
      %p89 = scmp.eq.s32.totalorder %s27, 0
      %p90 = por %p88, %p89
      %p91 = scmp.ne.s32.totalorder %s79, %s80
      %p92 = scmp.eq.s32.totalorder %s28, 1
      %p93 = por %p91, %p92
      %p95 = scmp.ne.s32.totalorder %s80, %s94
      %p96 = scmp.eq.s32.totalorder %s28, 0
      %p97 = por %p95, %p96
      %s99 = sadd.s32 %s98, 1
      %p102 = scmp.eq.s32.totalorder %s22, 1
      %p103 = scmp.ne.s32.totalorder %s98, %s100
      %p104 = scmp.eq.s32.totalorder %s22, 0
      %p105 = por %p103, %p104
      %p106 = scmp.ne.s32.totalorder %s98, %s100
      %p107 = scmp.eq.s32.totalorder %s27, 1
      %p108 = por %p106, %p107
      %p109 = scmp.ne.s32.totalorder %s100, %s101
      %p110 = scmp.eq.s32.totalorder %s27, 0
      %p111 = por %p109, %p110
      %p112 = scmp.ne.s32.totalorder %s100, %s101
      %p113 = scmp.eq.s32.totalorder %s28, 1
      %p114 = por %p112, %p113
      %p116 = scmp.ne.s32.totalorder %s101, %s115
      %p117 = scmp.eq.s32.totalorder %s28, 0
      %p118 = por %p116, %p117
      %s120 = sadd.s32 %s119, 1
      %p123 = scmp.eq.s32.totalorder %s22, 1
      %p124 = scmp.ne.s32.totalorder %s119, %s121
      %p125 = scmp.eq.s32.totalorder %s22, 0
      %p126 = por %p124, %p125
      %p127 = scmp.ne.s32.totalorder %s119, %s121
      %p128 = scmp.eq.s32.totalorder %s27, 1
      %p129 = por %p127, %p128
      %p130 = scmp.ne.s32.totalorder %s121, %s122
      %p131 = scmp.eq.s32.totalorder %s27, 0
      %p132 = por %p130, %p131
      %p133 = scmp.ne.s32.totalorder %s121, %s122
      %p134 = scmp.eq.s32.totalorder %s28, 1
      %p135 = por %p133, %p134
      %p137 = scmp.ne.s32.totalorder %s122, %s136
      %p138 = scmp.eq.s32.totalorder %s28, 0
      %p139 = por %p137, %p138
      %s141 = sadd.s32 %s140, 1
      %p144 = scmp.eq.s32.totalorder %s22, 1
      %p145 = scmp.ne.s32.totalorder %s140, %s142
      %p146 = scmp.eq.s32.totalorder %s22, 0
      %p147 = por %p145, %p146
      %p148 = scmp.ne.s32.totalorder %s140, %s142
      %p149 = scmp.eq.s32.totalorder %s27, 1
      %p150 = por %p148, %p149
      %p151 = scmp.ne.s32.totalorder %s142, %s143
      %p152 = scmp.eq.s32.totalorder %s27, 0
      %p153 = por %p151, %p152
      %p154 = scmp.ne.s32.totalorder %s142, %s143
      %p155 = scmp.eq.s32.totalorder %s28, 1
      %p156 = por %p154, %p155
      %p158 = scmp.ne.s32.totalorder %s143, %s157
      %p159 = scmp.eq.s32.totalorder %s28, 0
      %p160 = por %p158, %p159
      %s162 = sadd.s32 %s161, 1
      %p165 = scmp.eq.s32.totalorder %s22, 1
      %p166 = scmp.ne.s32.totalorder %s161, %s163
      %p167 = scmp.eq.s32.totalorder %s22, 0
      %p168 = por %p166, %p167
      %p169 = scmp.ne.s32.totalorder %s161, %s163
      %p170 = scmp.eq.s32.totalorder %s27, 1
      %p171 = por %p169, %p170
      %p172 = scmp.ne.s32.totalorder %s163, %s164
      %p173 = scmp.eq.s32.totalorder %s27, 0
      %p174 = por %p172, %p173
      %p175 = scmp.ne.s32.totalorder %s163, %s164
      %p176 = scmp.eq.s32.totalorder %s28, 1
      %p177 = por %p175, %p176
      %p179 = scmp.ne.s32.totalorder %s164, %s178
      %p180 = scmp.eq.s32.totalorder %s28, 0
      %p181 = por %p179, %p180
      %s183 = sadd.s32 %s182, 1
      %p186 = scmp.eq.s32.totalorder %s22, 1
      %p187 = scmp.ne.s32.totalorder %s182, %s184
      %p188 = scmp.eq.s32.totalorder %s22, 0
      %p189 = por %p187, %p188
      %p190 = scmp.ne.s32.totalorder %s182, %s184
      %p191 = scmp.eq.s32.totalorder %s27, 1
      %p192 = por %p190, %p191
      %p193 = scmp.ne.s32.totalorder %s184, %s185
      %p194 = scmp.eq.s32.totalorder %s27, 0
      %p195 = por %p193, %p194
      %p196 = scmp.ne.s32.totalorder %s184, %s185
      %p197 = scmp.eq.s32.totalorder %s28, 1
      %p198 = por %p196, %p197
      %p200 = scmp.ne.s32.totalorder %s185, %s199
      %p201 = scmp.eq.s32.totalorder %s28, 0
      %p202 = por %p200, %p201
      %s204 = sadd.s32 %s203, 1
      %p207 = scmp.eq.s32.totalorder %s22, 1
      %p208 = scmp.ne.s32.totalorder %s203, %s205
      %p209 = scmp.eq.s32.totalorder %s22, 0
      %p210 = por %p208, %p209
      %p211 = scmp.ne.s32.totalorder %s203, %s205
      %p212 = scmp.eq.s32.totalorder %s27, 1
      %p213 = por %p211, %p212
      %p214 = scmp.ne.s32.totalorder %s205, %s206
      %p215 = scmp.eq.s32.totalorder %s27, 0
      %p216 = por %p214, %p215
      %p217 = scmp.ne.s32.totalorder %s205, %s206
      %p218 = scmp.eq.s32.totalorder %s28, 1
      %p219 = por %p217, %p218
      %p221 = scmp.ne.s32.totalorder %s206, %s220
      %p222 = scmp.eq.s32.totalorder %s28, 0
      %p223 = por %p221, %p222
      %s225 = sadd.s32 %s224, 1
      %p228 = scmp.eq.s32.totalorder %s22, 1
      %p229 = scmp.ne.s32.totalorder %s224, %s226
      %p230 = scmp.eq.s32.totalorder %s22, 0
      %p231 = por %p229, %p230
      %p232 = scmp.ne.s32.totalorder %s224, %s226
      %p233 = scmp.eq.s32.totalorder %s27, 1
      %p234 = por %p232, %p233
      %p235 = scmp.ne.s32.totalorder %s226, %s227
      %p236 = scmp.eq.s32.totalorder %s27, 0
      %p237 = por %p235, %p236
      %p238 = scmp.ne.s32.totalorder %s226, %s227
      %p239 = scmp.eq.s32.totalorder %s28, 1
      %p240 = por %p238, %p239
      %p242 = scmp.ne.s32.totalorder %s227, %s241
      %p243 = scmp.eq.s32.totalorder %s28, 0
      %p244 = por %p242, %p243
      %s246 = sadd.s32 %s245, 1
      %p249 = scmp.eq.s32.totalorder %s22, 1
      %p250 = scmp.ne.s32.totalorder %s245, %s247
      %p251 = scmp.eq.s32.totalorder %s22, 0
      %p252 = por %p250, %p251
      %p253 = scmp.ne.s32.totalorder %s245, %s247
      %p254 = scmp.eq.s32.totalorder %s27, 1
      %p255 = por %p253, %p254
      %p256 = scmp.ne.s32.totalorder %s247, %s248
      %p257 = scmp.eq.s32.totalorder %s27, 0
      %p258 = por %p256, %p257
      %p259 = scmp.ne.s32.totalorder %s247, %s248
      %p260 = scmp.eq.s32.totalorder %s28, 1
      %p261 = por %p259, %p260
      %p263 = scmp.ne.s32.totalorder %s248, %s262
      %p264 = scmp.eq.s32.totalorder %s28, 0
      %p265 = por %p263, %p264
      %s267 = sadd.s32 %s266, 1
      %p270 = scmp.eq.s32.totalorder %s22, 1
      %p271 = scmp.ne.s32.totalorder %s266, %s268
      %p272 = scmp.eq.s32.totalorder %s22, 0
      %p273 = por %p271, %p272
      %p274 = scmp.ne.s32.totalorder %s266, %s268
      %p275 = scmp.eq.s32.totalorder %s27, 1
      %p276 = por %p274, %p275
      %p277 = scmp.ne.s32.totalorder %s268, %s269
      %p278 = scmp.eq.s32.totalorder %s27, 0
      %p279 = por %p277, %p278
      %p280 = scmp.ne.s32.totalorder %s268, %s269
      %p281 = scmp.eq.s32.totalorder %s28, 1
      %p282 = por %p280, %p281
      %p284 = scmp.ne.s32.totalorder %s269, %s283
      %p285 = scmp.eq.s32.totalorder %s28, 0
      %p286 = por %p284, %p285
      %s288 = sadd.s32 %s287, 1
      %p291 = scmp.eq.s32.totalorder %s22, 1
      %p292 = scmp.ne.s32.totalorder %s287, %s289
      %p293 = scmp.eq.s32.totalorder %s22, 0
      %p294 = por %p292, %p293
      %p295 = scmp.ne.s32.totalorder %s287, %s289
      %p296 = scmp.eq.s32.totalorder %s27, 1
      %p297 = por %p295, %p296
      %p298 = scmp.ne.s32.totalorder %s289, %s290
      %p299 = scmp.eq.s32.totalorder %s27, 0
      %p300 = por %p298, %p299
      %p301 = scmp.ne.s32.totalorder %s289, %s290
      %p302 = scmp.eq.s32.totalorder %s28, 1
      %p303 = por %p301, %p302
      %p305 = scmp.ne.s32.totalorder %s290, %s304
      %p306 = scmp.eq.s32.totalorder %s28, 0
      %p307 = por %p305, %p306
      %s308 = ssub.s32 %s22, %s29
      %p309 = scmp.eq.s32.totalorder %s308, 0
      %s311 = sadd.s32 %s310, 1
      %s312 = scalar_select %p309, %s310, %s311
      %p315 = pneg %p309
      %p316 = scmp.eq.s32.totalorder %s22, 1
      %p317 = por %p315, %p316
      %p318 = scmp.ne.s32.totalorder %s310, %s313
      %p319 = scmp.eq.s32.totalorder %s22, 0
      %p320 = por %p318, %p319
      %p321 = scmp.ne.s32.totalorder %s310, %s313
      %p322 = scmp.eq.s32.totalorder %s27, 1
      %p323 = por %p321, %p322
      %p324 = scmp.ne.s32.totalorder %s313, %s314
      %p325 = scmp.eq.s32.totalorder %s27, 0
      %p326 = por %p324, %p325
      %p327 = scmp.ne.s32.totalorder %s313, %s314
      %p328 = scmp.eq.s32.totalorder %s28, 1
      %p329 = por %p327, %p328
      %p331 = scmp.ne.s32.totalorder %s314, %s330
      %p332 = scmp.eq.s32.totalorder %s28, 0
      %p333 = por %p331, %p332
      %p334 = scmp.le.s32.totalorder 1, %s22
      %p335 = scmp.lt.s32.totalorder %s22, 3
      %p336 = pnand %p334, %p335
      %p337 = pneg %p336
      // Predicated region
      $region9: #{tpu_custom_call.1} parent=5 // pred_check
        _
      $region10: #{tpu_custom_call.1} parent=5 // pred_check_branch
        %339 = sbr.rel (%p336) target = $region12
      $region11: #{tpu_custom_call.1} parent=5 // pred_region
        %s340 = ssub.s32 %s22, 1
        // Predicated region
        $region13: #{tpu_custom_call.1} parent=11 // pred_check
          %p341 = pneg %p69
        $region14: #{tpu_custom_call.1} parent=11 // pred_check_branch
          %343 = sbr.rel (%p341) target = $region16
        $region15: #{tpu_custom_call.1} parent=11 // pred_region
          _
        $region16: #{tpu_custom_call.1} parent=11 // pred_fallthru
          _
        // Predicated region
        $region17: #{tpu_custom_call.1} parent=11 // pred_check
          %p344 = pneg %p90
        $region18: #{tpu_custom_call.1} parent=11 // pred_check_branch
          %346 = sbr.rel (%p344) target = $region20
        $region19: #{tpu_custom_call.1} parent=11 // pred_region
          _
        $region20: #{tpu_custom_call.1} parent=11 // pred_fallthru
          _
        // Predicated region
        $region21: #{tpu_custom_call.1} parent=11 // pred_check
          %p347 = pneg %p111
        $region22: #{tpu_custom_call.1} parent=11 // pred_check_branch
          %349 = sbr.rel (%p347) target = $region24
        $region23: #{tpu_custom_call.1} parent=11 // pred_region
          _
        $region24: #{tpu_custom_call.1} parent=11 // pred_fallthru
          _
        // Predicated region
        $region25: #{tpu_custom_call.1} parent=11 // pred_check
          %p350 = pneg %p132
        $region26: #{tpu_custom_call.1} parent=11 // pred_check_branch
          %352 = sbr.rel (%p350) target = $region28
        $region27: #{tpu_custom_call.1} parent=11 // pred_region
          _
        $region28: #{tpu_custom_call.1} parent=11 // pred_fallthru
          _
        // Predicated region
        $region29: #{tpu_custom_call.1} parent=11 // pred_check
          %p353 = pneg %p153
        $region30: #{tpu_custom_call.1} parent=11 // pred_check_branch
          %355 = sbr.rel (%p353) target = $region32
        $region31: #{tpu_custom_call.1} parent=11 // pred_region
          _
        $region32: #{tpu_custom_call.1} parent=11 // pred_fallthru
          _
        // Predicated region
        $region33: #{tpu_custom_call.1} parent=11 // pred_check
          %p356 = pneg %p174
        $region34: #{tpu_custom_call.1} parent=11 // pred_check_branch
          %358 = sbr.rel (%p356) target = $region36
        $region35: #{tpu_custom_call.1} parent=11 // pred_region
          _
        $region36: #{tpu_custom_call.1} parent=11 // pred_fallthru
          _
        // Predicated region
        $region37: #{tpu_custom_call.1} parent=11 // pred_check
          %p359 = pneg %p195
        $region38: #{tpu_custom_call.1} parent=11 // pred_check_branch
          %361 = sbr.rel (%p359) target = $region40
        $region39: #{tpu_custom_call.1} parent=11 // pred_region
          _
        $region40: #{tpu_custom_call.1} parent=11 // pred_fallthru
          _
        // Predicated region
        $region41: #{tpu_custom_call.1} parent=11 // pred_check
          %p362 = pneg %p216
        $region42: #{tpu_custom_call.1} parent=11 // pred_check_branch
          %364 = sbr.rel (%p362) target = $region44
        $region43: #{tpu_custom_call.1} parent=11 // pred_region
          _
        $region44: #{tpu_custom_call.1} parent=11 // pred_fallthru
          _
        // Predicated region
        $region45: #{tpu_custom_call.1} parent=11 // pred_check
          %p365 = pneg %p237
        $region46: #{tpu_custom_call.1} parent=11 // pred_check_branch
          %367 = sbr.rel (%p365) target = $region48
        $region47: #{tpu_custom_call.1} parent=11 // pred_region
          _
        $region48: #{tpu_custom_call.1} parent=11 // pred_fallthru
          _
        // Predicated region
        $region49: #{tpu_custom_call.1} parent=11 // pred_check
          %p368 = pneg %p258
        $region50: #{tpu_custom_call.1} parent=11 // pred_check_branch
          %370 = sbr.rel (%p368) target = $region52
        $region51: #{tpu_custom_call.1} parent=11 // pred_region
          _
        $region52: #{tpu_custom_call.1} parent=11 // pred_fallthru
          _
        // Predicated region
        $region53: #{tpu_custom_call.1} parent=11 // pred_check
          %p371 = pneg %p279
        $region54: #{tpu_custom_call.1} parent=11 // pred_check_branch
          %373 = sbr.rel (%p371) target = $region56
        $region55: #{tpu_custom_call.1} parent=11 // pred_region
          _
        $region56: #{tpu_custom_call.1} parent=11 // pred_fallthru
          _
        // Predicated region
        $region57: #{tpu_custom_call.1} parent=11 // pred_check
          %p374 = pneg %p300
        $region58: #{tpu_custom_call.1} parent=11 // pred_check_branch
          %376 = sbr.rel (%p374) target = $region60
        $region59: #{tpu_custom_call.1} parent=11 // pred_region
          _
        $region60: #{tpu_custom_call.1} parent=11 // pred_fallthru
          _
      $region12: #{tpu_custom_call.1} parent=5 // pred_fallthru
        _
      %p377 = scmp.lt.s32.totalorder %s22, 2
      // Predicated region
      $region61: #{tpu_custom_call.1} parent=5 // pred_check
        %p378 = pneg %p377
      $region62: #{tpu_custom_call.1} parent=5 // pred_check_branch
        %380 = sbr.rel (%p378) target = $region64
      $region63: #{tpu_custom_call.1} parent=5 // pred_region
        // Predicated region
        $region65: #{tpu_custom_call.1} parent=63 // pred_check
          %p381 = pneg %p42
        $region66: #{tpu_custom_call.1} parent=63 // pred_check_branch
          %383 = sbr.rel (%p381) target = $region68
        $region67: #{tpu_custom_call.1} parent=63 // pred_region
          %p384 = scmp.lt.s32.totalorder %s22, 1
          %s385 = scalar_select %p384, %s22, 1
          %s386 = smul.addr %s385, 2
          %s387 = scalar_lea.vmem %s0, %s386
        $region68: #{tpu_custom_call.1} parent=63 // pred_fallthru
          _
      $region64: #{tpu_custom_call.1} parent=5 // pred_fallthru
        _
      %p388 = scmp.le.s32.totalorder 1, %s22
      %p389 = scmp.lt.s32.totalorder %s22, 3
      %p390 = pnand %p388, %p389
      %p391 = pneg %p390
      // Predicated region
      $region69: #{tpu_custom_call.1} parent=5 // pred_check
        _
      $region70: #{tpu_custom_call.1} parent=5 // pred_check_branch
        %393 = sbr.rel (%p390) target = $region72
      $region71: #{tpu_custom_call.1} parent=5 // pred_region
        %s394 = ssub.s32 %s22, 1
        %p395 = scmp.lt.s32.totalorder %s27, 1
        %s396 = scalar_select %p395, %s27, 1
        %s397 = smul.addr %s396, 2
        %s398 = scalar_lea.vmem %s0, %s397
        %p399 = pneg %p48
        %p400 = pneg %p45
        %p401 = pneg %p69
        %p402 = pneg %p66
        %p403 = pneg %p90
        %p404 = pneg %p87
        %p405 = pneg %p111
        %p406 = pneg %p108
        %p407 = pneg %p132
        %p408 = pneg %p129
        %p409 = pneg %p153
        %p410 = pneg %p150
        %p411 = pneg %p174
        %p412 = pneg %p171
        %p413 = pneg %p195
        %p414 = pneg %p192
        %p415 = pneg %p216
        %p416 = pneg %p213
        %p417 = pneg %p237
        %p418 = pneg %p234
        %p419 = pneg %p258
        %p420 = pneg %p255
        %p421 = pneg %p279
        %p422 = pneg %p276
        %p423 = pneg %p300
        %p424 = pneg %p297
        %p425 = pneg %p326
        %p426 = pneg %p323
        %s427 = sand.u32 %s313, 1
        %s428 = scalar_lea.sflag [#allocation3], %s427
        %s429 = sand.u32 %s313, 1
        %s430 = smul.addr %s429, 4
        %s431 = scalar_lea.vmem [#allocation2], %s430
        %p432 = scmp.lt.s32.totalorder %s27, 1
        %s433 = scalar_select %p432, %s27, 1
        %s434 = smul.addr %s433, 2
        %s435 = scalar_lea.vmem %s0, %s434
        %v436 = vld [vmem:[%s435] sm:$0x3]
        %v437 = vld [vmem:[%s1] sm:$0xff]
        %v438 = vld [vmem:[%s1 + $0x8] sm:$0xff]
        %v439 = vld [vmem:[%s1 + $0x10] sm:$0xff]
        %v440 = vld [vmem:[%s1 + $0x18] sm:$0xff]
        %v441 = vld [vmem:[%s2] sm:$0xff]
        %v442 = vld [vmem:[%s2 + $0x8] sm:$0xff]
        %v443 = vld [vmem:[%s2 + $0x10] sm:$0xff]
        %v444 = vld [vmem:[%s2 + $0x18] sm:$0xff]
        %446 = vset.pattern.permute.xlu0 0
        %447 = vperm.xlu0 %446, %v441
        %v448 = vpop.permute.xlu0 %447
        %451 = vset.pattern.permute.xlu0 0
        %452 = vperm.xlu0 %451, %v442
        %v453 = vpop.permute.xlu0 %452
        %456 = vset.pattern.permute.xlu0 0
        %457 = vperm.xlu0 %456, %v443
        %v458 = vpop.permute.xlu0 %457
        %461 = vset.pattern.permute.xlu0 0
        %462 = vperm.xlu0 %461, %v444
        %v463 = vpop.permute.xlu0 %462
        %vm465 = vcmask 15360
        %v467 = vsel %vm465, %v437, 0
        %v470 = vsel %vm465, %v438, 0
        %v473 = vsel %vm465, %v439, 0
        %v476 = vsel %vm465, %v440, 0
        %vm478 = vcmask 1041408
        %v480 = vsel %vm478, %v436, 0
        %482 = vmatprep.subr.mxu0 0.0
        %483 = vmatpush1.msra.mxu0 %v480
        %484 = vmatprep.subr.mxu0 0.0
        %485 = vmatpush1.msra.mxu0 0.0
        %486 = vmatprep.subr.mxu0 0.0
        %487 = vmatpush1.msra.mxu0 0.0
        %488 = vmatprep.subr.mxu0 0.0
        %489 = vmatpush1.msra.mxu0 0.0
        %490 = vmatprep.subr.mxu0 0.0
        %491 = vmatpush1.msra.mxu0 0.0
        %492 = vmatprep.subr.mxu0 0.0
        %493 = vmatpush1.msra.mxu0 0.0
        %494 = vmatprep.subr.mxu0 0.0
        %495 = vmatpush1.msra.mxu0 0.0
        %496 = vmatprep.subr.mxu0 0.0
        %497 = vmatpush1.msra.mxu0 0.0
        %498 = vmatprep.subr.mxu0 0.0
        %499 = vmatpush1.msra.mxu0 0.0
        %500 = vmatprep.subr.mxu0 0.0
        %501 = vmatpush1.msra.mxu0 0.0
        %502 = vmatprep.subr.mxu0 0.0
        %503 = vmatpush1.msra.mxu0 0.0
        %504 = vmatprep.subr.mxu0 0.0
        %505 = vmatpush1.msra.mxu0 0.0
        %506 = vmatprep.subr.mxu0 0.0
        %507 = vmatpush1.msra.mxu0 0.0
        %508 = vmatprep.subr.mxu0 0.0
        %509 = vmatpush1.msra.mxu0 0.0
        %510 = vmatprep.subr.mxu0 0.0
        %511 = vmatpush1.msra.mxu0 0.0
        %512 = vmatprep.subr.mxu0 0.0
        %513 = vmatpush1.msra.mxu0 0.0
        %514 = vmatprep.subr.mxu0 0.0
        %515 = vmatpush1.msra.mxu0 0.0
        %516 = vmatprep.subr.mxu0 0.0
        %517 = vmatpush1.msra.mxu0 0.0
        %518 = vmatprep.subr.mxu0 0.0
        %519 = vmatpush1.msra.mxu0 0.0
        %520 = vmatprep.subr.mxu0 0.0
        %521 = vmatpush1.msra.mxu0 0.0
        %522 = vmatprep.subr.mxu0 0.0
        %523 = vmatpush1.msra.mxu0 0.0
        %524 = vmatprep.subr.mxu0 0.0
        %525 = vmatpush1.msra.mxu0 0.0
        %526 = vmatprep.subr.mxu0 0.0
        %527 = vmatpush1.msra.mxu0 0.0
        %528 = vmatprep.subr.mxu0 0.0
        %529 = vmatpush1.msra.mxu0 0.0
        %530 = vmatprep.subr.mxu0 0.0
        %531 = vmatpush1.msra.mxu0 0.0
        %532 = vmatprep.subr.mxu0 0.0
        %533 = vmatpush1.msra.mxu0 0.0
        %534 = vmatprep.subr.mxu0 0.0
        %535 = vmatpush1.msra.mxu0 0.0
        %536 = vmatprep.subr.mxu0 0.0
        %537 = vmatpush1.msra.mxu0 0.0
        %538 = vmatprep.subr.mxu0 0.0
        %539 = vmatpush1.msra.mxu0 0.0
        %540 = vmatprep.subr.mxu0 0.0
        %541 = vmatpush1.msra.mxu0 0.0
        %542 = vmatprep.subr.mxu0 0.0
        %543 = vmatpush1.msra.mxu0 0.0
        %544 = vmatprep.subr.mxu0 0.0
        %545 = vmatpush1.msra.mxu0 0.0
        %546 = vmatprep.mubr.f32.mxu0 0.0
        %547 = vmatmul.mubr.f32.gmra.mrb[0].mxu0 %v467
        %v548 = vpop.f32.mrb[0].mxu0
        %v549 = vadd.f32 %v448, %v548
        %v550 = vpop.f32.mrb[0].mxu0
        %551 = vmatprep.mubr.f32.mxu0 0.0
        %552 = vmatmul.mubr.f32.gmra.mrb[0].mxu0 %v470
        %v553 = vpop.f32.mrb[0].mxu0
        %v554 = vadd.f32 %v453, %v553
        %v555 = vpop.f32.mrb[0].mxu0
        %556 = vmatprep.mubr.f32.mxu0 0.0
        %557 = vmatmul.mubr.f32.gmra.mrb[0].mxu0 %v473
        %v558 = vpop.f32.mrb[0].mxu0
        %v559 = vadd.f32 %v458, %v558
        %v560 = vpop.f32.mrb[0].mxu0
        %561 = vmatprep.mubr.f32.mxu0 0.0
        %562 = vmatmul.mubr.f32.gmra.mrb[0].mxu0 %v476
        %v563 = vpop.f32.mrb[0].mxu0
        %v564 = vadd.f32 %v463, %v563
        %v565 = vpop.f32.mrb[0].mxu0
        %566 = vdwg.mxu0
        %v567 = vand.u32 2147483647, %v549
        %vm568 = vcmp.le.f32.partialorder %v567, 0.7853982
        %vm569 = vcmp.lt.s32.totalorder %v549, 0
        %v570 = vand.u32 %v549, 2139095040
        %v571 = vshrl.u32 %v570, 23
        %v572 = vsub.s32 %v571, 127
        %v573 = vand.u32 2147483647, %v549
        %v574 = vand.u32 %v573, 8388607
        %v575 = vor.u32 %v574, 8388608
        %v576 = vsub.s32 0, %v575
        %v577 = vadd.s32 %v572, 1
        %vm578 = vcmp.gt.s32.totalorder %v577, 0
        %v579 = vsel %vm578, %v577, 0
        %v580 = vshrl.u32 %v579, 5
        %v581 = vand.u32 %v579, 31
        %v582 = vsub.s32 32, %v581
        %v583 = vshrl.u32 683565275, %v582
        %v584 = vshll.u32 683565275, %v581
        %v585 = vshrl.u32 2475754826, %v582
        %v586 = vor.u32 %v584, %v585
        %v587 = vshll.u32 2475754826, %v581
        %v588 = vshrl.u32 2131351028, %v582
        %v589 = vor.u32 %v587, %v588
        %v590 = vshll.u32 2131351028, %v581
        %v591 = vshrl.u32 2102212464, %v582
        %v592 = vor.u32 %v590, %v591
        %v593 = vshll.u32 2102212464, %v581
        %v594 = vshrl.u32 920167782, %v582
        %v595 = vor.u32 %v593, %v594
        %v596 = vshll.u32 920167782, %v581
        %v597 = vshrl.u32 1326507024, %v582
        %v598 = vor.u32 %v596, %v597
        %vm599 = vcmp.lt.s32.totalorder %v580, 1
        %vm600 = vcmp.lt.s32.totalorder %v580, 2
        %vm601 = vcmp.lt.s32.totalorder %v580, 3
        %vm602 = vcmp.lt.s32.totalorder %v580, 4
        %v603 = vsel %vm599, %v583, %v586
        %v604 = vsel %vm602, %v592, 2102212464
        %v605 = vsel %vm601, %v589, %v604
        %v606 = vsel %vm600, %v603, %v605
        %v607 = vsel %vm599, %v586, %v589
        %v608 = vsel %vm602, %v595, 920167782
        %v609 = vsel %vm601, %v592, %v608
        %v610 = vsel %vm600, %v607, %v609
        %v611 = vsel %vm599, %v589, %v592
        %v612 = vsel %vm602, %v598, 1326507024
        %v613 = vsel %vm601, %v595, %v612
        %v614 = vsel %vm600, %v611, %v613
        %v615 = vshll.u32 %v575, 8
        %v616 = vmul.u32.u64.compose %v615, %v614
        %v617 = vextract.low.u32 %v616
        %v618 = vextract.high.u32 %v616
        %v619 = vmul.u32.u64.compose %v615, %v610
        %v620 = vextract.low.u32 %v619
        %v621 = vextract.high.u32 %v619
        %v622 = vmul.u32 %v615, %v606
        %v623 = vadd.s32 %v618, %v620
        %vm624 = vc.u32 %v618, %v620
        %v625 = vadd.s32 %v621, 1
        %v626 = vsel %vm624, %v625, %v621
        %v627 = vadd.s32 %v622, %v626
        %v628 = vadd.s32 %v627, 536870912
        %v629 = vshrl.u32 %v628, 30
        %v630 = vshll.u32 %v629, 30
        %v631 = vsub.s32 %v627, %v630
        %vm632 = vcmp.lt.s32.totalorder %v631, 0
        %v633 = vsub.s32 0, %v631
        %v634 = vsel %vm632, %v633, %v631
        %v635 = vclz %v634
        %v636 = vsub.s32 %v635, 2
        %vm637 = vcmp.gt.s32.totalorder 0, %v636
        %v638 = vsel %vm637, 0, %v636
        %v639 = vsub.s32 32, %v638
        %v640 = vshll.u32 %v631, %v638
        %v641 = vshrl.u32 %v623, %v639
        %v642 = vor.u32 %v640, %v641
        %v643 = vsub.s32 4294967266, %v638
        %v644 = vadd.s32 %v643, 127
        %v645 = vshll.u32 %v644, 23
        %v646 = vor.u32 4788187, %v645
        %v647 = vand.u32 2147483647, %v646
        %v649 = vcvt.s32.f32 %v642
        %v650 = vmul.f32 %v649, %v647
        %v651 = vxor.u32 %v650, 2147483648
        %v652 = vsel %vm569, %v651, %v650
        %v653 = vsub.s32 4, %v629
        %v654 = vsel %vm569, %v653, %v629
        %v655 = vsel %vm568, %v549, %v652
        %v656 = vsel %vm568, 0, %v654
        %v657 = vcosq.f32.pop %v655
        %v658 = vsinq.f32.pop %v655
        %vm659 = vweird.f32 %v549
        %v660 = vadd.s32 %v656, 3
        %v661 = vand.u32 %v660, 3
        %vm662 = vcmp.lt.s32.totalorder %v661, 2
        %vm663 = vcmp.eq.s32.totalorder %v661, 0
        %v664 = vxor.u32 %v658, 2147483648
        %v665 = vsel %vm663, %v657, %v664
        %vm666 = vcmp.eq.s32.totalorder %v661, 2
        %v667 = vxor.u32 %v657, 2147483648
        %v668 = vsel %vm666, %v667, %v658
        %v669 = vsel %vm662, %v665, %v668
        %v670 = vsel %vm659, nan, %v669
        %v671 = vand.u32 2147483647, %v554
        %vm672 = vcmp.le.f32.partialorder %v671, 0.7853982
        %vm673 = vcmp.lt.s32.totalorder %v554, 0
        %v674 = vand.u32 %v554, 2139095040
        %v675 = vshrl.u32 %v674, 23
        %v676 = vsub.s32 %v675, 127
        %v677 = vand.u32 2147483647, %v554
        %v678 = vand.u32 %v677, 8388607
        %v679 = vor.u32 %v678, 8388608
        %v680 = vsub.s32 0, %v679
        %v681 = vadd.s32 %v676, 1
        %vm682 = vcmp.gt.s32.totalorder %v681, 0
        %v683 = vsel %vm682, %v681, 0
        %v684 = vshrl.u32 %v683, 5
        %v685 = vand.u32 %v683, 31
        %v686 = vsub.s32 32, %v685
        %v687 = vshrl.u32 683565275, %v686
        %v688 = vshll.u32 683565275, %v685
        %v689 = vshrl.u32 2475754826, %v686
        %v690 = vor.u32 %v688, %v689
        %v691 = vshll.u32 2475754826, %v685
        %v692 = vshrl.u32 2131351028, %v686
        %v693 = vor.u32 %v691, %v692
        %v694 = vshll.u32 2131351028, %v685
        %v695 = vshrl.u32 2102212464, %v686
        %v696 = vor.u32 %v694, %v695
        %v697 = vshll.u32 2102212464, %v685
        %v698 = vshrl.u32 920167782, %v686
        %v699 = vor.u32 %v697, %v698
        %v700 = vshll.u32 920167782, %v685
        %v701 = vshrl.u32 1326507024, %v686
        %v702 = vor.u32 %v700, %v701
        %vm703 = vcmp.lt.s32.totalorder %v684, 1
        %vm704 = vcmp.lt.s32.totalorder %v684, 2
        %vm705 = vcmp.lt.s32.totalorder %v684, 3
        %vm706 = vcmp.lt.s32.totalorder %v684, 4
        %v707 = vsel %vm703, %v687, %v690
        %v708 = vsel %vm706, %v696, 2102212464
        %v709 = vsel %vm705, %v693, %v708
        %v710 = vsel %vm704, %v707, %v709
        %v711 = vsel %vm703, %v690, %v693
        %v712 = vsel %vm706, %v699, 920167782
        %v713 = vsel %vm705, %v696, %v712
        %v714 = vsel %vm704, %v711, %v713
        %v715 = vsel %vm703, %v693, %v696
        %v716 = vsel %vm706, %v702, 1326507024
        %v717 = vsel %vm705, %v699, %v716
        %v718 = vsel %vm704, %v715, %v717
        %v719 = vshll.u32 %v679, 8
        %v720 = vmul.u32.u64.compose %v719, %v718
        %v721 = vextract.low.u32 %v720
        %v722 = vextract.high.u32 %v720
        %v723 = vmul.u32.u64.compose %v719, %v714
        %v724 = vextract.low.u32 %v723
        %v725 = vextract.high.u32 %v723
        %v726 = vmul.u32 %v719, %v710
        %v727 = vadd.s32 %v722, %v724
        %vm728 = vc.u32 %v722, %v724
        %v729 = vadd.s32 %v725, 1
        %v730 = vsel %vm728, %v729, %v725
        %v731 = vadd.s32 %v726, %v730
        %v732 = vadd.s32 %v731, 536870912
        %v733 = vshrl.u32 %v732, 30
        %v734 = vshll.u32 %v733, 30
        %v735 = vsub.s32 %v731, %v734
        %vm736 = vcmp.lt.s32.totalorder %v735, 0
        %v737 = vsub.s32 0, %v735
        %v738 = vsel %vm736, %v737, %v735
        %v739 = vclz %v738
        %v740 = vsub.s32 %v739, 2
        %vm741 = vcmp.gt.s32.totalorder 0, %v740
        %v742 = vsel %vm741, 0, %v740
        %v743 = vsub.s32 32, %v742
        %v744 = vshll.u32 %v735, %v742
        %v745 = vshrl.u32 %v727, %v743
        %v746 = vor.u32 %v744, %v745
        %v747 = vsub.s32 4294967266, %v742
        %v748 = vadd.s32 %v747, 127
        %v749 = vshll.u32 %v748, 23
        %v750 = vor.u32 4788187, %v749
        %v751 = vand.u32 2147483647, %v750
        %v753 = vcvt.s32.f32 %v746
        %v754 = vmul.f32 %v753, %v751
        %v755 = vxor.u32 %v754, 2147483648
        %v756 = vsel %vm673, %v755, %v754
        %v757 = vsub.s32 4, %v733
        %v758 = vsel %vm673, %v757, %v733
        %v759 = vsel %vm672, %v554, %v756
        %v760 = vsel %vm672, 0, %v758
        %v761 = vcosq.f32.pop %v759
        %v762 = vsinq.f32.pop %v759
        %vm763 = vweird.f32 %v554
        %v764 = vadd.s32 %v760, 3
        %v765 = vand.u32 %v764, 3
        %vm766 = vcmp.lt.s32.totalorder %v765, 2
        %vm767 = vcmp.eq.s32.totalorder %v765, 0
        %v768 = vxor.u32 %v762, 2147483648
        %v769 = vsel %vm767, %v761, %v768
        %vm770 = vcmp.eq.s32.totalorder %v765, 2
        %v771 = vxor.u32 %v761, 2147483648
        %v772 = vsel %vm770, %v771, %v762
        %v773 = vsel %vm766, %v769, %v772
        %v774 = vsel %vm763, nan, %v773
        %v775 = vand.u32 2147483647, %v559
        %vm776 = vcmp.le.f32.partialorder %v775, 0.7853982
        %vm777 = vcmp.lt.s32.totalorder %v559, 0
        %v778 = vand.u32 %v559, 2139095040
        %v779 = vshrl.u32 %v778, 23
        %v780 = vsub.s32 %v779, 127
        %v781 = vand.u32 2147483647, %v559
        %v782 = vand.u32 %v781, 8388607
        %v783 = vor.u32 %v782, 8388608
        %v784 = vsub.s32 0, %v783
        %v785 = vadd.s32 %v780, 1
        %vm786 = vcmp.gt.s32.totalorder %v785, 0
        %v787 = vsel %vm786, %v785, 0
        %v788 = vshrl.u32 %v787, 5
        %v789 = vand.u32 %v787, 31
        %v790 = vsub.s32 32, %v789
        %v791 = vshrl.u32 683565275, %v790
        %v792 = vshll.u32 683565275, %v789
        %v793 = vshrl.u32 2475754826, %v790
        %v794 = vor.u32 %v792, %v793
        %v795 = vshll.u32 2475754826, %v789
        %v796 = vshrl.u32 2131351028, %v790
        %v797 = vor.u32 %v795, %v796
        %v798 = vshll.u32 2131351028, %v789
        %v799 = vshrl.u32 2102212464, %v790
        %v800 = vor.u32 %v798, %v799
        %v801 = vshll.u32 2102212464, %v789
        %v802 = vshrl.u32 920167782, %v790
        %v803 = vor.u32 %v801, %v802
        %v804 = vshll.u32 920167782, %v789
        %v805 = vshrl.u32 1326507024, %v790
        %v806 = vor.u32 %v804, %v805
        %vm807 = vcmp.lt.s32.totalorder %v788, 1
        %vm808 = vcmp.lt.s32.totalorder %v788, 2
        %vm809 = vcmp.lt.s32.totalorder %v788, 3
        %vm810 = vcmp.lt.s32.totalorder %v788, 4
        %v811 = vsel %vm807, %v791, %v794
        %v812 = vsel %vm810, %v800, 2102212464
        %v813 = vsel %vm809, %v797, %v812
        %v814 = vsel %vm808, %v811, %v813
        %v815 = vsel %vm807, %v794, %v797
        %v816 = vsel %vm810, %v803, 920167782
        %v817 = vsel %vm809, %v800, %v816
        %v818 = vsel %vm808, %v815, %v817
        %v819 = vsel %vm807, %v797, %v800
        %v820 = vsel %vm810, %v806, 1326507024
        %v821 = vsel %vm809, %v803, %v820
        %v822 = vsel %vm808, %v819, %v821
        %v823 = vshll.u32 %v783, 8
        %v824 = vmul.u32.u64.compose %v823, %v822
        %v825 = vextract.low.u32 %v824
        %v826 = vextract.high.u32 %v824
        %v827 = vmul.u32.u64.compose %v823, %v818
        %v828 = vextract.low.u32 %v827
        %v829 = vextract.high.u32 %v827
        %v830 = vmul.u32 %v823, %v814
        %v831 = vadd.s32 %v826, %v828
        %vm832 = vc.u32 %v826, %v828
        %v833 = vadd.s32 %v829, 1
        %v834 = vsel %vm832, %v833, %v829
        %v835 = vadd.s32 %v830, %v834
        %v836 = vadd.s32 %v835, 536870912
        %v837 = vshrl.u32 %v836, 30
        %v838 = vshll.u32 %v837, 30
        %v839 = vsub.s32 %v835, %v838
        %vm840 = vcmp.lt.s32.totalorder %v839, 0
        %v841 = vsub.s32 0, %v839
        %v842 = vsel %vm840, %v841, %v839
        %v843 = vclz %v842
        %v844 = vsub.s32 %v843, 2
        %vm845 = vcmp.gt.s32.totalorder 0, %v844
        %v846 = vsel %vm845, 0, %v844
        %v847 = vsub.s32 32, %v846
        %v848 = vshll.u32 %v839, %v846
        %v849 = vshrl.u32 %v831, %v847
        %v850 = vor.u32 %v848, %v849
        %v851 = vsub.s32 4294967266, %v846
        %v852 = vadd.s32 %v851, 127
        %v853 = vshll.u32 %v852, 23
        %v854 = vor.u32 4788187, %v853
        %v855 = vand.u32 2147483647, %v854
        %v857 = vcvt.s32.f32 %v850
        %v858 = vmul.f32 %v857, %v855
        %v859 = vxor.u32 %v858, 2147483648
        %v860 = vsel %vm777, %v859, %v858
        %v861 = vsub.s32 4, %v837
        %v862 = vsel %vm777, %v861, %v837
        %v863 = vsel %vm776, %v559, %v860
        %v864 = vsel %vm776, 0, %v862
        %v865 = vcosq.f32.pop %v863
        %v866 = vsinq.f32.pop %v863
        %vm867 = vweird.f32 %v559
        %v868 = vadd.s32 %v864, 3
        %v869 = vand.u32 %v868, 3
        %vm870 = vcmp.lt.s32.totalorder %v869, 2
        %vm871 = vcmp.eq.s32.totalorder %v869, 0
        %v872 = vxor.u32 %v866, 2147483648
        %v873 = vsel %vm871, %v865, %v872
        %vm874 = vcmp.eq.s32.totalorder %v869, 2
        %v875 = vxor.u32 %v865, 2147483648
        %v876 = vsel %vm874, %v875, %v866
        %v877 = vsel %vm870, %v873, %v876
        %v878 = vsel %vm867, nan, %v877
        %v879 = vand.u32 2147483647, %v564
        %vm880 = vcmp.le.f32.partialorder %v879, 0.7853982
        %vm881 = vcmp.lt.s32.totalorder %v564, 0
        %v882 = vand.u32 %v564, 2139095040
        %v883 = vshrl.u32 %v882, 23
        %v884 = vsub.s32 %v883, 127
        %v885 = vand.u32 2147483647, %v564
        %v886 = vand.u32 %v885, 8388607
        %v887 = vor.u32 %v886, 8388608
        %v888 = vsub.s32 0, %v887
        %v889 = vadd.s32 %v884, 1
        %vm890 = vcmp.gt.s32.totalorder %v889, 0
        %v891 = vsel %vm890, %v889, 0
        %v892 = vshrl.u32 %v891, 5
        %v893 = vand.u32 %v891, 31
        %v894 = vsub.s32 32, %v893
        %v895 = vshrl.u32 683565275, %v894
        %v896 = vshll.u32 683565275, %v893
        %v897 = vshrl.u32 2475754826, %v894
        %v898 = vor.u32 %v896, %v897
        %v899 = vshll.u32 2475754826, %v893
        %v900 = vshrl.u32 2131351028, %v894
        %v901 = vor.u32 %v899, %v900
        %v902 = vshll.u32 2131351028, %v893
        %v903 = vshrl.u32 2102212464, %v894
        %v904 = vor.u32 %v902, %v903
        %v905 = vshll.u32 2102212464, %v893
        %v906 = vshrl.u32 920167782, %v894
        %v907 = vor.u32 %v905, %v906
        %v908 = vshll.u32 920167782, %v893
        %v909 = vshrl.u32 1326507024, %v894
        %v910 = vor.u32 %v908, %v909
        %vm911 = vcmp.lt.s32.totalorder %v892, 1
        %vm912 = vcmp.lt.s32.totalorder %v892, 2
        %vm913 = vcmp.lt.s32.totalorder %v892, 3
        %vm914 = vcmp.lt.s32.totalorder %v892, 4
        %v915 = vsel %vm911, %v895, %v898
        %v916 = vsel %vm914, %v904, 2102212464
        %v917 = vsel %vm913, %v901, %v916
        %v918 = vsel %vm912, %v915, %v917
        %v919 = vsel %vm911, %v898, %v901
        %v920 = vsel %vm914, %v907, 920167782
        %v921 = vsel %vm913, %v904, %v920
        %v922 = vsel %vm912, %v919, %v921
        %v923 = vsel %vm911, %v901, %v904
        %v924 = vsel %vm914, %v910, 1326507024
        %v925 = vsel %vm913, %v907, %v924
        %v926 = vsel %vm912, %v923, %v925
        %v927 = vshll.u32 %v887, 8
        %v928 = vmul.u32.u64.compose %v927, %v926
        %v929 = vextract.low.u32 %v928
        %v930 = vextract.high.u32 %v928
        %v931 = vmul.u32.u64.compose %v927, %v922
        %v932 = vextract.low.u32 %v931
        %v933 = vextract.high.u32 %v931
        %v934 = vmul.u32 %v927, %v918
        %v935 = vadd.s32 %v930, %v932
        %vm936 = vc.u32 %v930, %v932
        %v937 = vadd.s32 %v933, 1
        %v938 = vsel %vm936, %v937, %v933
        %v939 = vadd.s32 %v934, %v938
        %v940 = vadd.s32 %v939, 536870912
        %v941 = vshrl.u32 %v940, 30
        %v942 = vshll.u32 %v941, 30
        %v943 = vsub.s32 %v939, %v942
        %vm944 = vcmp.lt.s32.totalorder %v943, 0
        %v945 = vsub.s32 0, %v943
        %v946 = vsel %vm944, %v945, %v943
        %v947 = vclz %v946
        %v948 = vsub.s32 %v947, 2
        %vm949 = vcmp.gt.s32.totalorder 0, %v948
        %v950 = vsel %vm949, 0, %v948
        %v951 = vsub.s32 32, %v950
        %v952 = vshll.u32 %v943, %v950
        %v953 = vshrl.u32 %v935, %v951
        %v954 = vor.u32 %v952, %v953
        %v955 = vsub.s32 4294967266, %v950
        %v956 = vadd.s32 %v955, 127
        %v957 = vshll.u32 %v956, 23
        %v958 = vor.u32 4788187, %v957
        %v959 = vand.u32 2147483647, %v958
        %v961 = vcvt.s32.f32 %v954
        %v962 = vmul.f32 %v961, %v959
        %v963 = vxor.u32 %v962, 2147483648
        %v964 = vsel %vm881, %v963, %v962
        %v965 = vsub.s32 4, %v941
        %v966 = vsel %vm881, %v965, %v941
        %v967 = vsel %vm880, %v564, %v964
        %v968 = vsel %vm880, 0, %v966
        %v969 = vcosq.f32.pop %v967
        %v970 = vsinq.f32.pop %v967
        %vm971 = vweird.f32 %v564
        %v972 = vadd.s32 %v968, 3
        %v973 = vand.u32 %v972, 3
        %vm974 = vcmp.lt.s32.totalorder %v973, 2
        %vm975 = vcmp.eq.s32.totalorder %v973, 0
        %v976 = vxor.u32 %v970, 2147483648
        %v977 = vsel %vm975, %v969, %v976
        %vm978 = vcmp.eq.s32.totalorder %v973, 2
        %v979 = vxor.u32 %v969, 2147483648
        %v980 = vsel %vm978, %v979, %v970
        %v981 = vsel %vm974, %v977, %v980
        %v982 = vsel %vm971, nan, %v981
        %v983 = vld [vmem:[%s3] sm:$0xff]
        %v984 = vld [vmem:[%s3 + $0x8] sm:$0xff]
        %v985 = vld [vmem:[%s3 + $0x10] sm:$0xff]
        %v986 = vld [vmem:[%s3 + $0x18] sm:$0xff]
        %v987 = vld [vmem:[%s4] sm:$0xff]
        %v988 = vld [vmem:[%s4 + $0x8] sm:$0xff]
        %v989 = vld [vmem:[%s4 + $0x10] sm:$0xff]
        %v990 = vld [vmem:[%s4 + $0x18] sm:$0xff]
        %992 = vset.pattern.permute.xlu0 0
        %993 = vperm.xlu0 %992, %v987
        %v994 = vpop.permute.xlu0 %993
        %997 = vset.pattern.permute.xlu0 0
        %998 = vperm.xlu0 %997, %v988
        %v999 = vpop.permute.xlu0 %998
        %1002 = vset.pattern.permute.xlu0 0
        %1003 = vperm.xlu0 %1002, %v989
        %v1004 = vpop.permute.xlu0 %1003
        %1007 = vset.pattern.permute.xlu0 0
        %1008 = vperm.xlu0 %1007, %v990
        %v1009 = vpop.permute.xlu0 %1008
        %vm1011 = vcmask 261120
        %v1013 = vsel %vm1011, %v983, 0
        %v1016 = vsel %vm1011, %v984, 0
        %v1019 = vsel %vm1011, %v985, 0
        %v1022 = vsel %vm1011, %v986, 0
        %1024 = vmatprep.subr.mxu0 0.0
        %1025 = vmatpush1.msra.mxu0 %v670
        %1026 = vmatprep.subr.mxu0 0.0
        %1027 = vmatpush1.msra.mxu0 %v774
        %1028 = vmatprep.subr.mxu0 0.0
        %1029 = vmatpush1.msra.mxu0 %v878
        %1030 = vmatprep.subr.mxu0 0.0
        %1031 = vmatpush1.msra.mxu0 %v982
        %1032 = vmatprep.subr.mxu0 0.0
        %1033 = vmatpush1.msra.mxu0 0.0
        %1034 = vmatprep.subr.mxu0 0.0
        %1035 = vmatpush1.msra.mxu0 0.0
        %1036 = vmatprep.subr.mxu0 0.0
        %1037 = vmatpush1.msra.mxu0 0.0
        %1038 = vmatprep.subr.mxu0 0.0
        %1039 = vmatpush1.msra.mxu0 0.0
        %1040 = vmatprep.subr.mxu0 0.0
        %1041 = vmatpush1.msra.mxu0 0.0
        %1042 = vmatprep.subr.mxu0 0.0
        %1043 = vmatpush1.msra.mxu0 0.0
        %1044 = vmatprep.subr.mxu0 0.0
        %1045 = vmatpush1.msra.mxu0 0.0
        %1046 = vmatprep.subr.mxu0 0.0
        %1047 = vmatpush1.msra.mxu0 0.0
        %1048 = vmatprep.subr.mxu0 0.0
        %1049 = vmatpush1.msra.mxu0 0.0
        %1050 = vmatprep.subr.mxu0 0.0
        %1051 = vmatpush1.msra.mxu0 0.0
        %1052 = vmatprep.subr.mxu0 0.0
        %1053 = vmatpush1.msra.mxu0 0.0
        %1054 = vmatprep.subr.mxu0 0.0
        %1055 = vmatpush1.msra.mxu0 0.0
        %1056 = vmatprep.subr.mxu0 0.0
        %1057 = vmatpush1.msra.mxu0 0.0
        %1058 = vmatprep.subr.mxu0 0.0
        %1059 = vmatpush1.msra.mxu0 0.0
        %1060 = vmatprep.subr.mxu0 0.0
        %1061 = vmatpush1.msra.mxu0 0.0
        %1062 = vmatprep.subr.mxu0 0.0
        %1063 = vmatpush1.msra.mxu0 0.0
        %1064 = vmatprep.subr.mxu0 0.0
        %1065 = vmatpush1.msra.mxu0 0.0
        %1066 = vmatprep.subr.mxu0 0.0
        %1067 = vmatpush1.msra.mxu0 0.0
        %1068 = vmatprep.subr.mxu0 0.0
        %1069 = vmatpush1.msra.mxu0 0.0
        %1070 = vmatprep.subr.mxu0 0.0
        %1071 = vmatpush1.msra.mxu0 0.0
        %1072 = vmatprep.subr.mxu0 0.0
        %1073 = vmatpush1.msra.mxu0 0.0
        %1074 = vmatprep.subr.mxu0 0.0
        %1075 = vmatpush1.msra.mxu0 0.0
        %1076 = vmatprep.subr.mxu0 0.0
        %1077 = vmatpush1.msra.mxu0 0.0
        %1078 = vmatprep.subr.mxu0 0.0
        %1079 = vmatpush1.msra.mxu0 0.0
        %1080 = vmatprep.subr.mxu0 0.0
        %1081 = vmatpush1.msra.mxu0 0.0
        %1082 = vmatprep.subr.mxu0 0.0
        %1083 = vmatpush1.msra.mxu0 0.0
        %1084 = vmatprep.subr.mxu0 0.0
        %1085 = vmatpush1.msra.mxu0 0.0
        %1086 = vmatprep.subr.mxu0 0.0
        %1087 = vmatpush1.msra.mxu0 0.0
        %1088 = vmatprep.mubr.f32.mxu0 0.0
        %1089 = vmatmul.mubr.f32.gmra.mrb[0].mxu0 %v1013
        %v1090 = vpop.f32.mrb[0].mxu0
        %v1091 = vadd.f32 %v994, %v1090
        %v1092 = vpop.f32.mrb[0].mxu0
        %1093 = vmatprep.mubr.f32.mxu0 0.0
        %1094 = vmatmul.mubr.f32.gmra.mrb[0].mxu0 %v1016
        %v1095 = vpop.f32.mrb[0].mxu0
        %v1096 = vadd.f32 %v999, %v1095
        %v1097 = vpop.f32.mrb[0].mxu0
        %1098 = vmatprep.mubr.f32.mxu0 0.0
        %1099 = vmatmul.mubr.f32.gmra.mrb[0].mxu0 %v1019
        %v1100 = vpop.f32.mrb[0].mxu0
        %v1101 = vadd.f32 %v1004, %v1100
        %v1102 = vpop.f32.mrb[0].mxu0
        %1103 = vmatprep.mubr.f32.mxu0 0.0
        %1104 = vmatmul.mubr.f32.gmra.mrb[0].mxu0 %v1022
        %v1105 = vpop.f32.mrb[0].mxu0
        %v1106 = vadd.f32 %v1009, %v1105
        %v1107 = vpop.f32.mrb[0].mxu0
        %1108 = vdwg.mxu0
        %v1109 = vand.u32 2147483647, %v1091
        %vm1110 = vcmp.le.f32.partialorder %v1109, 0.7853982
        %vm1111 = vcmp.lt.s32.totalorder %v1091, 0
        %v1112 = vand.u32 %v1091, 2139095040
        %v1113 = vshrl.u32 %v1112, 23
        %v1114 = vsub.s32 %v1113, 127
        %v1115 = vand.u32 2147483647, %v1091
        %v1116 = vand.u32 %v1115, 8388607
        %v1117 = vor.u32 %v1116, 8388608
        %v1118 = vsub.s32 0, %v1117
        %v1119 = vadd.s32 %v1114, 1
        %vm1120 = vcmp.gt.s32.totalorder %v1119, 0
        %v1121 = vsel %vm1120, %v1119, 0
        %v1122 = vshrl.u32 %v1121, 5
        %v1123 = vand.u32 %v1121, 31
        %v1124 = vsub.s32 32, %v1123
        %v1125 = vshrl.u32 683565275, %v1124
        %v1126 = vshll.u32 683565275, %v1123
        %v1127 = vshrl.u32 2475754826, %v1124
        %v1128 = vor.u32 %v1126, %v1127
        %v1129 = vshll.u32 2475754826, %v1123
        %v1130 = vshrl.u32 2131351028, %v1124
        %v1131 = vor.u32 %v1129, %v1130
        %v1132 = vshll.u32 2131351028, %v1123
        %v1133 = vshrl.u32 2102212464, %v1124
        %v1134 = vor.u32 %v1132, %v1133
        %v1135 = vshll.u32 2102212464, %v1123
        %v1136 = vshrl.u32 920167782, %v1124
        %v1137 = vor.u32 %v1135, %v1136
        %v1138 = vshll.u32 920167782, %v1123
        %v1139 = vshrl.u32 1326507024, %v1124
        %v1140 = vor.u32 %v1138, %v1139
        %vm1141 = vcmp.lt.s32.totalorder %v1122, 1
        %vm1142 = vcmp.lt.s32.totalorder %v1122, 2
        %vm1143 = vcmp.lt.s32.totalorder %v1122, 3
        %vm1144 = vcmp.lt.s32.totalorder %v1122, 4
        %v1145 = vsel %vm1141, %v1125, %v1128
        %v1146 = vsel %vm1144, %v1134, 2102212464
        %v1147 = vsel %vm1143, %v1131, %v1146
        %v1148 = vsel %vm1142, %v1145, %v1147
        %v1149 = vsel %vm1141, %v1128, %v1131
        %v1150 = vsel %vm1144, %v1137, 920167782
        %v1151 = vsel %vm1143, %v1134, %v1150
        %v1152 = vsel %vm1142, %v1149, %v1151
        %v1153 = vsel %vm1141, %v1131, %v1134
        %v1154 = vsel %vm1144, %v1140, 1326507024
        %v1155 = vsel %vm1143, %v1137, %v1154
        %v1156 = vsel %vm1142, %v1153, %v1155
        %v1157 = vshll.u32 %v1117, 8
        %v1158 = vmul.u32.u64.compose %v1157, %v1156
        %v1159 = vextract.low.u32 %v1158
        %v1160 = vextract.high.u32 %v1158
        %v1161 = vmul.u32.u64.compose %v1157, %v1152
        %v1162 = vextract.low.u32 %v1161
        %v1163 = vextract.high.u32 %v1161
        %v1164 = vmul.u32 %v1157, %v1148
        %v1165 = vadd.s32 %v1160, %v1162
        %vm1166 = vc.u32 %v1160, %v1162
        %v1167 = vadd.s32 %v1163, 1
        %v1168 = vsel %vm1166, %v1167, %v1163
        %v1169 = vadd.s32 %v1164, %v1168
        %v1170 = vadd.s32 %v1169, 536870912
        %v1171 = vshrl.u32 %v1170, 30
        %v1172 = vshll.u32 %v1171, 30
        %v1173 = vsub.s32 %v1169, %v1172
        %vm1174 = vcmp.lt.s32.totalorder %v1173, 0
        %v1175 = vsub.s32 0, %v1173
        %v1176 = vsel %vm1174, %v1175, %v1173
        %v1177 = vclz %v1176
        %v1178 = vsub.s32 %v1177, 2
        %vm1179 = vcmp.gt.s32.totalorder 0, %v1178
        %v1180 = vsel %vm1179, 0, %v1178
        %v1181 = vsub.s32 32, %v1180
        %v1182 = vshll.u32 %v1173, %v1180
        %v1183 = vshrl.u32 %v1165, %v1181
        %v1184 = vor.u32 %v1182, %v1183
        %v1185 = vsub.s32 4294967266, %v1180
        %v1186 = vadd.s32 %v1185, 127
        %v1187 = vshll.u32 %v1186, 23
        %v1188 = vor.u32 4788187, %v1187
        %v1189 = vand.u32 2147483647, %v1188
        %v1191 = vcvt.s32.f32 %v1184
        %v1192 = vmul.f32 %v1191, %v1189
        %v1193 = vxor.u32 %v1192, 2147483648
        %v1194 = vsel %vm1111, %v1193, %v1192
        %v1195 = vsub.s32 4, %v1171
        %v1196 = vsel %vm1111, %v1195, %v1171
        %v1197 = vsel %vm1110, %v1091, %v1194
        %v1198 = vsel %vm1110, 0, %v1196
        %v1199 = vcosq.f32.pop %v1197
        %v1200 = vsinq.f32.pop %v1197
        %vm1201 = vweird.f32 %v1091
        %v1202 = vadd.s32 %v1198, 3
        %v1203 = vand.u32 %v1202, 3
        %vm1204 = vcmp.lt.s32.totalorder %v1203, 2
        %vm1205 = vcmp.eq.s32.totalorder %v1203, 0
        %v1206 = vxor.u32 %v1200, 2147483648
        %v1207 = vsel %vm1205, %v1199, %v1206
        %vm1208 = vcmp.eq.s32.totalorder %v1203, 2
        %v1209 = vxor.u32 %v1199, 2147483648
        %v1210 = vsel %vm1208, %v1209, %v1200
        %v1211 = vsel %vm1204, %v1207, %v1210
        %v1212 = vsel %vm1201, nan, %v1211
        %v1213 = vand.u32 2147483647, %v1096
        %vm1214 = vcmp.le.f32.partialorder %v1213, 0.7853982
        %vm1215 = vcmp.lt.s32.totalorder %v1096, 0
        %v1216 = vand.u32 %v1096, 2139095040
        %v1217 = vshrl.u32 %v1216, 23
        %v1218 = vsub.s32 %v1217, 127
        %v1219 = vand.u32 2147483647, %v1096
        %v1220 = vand.u32 %v1219, 8388607
        %v1221 = vor.u32 %v1220, 8388608
        %v1222 = vsub.s32 0, %v1221
        %v1223 = vadd.s32 %v1218, 1
        %vm1224 = vcmp.gt.s32.totalorder %v1223, 0
        %v1225 = vsel %vm1224, %v1223, 0
        %v1226 = vshrl.u32 %v1225, 5
        %v1227 = vand.u32 %v1225, 31
        %v1228 = vsub.s32 32, %v1227
        %v1229 = vshrl.u32 683565275, %v1228
        %v1230 = vshll.u32 683565275, %v1227
        %v1231 = vshrl.u32 2475754826, %v1228
        %v1232 = vor.u32 %v1230, %v1231
        %v1233 = vshll.u32 2475754826, %v1227
        %v1234 = vshrl.u32 2131351028, %v1228
        %v1235 = vor.u32 %v1233, %v1234
        %v1236 = vshll.u32 2131351028, %v1227
        %v1237 = vshrl.u32 2102212464, %v1228
        %v1238 = vor.u32 %v1236, %v1237
        %v1239 = vshll.u32 2102212464, %v1227
        %v1240 = vshrl.u32 920167782, %v1228
        %v1241 = vor.u32 %v1239, %v1240
        %v1242 = vshll.u32 920167782, %v1227
        %v1243 = vshrl.u32 1326507024, %v1228
        %v1244 = vor.u32 %v1242, %v1243
        %vm1245 = vcmp.lt.s32.totalorder %v1226, 1
        %vm1246 = vcmp.lt.s32.totalorder %v1226, 2
        %vm1247 = vcmp.lt.s32.totalorder %v1226, 3
        %vm1248 = vcmp.lt.s32.totalorder %v1226, 4
        %v1249 = vsel %vm1245, %v1229, %v1232
        %v1250 = vsel %vm1248, %v1238, 2102212464
        %v1251 = vsel %vm1247, %v1235, %v1250
        %v1252 = vsel %vm1246, %v1249, %v1251
        %v1253 = vsel %vm1245, %v1232, %v1235
        %v1254 = vsel %vm1248, %v1241, 920167782
        %v1255 = vsel %vm1247, %v1238, %v1254
        %v1256 = vsel %vm1246, %v1253, %v1255
        %v1257 = vsel %vm1245, %v1235, %v1238
        %v1258 = vsel %vm1248, %v1244, 1326507024
        %v1259 = vsel %vm1247, %v1241, %v1258
        %v1260 = vsel %vm1246, %v1257, %v1259
        %v1261 = vshll.u32 %v1221, 8
        %v1262 = vmul.u32.u64.compose %v1261, %v1260
        %v1263 = vextract.low.u32 %v1262
        %v1264 = vextract.high.u32 %v1262
        %v1265 = vmul.u32.u64.compose %v1261, %v1256
        %v1266 = vextract.low.u32 %v1265
        %v1267 = vextract.high.u32 %v1265
        %v1268 = vmul.u32 %v1261, %v1252
        %v1269 = vadd.s32 %v1264, %v1266
        %vm1270 = vc.u32 %v1264, %v1266
        %v1271 = vadd.s32 %v1267, 1
        %v1272 = vsel %vm1270, %v1271, %v1267
        %v1273 = vadd.s32 %v1268, %v1272
        %v1274 = vadd.s32 %v1273, 536870912
        %v1275 = vshrl.u32 %v1274, 30
        %v1276 = vshll.u32 %v1275, 30
        %v1277 = vsub.s32 %v1273, %v1276
        %vm1278 = vcmp.lt.s32.totalorder %v1277, 0
        %v1279 = vsub.s32 0, %v1277
        %v1280 = vsel %vm1278, %v1279, %v1277
        %v1281 = vclz %v1280
        %v1282 = vsub.s32 %v1281, 2
        %vm1283 = vcmp.gt.s32.totalorder 0, %v1282
        %v1284 = vsel %vm1283, 0, %v1282
        %v1285 = vsub.s32 32, %v1284
        %v1286 = vshll.u32 %v1277, %v1284
        %v1287 = vshrl.u32 %v1269, %v1285
        %v1288 = vor.u32 %v1286, %v1287
        %v1289 = vsub.s32 4294967266, %v1284
        %v1290 = vadd.s32 %v1289, 127
        %v1291 = vshll.u32 %v1290, 23
        %v1292 = vor.u32 4788187, %v1291
        %v1293 = vand.u32 2147483647, %v1292
        %v1295 = vcvt.s32.f32 %v1288
        %v1296 = vmul.f32 %v1295, %v1293
        %v1297 = vxor.u32 %v1296, 2147483648
        %v1298 = vsel %vm1215, %v1297, %v1296
        %v1299 = vsub.s32 4, %v1275
        %v1300 = vsel %vm1215, %v1299, %v1275
        %v1301 = vsel %vm1214, %v1096, %v1298
        %v1302 = vsel %vm1214, 0, %v1300
        %v1303 = vcosq.f32.pop %v1301
        %v1304 = vsinq.f32.pop %v1301
        %vm1305 = vweird.f32 %v1096
        %v1306 = vadd.s32 %v1302, 3
        %v1307 = vand.u32 %v1306, 3
        %vm1308 = vcmp.lt.s32.totalorder %v1307, 2
        %vm1309 = vcmp.eq.s32.totalorder %v1307, 0
        %v1310 = vxor.u32 %v1304, 2147483648
        %v1311 = vsel %vm1309, %v1303, %v1310
        %vm1312 = vcmp.eq.s32.totalorder %v1307, 2
        %v1313 = vxor.u32 %v1303, 2147483648
        %v1314 = vsel %vm1312, %v1313, %v1304
        %v1315 = vsel %vm1308, %v1311, %v1314
        %v1316 = vsel %vm1305, nan, %v1315
        %v1317 = vand.u32 2147483647, %v1101
        %vm1318 = vcmp.le.f32.partialorder %v1317, 0.7853982
        %vm1319 = vcmp.lt.s32.totalorder %v1101, 0
        %v1320 = vand.u32 %v1101, 2139095040
        %v1321 = vshrl.u32 %v1320, 23
        %v1322 = vsub.s32 %v1321, 127
        %v1323 = vand.u32 2147483647, %v1101
        %v1324 = vand.u32 %v1323, 8388607
        %v1325 = vor.u32 %v1324, 8388608
        %v1326 = vsub.s32 0, %v1325
        %v1327 = vadd.s32 %v1322, 1
        %vm1328 = vcmp.gt.s32.totalorder %v1327, 0
        %v1329 = vsel %vm1328, %v1327, 0
        %v1330 = vshrl.u32 %v1329, 5
        %v1331 = vand.u32 %v1329, 31
        %v1332 = vsub.s32 32, %v1331
        %v1333 = vshrl.u32 683565275, %v1332
        %v1334 = vshll.u32 683565275, %v1331
        %v1335 = vshrl.u32 2475754826, %v1332
        %v1336 = vor.u32 %v1334, %v1335
        %v1337 = vshll.u32 2475754826, %v1331
        %v1338 = vshrl.u32 2131351028, %v1332
        %v1339 = vor.u32 %v1337, %v1338
        %v1340 = vshll.u32 2131351028, %v1331
        %v1341 = vshrl.u32 2102212464, %v1332
        %v1342 = vor.u32 %v1340, %v1341
        %v1343 = vshll.u32 2102212464, %v1331
        %v1344 = vshrl.u32 920167782, %v1332
        %v1345 = vor.u32 %v1343, %v1344
        %v1346 = vshll.u32 920167782, %v1331
        %v1347 = vshrl.u32 1326507024, %v1332
        %v1348 = vor.u32 %v1346, %v1347
        %vm1349 = vcmp.lt.s32.totalorder %v1330, 1
        %vm1350 = vcmp.lt.s32.totalorder %v1330, 2
        %vm1351 = vcmp.lt.s32.totalorder %v1330, 3
        %vm1352 = vcmp.lt.s32.totalorder %v1330, 4
        %v1353 = vsel %vm1349, %v1333, %v1336
        %v1354 = vsel %vm1352, %v1342, 2102212464
        %v1355 = vsel %vm1351, %v1339, %v1354
        %v1356 = vsel %vm1350, %v1353, %v1355
        %v1357 = vsel %vm1349, %v1336, %v1339
        %v1358 = vsel %vm1352, %v1345, 920167782
        %v1359 = vsel %vm1351, %v1342, %v1358
        %v1360 = vsel %vm1350, %v1357, %v1359
        %v1361 = vsel %vm1349, %v1339, %v1342
        %v1362 = vsel %vm1352, %v1348, 1326507024
        %v1363 = vsel %vm1351, %v1345, %v1362
        %v1364 = vsel %vm1350, %v1361, %v1363
        %v1365 = vshll.u32 %v1325, 8
        %v1366 = vmul.u32.u64.compose %v1365, %v1364
        %v1367 = vextract.low.u32 %v1366
        %v1368 = vextract.high.u32 %v1366
        %v1369 = vmul.u32.u64.compose %v1365, %v1360
        %v1370 = vextract.low.u32 %v1369
        %v1371 = vextract.high.u32 %v1369
        %v1372 = vmul.u32 %v1365, %v1356
        %v1373 = vadd.s32 %v1368, %v1370
        %vm1374 = vc.u32 %v1368, %v1370
        %v1375 = vadd.s32 %v1371, 1
        %v1376 = vsel %vm1374, %v1375, %v1371
        %v1377 = vadd.s32 %v1372, %v1376
        %v1378 = vadd.s32 %v1377, 536870912
        %v1379 = vshrl.u32 %v1378, 30
        %v1380 = vshll.u32 %v1379, 30
        %v1381 = vsub.s32 %v1377, %v1380
        %vm1382 = vcmp.lt.s32.totalorder %v1381, 0
        %v1383 = vsub.s32 0, %v1381
        %v1384 = vsel %vm1382, %v1383, %v1381
        %v1385 = vclz %v1384
        %v1386 = vsub.s32 %v1385, 2
        %vm1387 = vcmp.gt.s32.totalorder 0, %v1386
        %v1388 = vsel %vm1387, 0, %v1386
        %v1389 = vsub.s32 32, %v1388
        %v1390 = vshll.u32 %v1381, %v1388
        %v1391 = vshrl.u32 %v1373, %v1389
        %v1392 = vor.u32 %v1390, %v1391
        %v1393 = vsub.s32 4294967266, %v1388
        %v1394 = vadd.s32 %v1393, 127
        %v1395 = vshll.u32 %v1394, 23
        %v1396 = vor.u32 4788187, %v1395
        %v1397 = vand.u32 2147483647, %v1396
        %v1399 = vcvt.s32.f32 %v1392
        %v1400 = vmul.f32 %v1399, %v1397
        %v1401 = vxor.u32 %v1400, 2147483648
        %v1402 = vsel %vm1319, %v1401, %v1400
        %v1403 = vsub.s32 4, %v1379
        %v1404 = vsel %vm1319, %v1403, %v1379
        %v1405 = vsel %vm1318, %v1101, %v1402
        %v1406 = vsel %vm1318, 0, %v1404
        %v1407 = vcosq.f32.pop %v1405
        %v1408 = vsinq.f32.pop %v1405
        %vm1409 = vweird.f32 %v1101
        %v1410 = vadd.s32 %v1406, 3
        %v1411 = vand.u32 %v1410, 3
        %vm1412 = vcmp.lt.s32.totalorder %v1411, 2
        %vm1413 = vcmp.eq.s32.totalorder %v1411, 0
        %v1414 = vxor.u32 %v1408, 2147483648
        %v1415 = vsel %vm1413, %v1407, %v1414
        %vm1416 = vcmp.eq.s32.totalorder %v1411, 2
        %v1417 = vxor.u32 %v1407, 2147483648
        %v1418 = vsel %vm1416, %v1417, %v1408
        %v1419 = vsel %vm1412, %v1415, %v1418
        %v1420 = vsel %vm1409, nan, %v1419
        %v1421 = vand.u32 2147483647, %v1106
        %vm1422 = vcmp.le.f32.partialorder %v1421, 0.7853982
        %vm1423 = vcmp.lt.s32.totalorder %v1106, 0
        %v1424 = vand.u32 %v1106, 2139095040
        %v1425 = vshrl.u32 %v1424, 23
        %v1426 = vsub.s32 %v1425, 127
        %v1427 = vand.u32 2147483647, %v1106
        %v1428 = vand.u32 %v1427, 8388607
        %v1429 = vor.u32 %v1428, 8388608
        %v1430 = vsub.s32 0, %v1429
        %v1431 = vadd.s32 %v1426, 1
        %vm1432 = vcmp.gt.s32.totalorder %v1431, 0
        %v1433 = vsel %vm1432, %v1431, 0
        %v1434 = vshrl.u32 %v1433, 5
        %v1435 = vand.u32 %v1433, 31
        %v1436 = vsub.s32 32, %v1435
        %v1437 = vshrl.u32 683565275, %v1436
        %v1438 = vshll.u32 683565275, %v1435
        %v1439 = vshrl.u32 2475754826, %v1436
        %v1440 = vor.u32 %v1438, %v1439
        %v1441 = vshll.u32 2475754826, %v1435
        %v1442 = vshrl.u32 2131351028, %v1436
        %v1443 = vor.u32 %v1441, %v1442
        %v1444 = vshll.u32 2131351028, %v1435
        %v1445 = vshrl.u32 2102212464, %v1436
        %v1446 = vor.u32 %v1444, %v1445
        %v1447 = vshll.u32 2102212464, %v1435
        %v1448 = vshrl.u32 920167782, %v1436
        %v1449 = vor.u32 %v1447, %v1448
        %v1450 = vshll.u32 920167782, %v1435
        %v1451 = vshrl.u32 1326507024, %v1436
        %v1452 = vor.u32 %v1450, %v1451
        %vm1453 = vcmp.lt.s32.totalorder %v1434, 1
        %vm1454 = vcmp.lt.s32.totalorder %v1434, 2
        %vm1455 = vcmp.lt.s32.totalorder %v1434, 3
        %vm1456 = vcmp.lt.s32.totalorder %v1434, 4
        %v1457 = vsel %vm1453, %v1437, %v1440
        %v1458 = vsel %vm1456, %v1446, 2102212464
        %v1459 = vsel %vm1455, %v1443, %v1458
        %v1460 = vsel %vm1454, %v1457, %v1459
        %v1461 = vsel %vm1453, %v1440, %v1443
        %v1462 = vsel %vm1456, %v1449, 920167782
        %v1463 = vsel %vm1455, %v1446, %v1462
        %v1464 = vsel %vm1454, %v1461, %v1463
        %v1465 = vsel %vm1453, %v1443, %v1446
        %v1466 = vsel %vm1456, %v1452, 1326507024
        %v1467 = vsel %vm1455, %v1449, %v1466
        %v1468 = vsel %vm1454, %v1465, %v1467
        %v1469 = vshll.u32 %v1429, 8
        %v1470 = vmul.u32.u64.compose %v1469, %v1468
        %v1471 = vextract.low.u32 %v1470
        %v1472 = vextract.high.u32 %v1470
        %v1473 = vmul.u32.u64.compose %v1469, %v1464
        %v1474 = vextract.low.u32 %v1473
        %v1475 = vextract.high.u32 %v1473
        %v1476 = vmul.u32 %v1469, %v1460
        %v1477 = vadd.s32 %v1472, %v1474
        %vm1478 = vc.u32 %v1472, %v1474
        %v1479 = vadd.s32 %v1475, 1
        %v1480 = vsel %vm1478, %v1479, %v1475
        %v1481 = vadd.s32 %v1476, %v1480
        %v1482 = vadd.s32 %v1481, 536870912
        %v1483 = vshrl.u32 %v1482, 30
        %v1484 = vshll.u32 %v1483, 30
        %v1485 = vsub.s32 %v1481, %v1484
        %vm1486 = vcmp.lt.s32.totalorder %v1485, 0
        %v1487 = vsub.s32 0, %v1485
        %v1488 = vsel %vm1486, %v1487, %v1485
        %v1489 = vclz %v1488
        %v1490 = vsub.s32 %v1489, 2
        %vm1491 = vcmp.gt.s32.totalorder 0, %v1490
        %v1492 = vsel %vm1491, 0, %v1490
        %v1493 = vsub.s32 32, %v1492
        %v1494 = vshll.u32 %v1485, %v1492
        %v1495 = vshrl.u32 %v1477, %v1493
        %v1496 = vor.u32 %v1494, %v1495
        %v1497 = vsub.s32 4294967266, %v1492
        %v1498 = vadd.s32 %v1497, 127
        %v1499 = vshll.u32 %v1498, 23
        %v1500 = vor.u32 4788187, %v1499
        %v1501 = vand.u32 2147483647, %v1500
        %v1503 = vcvt.s32.f32 %v1496
        %v1504 = vmul.f32 %v1503, %v1501
        %v1505 = vxor.u32 %v1504, 2147483648
        %v1506 = vsel %vm1423, %v1505, %v1504
        %v1507 = vsub.s32 4, %v1483
        %v1508 = vsel %vm1423, %v1507, %v1483
        %v1509 = vsel %vm1422, %v1106, %v1506
        %v1510 = vsel %vm1422, 0, %v1508
        %v1511 = vcosq.f32.pop %v1509
        %v1512 = vsinq.f32.pop %v1509
        %vm1513 = vweird.f32 %v1106
        %v1514 = vadd.s32 %v1510, 3
        %v1515 = vand.u32 %v1514, 3
        %vm1516 = vcmp.lt.s32.totalorder %v1515, 2
        %vm1517 = vcmp.eq.s32.totalorder %v1515, 0
        %v1518 = vxor.u32 %v1512, 2147483648
        %v1519 = vsel %vm1517, %v1511, %v1518
        %vm1520 = vcmp.eq.s32.totalorder %v1515, 2
        %v1521 = vxor.u32 %v1511, 2147483648
        %v1522 = vsel %vm1520, %v1521, %v1512
        %v1523 = vsel %vm1516, %v1519, %v1522
        %v1524 = vsel %vm1513, nan, %v1523
        %v1525 = vld [vmem:[%s5] sm:$0xff]
        %v1526 = vld [vmem:[%s5 + $0x8] sm:$0xff]
        %v1527 = vld [vmem:[%s5 + $0x10] sm:$0xff]
        %v1528 = vld [vmem:[%s5 + $0x18] sm:$0xff]
        %v1529 = vld [vmem:[%s6] sm:$0xff]
        %v1530 = vld [vmem:[%s6 + $0x8] sm:$0xff]
        %v1531 = vld [vmem:[%s6 + $0x10] sm:$0xff]
        %v1532 = vld [vmem:[%s6 + $0x18] sm:$0xff]
        %1534 = vset.pattern.permute.xlu0 0
        %1535 = vperm.xlu0 %1534, %v1529
        %v1536 = vpop.permute.xlu0 %1535
        %1539 = vset.pattern.permute.xlu0 0
        %1540 = vperm.xlu0 %1539, %v1530
        %v1541 = vpop.permute.xlu0 %1540
        %1544 = vset.pattern.permute.xlu0 0
        %1545 = vperm.xlu0 %1544, %v1531
        %v1546 = vpop.permute.xlu0 %1545
        %1549 = vset.pattern.permute.xlu0 0
        %1550 = vperm.xlu0 %1549, %v1532
        %v1551 = vpop.permute.xlu0 %1550
        %v1554 = vsel %vm1011, %v1525, 0
        %v1557 = vsel %vm1011, %v1526, 0
        %v1560 = vsel %vm1011, %v1527, 0
        %v1563 = vsel %vm1011, %v1528, 0
        %1565 = vmatprep.subr.mxu0 0.0
        %1566 = vmatpush1.msra.mxu0 %v1212
        %1567 = vmatprep.subr.mxu0 0.0
        %1568 = vmatpush1.msra.mxu0 %v1316
        %1569 = vmatprep.subr.mxu0 0.0
        %1570 = vmatpush1.msra.mxu0 %v1420
        %1571 = vmatprep.subr.mxu0 0.0
        %1572 = vmatpush1.msra.mxu0 %v1524
        %1573 = vmatprep.subr.mxu0 0.0
        %1574 = vmatpush1.msra.mxu0 0.0
        %1575 = vmatprep.subr.mxu0 0.0
        %1576 = vmatpush1.msra.mxu0 0.0
        %1577 = vmatprep.subr.mxu0 0.0
        %1578 = vmatpush1.msra.mxu0 0.0
        %1579 = vmatprep.subr.mxu0 0.0
        %1580 = vmatpush1.msra.mxu0 0.0
        %1581 = vmatprep.subr.mxu0 0.0
        %1582 = vmatpush1.msra.mxu0 0.0
        %1583 = vmatprep.subr.mxu0 0.0
        %1584 = vmatpush1.msra.mxu0 0.0
        %1585 = vmatprep.subr.mxu0 0.0
        %1586 = vmatpush1.msra.mxu0 0.0
        %1587 = vmatprep.subr.mxu0 0.0
        %1588 = vmatpush1.msra.mxu0 0.0
        %1589 = vmatprep.subr.mxu0 0.0
        %1590 = vmatpush1.msra.mxu0 0.0
        %1591 = vmatprep.subr.mxu0 0.0
        %1592 = vmatpush1.msra.mxu0 0.0
        %1593 = vmatprep.subr.mxu0 0.0
        %1594 = vmatpush1.msra.mxu0 0.0
        %1595 = vmatprep.subr.mxu0 0.0
        %1596 = vmatpush1.msra.mxu0 0.0
        %1597 = vmatprep.subr.mxu0 0.0
        %1598 = vmatpush1.msra.mxu0 0.0
        %1599 = vmatprep.subr.mxu0 0.0
        %1600 = vmatpush1.msra.mxu0 0.0
        %1601 = vmatprep.subr.mxu0 0.0
        %1602 = vmatpush1.msra.mxu0 0.0
        %1603 = vmatprep.subr.mxu0 0.0
        %1604 = vmatpush1.msra.mxu0 0.0
        %1605 = vmatprep.subr.mxu0 0.0
        %1606 = vmatpush1.msra.mxu0 0.0
        %1607 = vmatprep.subr.mxu0 0.0
        %1608 = vmatpush1.msra.mxu0 0.0
        %1609 = vmatprep.subr.mxu0 0.0
        %1610 = vmatpush1.msra.mxu0 0.0
        %1611 = vmatprep.subr.mxu0 0.0
        %1612 = vmatpush1.msra.mxu0 0.0
        %1613 = vmatprep.subr.mxu0 0.0
        %1614 = vmatpush1.msra.mxu0 0.0
        %1615 = vmatprep.subr.mxu0 0.0
        %1616 = vmatpush1.msra.mxu0 0.0
        %1617 = vmatprep.subr.mxu0 0.0
        %1618 = vmatpush1.msra.mxu0 0.0
        %1619 = vmatprep.subr.mxu0 0.0
        %1620 = vmatpush1.msra.mxu0 0.0
        %1621 = vmatprep.subr.mxu0 0.0
        %1622 = vmatpush1.msra.mxu0 0.0
        %1623 = vmatprep.subr.mxu0 0.0
        %1624 = vmatpush1.msra.mxu0 0.0
        %1625 = vmatprep.subr.mxu0 0.0
        %1626 = vmatpush1.msra.mxu0 0.0
        %1627 = vmatprep.subr.mxu0 0.0
        %1628 = vmatpush1.msra.mxu0 0.0
        %1629 = vmatprep.mubr.f32.mxu0 0.0
        %1630 = vmatmul.mubr.f32.gmra.mrb[0].mxu0 %v1554
        %v1631 = vpop.f32.mrb[0].mxu0
        %v1632 = vadd.f32 %v1536, %v1631
        %v1633 = vpop.f32.mrb[0].mxu0
        %1634 = vmatprep.mubr.f32.mxu0 0.0
        %1635 = vmatmul.mubr.f32.gmra.mrb[0].mxu0 %v1557
        %v1636 = vpop.f32.mrb[0].mxu0
        %v1637 = vadd.f32 %v1541, %v1636
        %v1638 = vpop.f32.mrb[0].mxu0
        %1639 = vmatprep.mubr.f32.mxu0 0.0
        %1640 = vmatmul.mubr.f32.gmra.mrb[0].mxu0 %v1560
        %v1641 = vpop.f32.mrb[0].mxu0
        %v1642 = vadd.f32 %v1546, %v1641
        %v1643 = vpop.f32.mrb[0].mxu0
        %1644 = vmatprep.mubr.f32.mxu0 0.0
        %1645 = vmatmul.mubr.f32.gmra.mrb[0].mxu0 %v1563
        %v1646 = vpop.f32.mrb[0].mxu0
        %v1647 = vadd.f32 %v1551, %v1646
        %v1648 = vpop.f32.mrb[0].mxu0
        %1649 = vdwg.mxu0
        %v1650 = vand.u32 2147483647, %v1632
        %vm1651 = vcmp.le.f32.partialorder %v1650, 0.7853982
        %vm1652 = vcmp.lt.s32.totalorder %v1632, 0
        %v1653 = vand.u32 %v1632, 2139095040
        %v1654 = vshrl.u32 %v1653, 23
        %v1655 = vsub.s32 %v1654, 127
        %v1656 = vand.u32 2147483647, %v1632
        %v1657 = vand.u32 %v1656, 8388607
        %v1658 = vor.u32 %v1657, 8388608
        %v1659 = vsub.s32 0, %v1658
        %v1660 = vadd.s32 %v1655, 1
        %vm1661 = vcmp.gt.s32.totalorder %v1660, 0
        %v1662 = vsel %vm1661, %v1660, 0
        %v1663 = vshrl.u32 %v1662, 5
        %v1664 = vand.u32 %v1662, 31
        %v1665 = vsub.s32 32, %v1664
        %v1666 = vshrl.u32 683565275, %v1665
        %v1667 = vshll.u32 683565275, %v1664
        %v1668 = vshrl.u32 2475754826, %v1665
        %v1669 = vor.u32 %v1667, %v1668
        %v1670 = vshll.u32 2475754826, %v1664
        %v1671 = vshrl.u32 2131351028, %v1665
        %v1672 = vor.u32 %v1670, %v1671
        %v1673 = vshll.u32 2131351028, %v1664
        %v1674 = vshrl.u32 2102212464, %v1665
        %v1675 = vor.u32 %v1673, %v1674
        %v1676 = vshll.u32 2102212464, %v1664
        %v1677 = vshrl.u32 920167782, %v1665
        %v1678 = vor.u32 %v1676, %v1677
        %v1679 = vshll.u32 920167782, %v1664
        %v1680 = vshrl.u32 1326507024, %v1665
        %v1681 = vor.u32 %v1679, %v1680
        %vm1682 = vcmp.lt.s32.totalorder %v1663, 1
        %vm1683 = vcmp.lt.s32.totalorder %v1663, 2
        %vm1684 = vcmp.lt.s32.totalorder %v1663, 3
        %vm1685 = vcmp.lt.s32.totalorder %v1663, 4
        %v1686 = vsel %vm1682, %v1666, %v1669
        %v1687 = vsel %vm1685, %v1675, 2102212464
        %v1688 = vsel %vm1684, %v1672, %v1687
        %v1689 = vsel %vm1683, %v1686, %v1688
        %v1690 = vsel %vm1682, %v1669, %v1672
        %v1691 = vsel %vm1685, %v1678, 920167782
        %v1692 = vsel %vm1684, %v1675, %v1691
        %v1693 = vsel %vm1683, %v1690, %v1692
        %v1694 = vsel %vm1682, %v1672, %v1675
        %v1695 = vsel %vm1685, %v1681, 1326507024
        %v1696 = vsel %vm1684, %v1678, %v1695
        %v1697 = vsel %vm1683, %v1694, %v1696
        %v1698 = vshll.u32 %v1658, 8
        %v1699 = vmul.u32.u64.compose %v1698, %v1697
        %v1700 = vextract.low.u32 %v1699
        %v1701 = vextract.high.u32 %v1699
        %v1702 = vmul.u32.u64.compose %v1698, %v1693
        %v1703 = vextract.low.u32 %v1702
        %v1704 = vextract.high.u32 %v1702
        %v1705 = vmul.u32 %v1698, %v1689
        %v1706 = vadd.s32 %v1701, %v1703
        %vm1707 = vc.u32 %v1701, %v1703
        %v1708 = vadd.s32 %v1704, 1
        %v1709 = vsel %vm1707, %v1708, %v1704
        %v1710 = vadd.s32 %v1705, %v1709
        %v1711 = vadd.s32 %v1710, 536870912
        %v1712 = vshrl.u32 %v1711, 30
        %v1713 = vshll.u32 %v1712, 30
        %v1714 = vsub.s32 %v1710, %v1713
        %vm1715 = vcmp.lt.s32.totalorder %v1714, 0
        %v1716 = vsub.s32 0, %v1714
        %v1717 = vsel %vm1715, %v1716, %v1714
        %v1718 = vclz %v1717
        %v1719 = vsub.s32 %v1718, 2
        %vm1720 = vcmp.gt.s32.totalorder 0, %v1719
        %v1721 = vsel %vm1720, 0, %v1719
        %v1722 = vsub.s32 32, %v1721
        %v1723 = vshll.u32 %v1714, %v1721
        %v1724 = vshrl.u32 %v1706, %v1722
        %v1725 = vor.u32 %v1723, %v1724
        %v1726 = vsub.s32 4294967266, %v1721
        %v1727 = vadd.s32 %v1726, 127
        %v1728 = vshll.u32 %v1727, 23
        %v1729 = vor.u32 4788187, %v1728
        %v1730 = vand.u32 2147483647, %v1729
        %v1732 = vcvt.s32.f32 %v1725
        %v1733 = vmul.f32 %v1732, %v1730
        %v1734 = vxor.u32 %v1733, 2147483648
        %v1735 = vsel %vm1652, %v1734, %v1733
        %v1736 = vsub.s32 4, %v1712
        %v1737 = vsel %vm1652, %v1736, %v1712
        %v1738 = vsel %vm1651, %v1632, %v1735
        %v1739 = vsel %vm1651, 0, %v1737
        %v1740 = vcosq.f32.pop %v1738
        %v1741 = vsinq.f32.pop %v1738
        %vm1742 = vweird.f32 %v1632
        %v1743 = vadd.s32 %v1739, 3
        %v1744 = vand.u32 %v1743, 3
        %vm1745 = vcmp.lt.s32.totalorder %v1744, 2
        %vm1746 = vcmp.eq.s32.totalorder %v1744, 0
        %v1747 = vxor.u32 %v1741, 2147483648
        %v1748 = vsel %vm1746, %v1740, %v1747
        %vm1749 = vcmp.eq.s32.totalorder %v1744, 2
        %v1750 = vxor.u32 %v1740, 2147483648
        %v1751 = vsel %vm1749, %v1750, %v1741
        %v1752 = vsel %vm1745, %v1748, %v1751
        %v1753 = vsel %vm1742, nan, %v1752
        %v1754 = vand.u32 2147483647, %v1637
        %vm1755 = vcmp.le.f32.partialorder %v1754, 0.7853982
        %vm1756 = vcmp.lt.s32.totalorder %v1637, 0
        %v1757 = vand.u32 %v1637, 2139095040
        %v1758 = vshrl.u32 %v1757, 23
        %v1759 = vsub.s32 %v1758, 127
        %v1760 = vand.u32 2147483647, %v1637
        %v1761 = vand.u32 %v1760, 8388607
        %v1762 = vor.u32 %v1761, 8388608
        %v1763 = vsub.s32 0, %v1762
        %v1764 = vadd.s32 %v1759, 1
        %vm1765 = vcmp.gt.s32.totalorder %v1764, 0
        %v1766 = vsel %vm1765, %v1764, 0
        %v1767 = vshrl.u32 %v1766, 5
        %v1768 = vand.u32 %v1766, 31
        %v1769 = vsub.s32 32, %v1768
        %v1770 = vshrl.u32 683565275, %v1769
        %v1771 = vshll.u32 683565275, %v1768
        %v1772 = vshrl.u32 2475754826, %v1769
        %v1773 = vor.u32 %v1771, %v1772
        %v1774 = vshll.u32 2475754826, %v1768
        %v1775 = vshrl.u32 2131351028, %v1769
        %v1776 = vor.u32 %v1774, %v1775
        %v1777 = vshll.u32 2131351028, %v1768
        %v1778 = vshrl.u32 2102212464, %v1769
        %v1779 = vor.u32 %v1777, %v1778
        %v1780 = vshll.u32 2102212464, %v1768
        %v1781 = vshrl.u32 920167782, %v1769
        %v1782 = vor.u32 %v1780, %v1781
        %v1783 = vshll.u32 920167782, %v1768
        %v1784 = vshrl.u32 1326507024, %v1769
        %v1785 = vor.u32 %v1783, %v1784
        %vm1786 = vcmp.lt.s32.totalorder %v1767, 1
        %vm1787 = vcmp.lt.s32.totalorder %v1767, 2
        %vm1788 = vcmp.lt.s32.totalorder %v1767, 3
        %vm1789 = vcmp.lt.s32.totalorder %v1767, 4
        %v1790 = vsel %vm1786, %v1770, %v1773
        %v1791 = vsel %vm1789, %v1779, 2102212464
        %v1792 = vsel %vm1788, %v1776, %v1791
        %v1793 = vsel %vm1787, %v1790, %v1792
        %v1794 = vsel %vm1786, %v1773, %v1776
        %v1795 = vsel %vm1789, %v1782, 920167782
        %v1796 = vsel %vm1788, %v1779, %v1795
        %v1797 = vsel %vm1787, %v1794, %v1796
        %v1798 = vsel %vm1786, %v1776, %v1779
        %v1799 = vsel %vm1789, %v1785, 1326507024
        %v1800 = vsel %vm1788, %v1782, %v1799
        %v1801 = vsel %vm1787, %v1798, %v1800
        %v1802 = vshll.u32 %v1762, 8
        %v1803 = vmul.u32.u64.compose %v1802, %v1801
        %v1804 = vextract.low.u32 %v1803
        %v1805 = vextract.high.u32 %v1803
        %v1806 = vmul.u32.u64.compose %v1802, %v1797
        %v1807 = vextract.low.u32 %v1806
        %v1808 = vextract.high.u32 %v1806
        %v1809 = vmul.u32 %v1802, %v1793
        %v1810 = vadd.s32 %v1805, %v1807
        %vm1811 = vc.u32 %v1805, %v1807
        %v1812 = vadd.s32 %v1808, 1
        %v1813 = vsel %vm1811, %v1812, %v1808
        %v1814 = vadd.s32 %v1809, %v1813
        %v1815 = vadd.s32 %v1814, 536870912
        %v1816 = vshrl.u32 %v1815, 30
        %v1817 = vshll.u32 %v1816, 30
        %v1818 = vsub.s32 %v1814, %v1817
        %vm1819 = vcmp.lt.s32.totalorder %v1818, 0
        %v1820 = vsub.s32 0, %v1818
        %v1821 = vsel %vm1819, %v1820, %v1818
        %v1822 = vclz %v1821
        %v1823 = vsub.s32 %v1822, 2
        %vm1824 = vcmp.gt.s32.totalorder 0, %v1823
        %v1825 = vsel %vm1824, 0, %v1823
        %v1826 = vsub.s32 32, %v1825
        %v1827 = vshll.u32 %v1818, %v1825
        %v1828 = vshrl.u32 %v1810, %v1826
        %v1829 = vor.u32 %v1827, %v1828
        %v1830 = vsub.s32 4294967266, %v1825
        %v1831 = vadd.s32 %v1830, 127
        %v1832 = vshll.u32 %v1831, 23
        %v1833 = vor.u32 4788187, %v1832
        %v1834 = vand.u32 2147483647, %v1833
        %v1836 = vcvt.s32.f32 %v1829
        %v1837 = vmul.f32 %v1836, %v1834
        %v1838 = vxor.u32 %v1837, 2147483648
        %v1839 = vsel %vm1756, %v1838, %v1837
        %v1840 = vsub.s32 4, %v1816
        %v1841 = vsel %vm1756, %v1840, %v1816
        %v1842 = vsel %vm1755, %v1637, %v1839
        %v1843 = vsel %vm1755, 0, %v1841
        %v1844 = vcosq.f32.pop %v1842
        %v1845 = vsinq.f32.pop %v1842
        %vm1846 = vweird.f32 %v1637
        %v1847 = vadd.s32 %v1843, 3
        %v1848 = vand.u32 %v1847, 3
        %vm1849 = vcmp.lt.s32.totalorder %v1848, 2
        %vm1850 = vcmp.eq.s32.totalorder %v1848, 0
        %v1851 = vxor.u32 %v1845, 2147483648
        %v1852 = vsel %vm1850, %v1844, %v1851
        %vm1853 = vcmp.eq.s32.totalorder %v1848, 2
        %v1854 = vxor.u32 %v1844, 2147483648
        %v1855 = vsel %vm1853, %v1854, %v1845
        %v1856 = vsel %vm1849, %v1852, %v1855
        %v1857 = vsel %vm1846, nan, %v1856
        %v1858 = vand.u32 2147483647, %v1642
        %vm1859 = vcmp.le.f32.partialorder %v1858, 0.7853982
        %vm1860 = vcmp.lt.s32.totalorder %v1642, 0
        %v1861 = vand.u32 %v1642, 2139095040
        %v1862 = vshrl.u32 %v1861, 23
        %v1863 = vsub.s32 %v1862, 127
        %v1864 = vand.u32 2147483647, %v1642
        %v1865 = vand.u32 %v1864, 8388607
        %v1866 = vor.u32 %v1865, 8388608
        %v1867 = vsub.s32 0, %v1866
        %v1868 = vadd.s32 %v1863, 1
        %vm1869 = vcmp.gt.s32.totalorder %v1868, 0
        %v1870 = vsel %vm1869, %v1868, 0
        %v1871 = vshrl.u32 %v1870, 5
        %v1872 = vand.u32 %v1870, 31
        %v1873 = vsub.s32 32, %v1872
        %v1874 = vshrl.u32 683565275, %v1873
        %v1875 = vshll.u32 683565275, %v1872
        %v1876 = vshrl.u32 2475754826, %v1873
        %v1877 = vor.u32 %v1875, %v1876
        %v1878 = vshll.u32 2475754826, %v1872
        %v1879 = vshrl.u32 2131351028, %v1873
        %v1880 = vor.u32 %v1878, %v1879
        %v1881 = vshll.u32 2131351028, %v1872
        %v1882 = vshrl.u32 2102212464, %v1873
        %v1883 = vor.u32 %v1881, %v1882
        %v1884 = vshll.u32 2102212464, %v1872
        %v1885 = vshrl.u32 920167782, %v1873
        %v1886 = vor.u32 %v1884, %v1885
        %v1887 = vshll.u32 920167782, %v1872
        %v1888 = vshrl.u32 1326507024, %v1873
        %v1889 = vor.u32 %v1887, %v1888
        %vm1890 = vcmp.lt.s32.totalorder %v1871, 1
        %vm1891 = vcmp.lt.s32.totalorder %v1871, 2
        %vm1892 = vcmp.lt.s32.totalorder %v1871, 3
        %vm1893 = vcmp.lt.s32.totalorder %v1871, 4
        %v1894 = vsel %vm1890, %v1874, %v1877
        %v1895 = vsel %vm1893, %v1883, 2102212464
        %v1896 = vsel %vm1892, %v1880, %v1895
        %v1897 = vsel %vm1891, %v1894, %v1896
        %v1898 = vsel %vm1890, %v1877, %v1880
        %v1899 = vsel %vm1893, %v1886, 920167782
        %v1900 = vsel %vm1892, %v1883, %v1899
        %v1901 = vsel %vm1891, %v1898, %v1900
        %v1902 = vsel %vm1890, %v1880, %v1883
        %v1903 = vsel %vm1893, %v1889, 1326507024
        %v1904 = vsel %vm1892, %v1886, %v1903
        %v1905 = vsel %vm1891, %v1902, %v1904
        %v1906 = vshll.u32 %v1866, 8
        %v1907 = vmul.u32.u64.compose %v1906, %v1905
        %v1908 = vextract.low.u32 %v1907
        %v1909 = vextract.high.u32 %v1907
        %v1910 = vmul.u32.u64.compose %v1906, %v1901
        %v1911 = vextract.low.u32 %v1910
        %v1912 = vextract.high.u32 %v1910
        %v1913 = vmul.u32 %v1906, %v1897
        %v1914 = vadd.s32 %v1909, %v1911
        %vm1915 = vc.u32 %v1909, %v1911
        %v1916 = vadd.s32 %v1912, 1
        %v1917 = vsel %vm1915, %v1916, %v1912
        %v1918 = vadd.s32 %v1913, %v1917
        %v1919 = vadd.s32 %v1918, 536870912
        %v1920 = vshrl.u32 %v1919, 30
        %v1921 = vshll.u32 %v1920, 30
        %v1922 = vsub.s32 %v1918, %v1921
        %vm1923 = vcmp.lt.s32.totalorder %v1922, 0
        %v1924 = vsub.s32 0, %v1922
        %v1925 = vsel %vm1923, %v1924, %v1922
        %v1926 = vclz %v1925
        %v1927 = vsub.s32 %v1926, 2
        %vm1928 = vcmp.gt.s32.totalorder 0, %v1927
        %v1929 = vsel %vm1928, 0, %v1927
        %v1930 = vsub.s32 32, %v1929
        %v1931 = vshll.u32 %v1922, %v1929
        %v1932 = vshrl.u32 %v1914, %v1930
        %v1933 = vor.u32 %v1931, %v1932
        %v1934 = vsub.s32 4294967266, %v1929
        %v1935 = vadd.s32 %v1934, 127
        %v1936 = vshll.u32 %v1935, 23
        %v1937 = vor.u32 4788187, %v1936
        %v1938 = vand.u32 2147483647, %v1937
        %v1940 = vcvt.s32.f32 %v1933
        %v1941 = vmul.f32 %v1940, %v1938
        %v1942 = vxor.u32 %v1941, 2147483648
        %v1943 = vsel %vm1860, %v1942, %v1941
        %v1944 = vsub.s32 4, %v1920
        %v1945 = vsel %vm1860, %v1944, %v1920
        %v1946 = vsel %vm1859, %v1642, %v1943
        %v1947 = vsel %vm1859, 0, %v1945
        %v1948 = vcosq.f32.pop %v1946
        %v1949 = vsinq.f32.pop %v1946
        %vm1950 = vweird.f32 %v1642
        %v1951 = vadd.s32 %v1947, 3
        %v1952 = vand.u32 %v1951, 3
        %vm1953 = vcmp.lt.s32.totalorder %v1952, 2
        %vm1954 = vcmp.eq.s32.totalorder %v1952, 0
        %v1955 = vxor.u32 %v1949, 2147483648
        %v1956 = vsel %vm1954, %v1948, %v1955
        %vm1957 = vcmp.eq.s32.totalorder %v1952, 2
        %v1958 = vxor.u32 %v1948, 2147483648
        %v1959 = vsel %vm1957, %v1958, %v1949
        %v1960 = vsel %vm1953, %v1956, %v1959
        %v1961 = vsel %vm1950, nan, %v1960
        %v1962 = vand.u32 2147483647, %v1647
        %vm1963 = vcmp.le.f32.partialorder %v1962, 0.7853982
        %vm1964 = vcmp.lt.s32.totalorder %v1647, 0
        %v1965 = vand.u32 %v1647, 2139095040
        %v1966 = vshrl.u32 %v1965, 23
        %v1967 = vsub.s32 %v1966, 127
        %v1968 = vand.u32 2147483647, %v1647
        %v1969 = vand.u32 %v1968, 8388607
        %v1970 = vor.u32 %v1969, 8388608
        %v1971 = vsub.s32 0, %v1970
        %v1972 = vadd.s32 %v1967, 1
        %vm1973 = vcmp.gt.s32.totalorder %v1972, 0
        %v1974 = vsel %vm1973, %v1972, 0
        %v1975 = vshrl.u32 %v1974, 5
        %v1976 = vand.u32 %v1974, 31
        %v1977 = vsub.s32 32, %v1976
        %v1978 = vshrl.u32 683565275, %v1977
        %v1979 = vshll.u32 683565275, %v1976
        %v1980 = vshrl.u32 2475754826, %v1977
        %v1981 = vor.u32 %v1979, %v1980
        %v1982 = vshll.u32 2475754826, %v1976
        %v1983 = vshrl.u32 2131351028, %v1977
        %v1984 = vor.u32 %v1982, %v1983
        %v1985 = vshll.u32 2131351028, %v1976
        %v1986 = vshrl.u32 2102212464, %v1977
        %v1987 = vor.u32 %v1985, %v1986
        %v1988 = vshll.u32 2102212464, %v1976
        %v1989 = vshrl.u32 920167782, %v1977
        %v1990 = vor.u32 %v1988, %v1989
        %v1991 = vshll.u32 920167782, %v1976
        %v1992 = vshrl.u32 1326507024, %v1977
        %v1993 = vor.u32 %v1991, %v1992
        %vm1994 = vcmp.lt.s32.totalorder %v1975, 1
        %vm1995 = vcmp.lt.s32.totalorder %v1975, 2
        %vm1996 = vcmp.lt.s32.totalorder %v1975, 3
        %vm1997 = vcmp.lt.s32.totalorder %v1975, 4
        %v1998 = vsel %vm1994, %v1978, %v1981
        %v1999 = vsel %vm1997, %v1987, 2102212464
        %v2000 = vsel %vm1996, %v1984, %v1999
        %v2001 = vsel %vm1995, %v1998, %v2000
        %v2002 = vsel %vm1994, %v1981, %v1984
        %v2003 = vsel %vm1997, %v1990, 920167782
        %v2004 = vsel %vm1996, %v1987, %v2003
        %v2005 = vsel %vm1995, %v2002, %v2004
        %v2006 = vsel %vm1994, %v1984, %v1987
        %v2007 = vsel %vm1997, %v1993, 1326507024
        %v2008 = vsel %vm1996, %v1990, %v2007
        %v2009 = vsel %vm1995, %v2006, %v2008
        %v2010 = vshll.u32 %v1970, 8
        %v2011 = vmul.u32.u64.compose %v2010, %v2009
        %v2012 = vextract.low.u32 %v2011
        %v2013 = vextract.high.u32 %v2011
        %v2014 = vmul.u32.u64.compose %v2010, %v2005
        %v2015 = vextract.low.u32 %v2014
        %v2016 = vextract.high.u32 %v2014
        %v2017 = vmul.u32 %v2010, %v2001
        %v2018 = vadd.s32 %v2013, %v2015
        %vm2019 = vc.u32 %v2013, %v2015
        %v2020 = vadd.s32 %v2016, 1
        %v2021 = vsel %vm2019, %v2020, %v2016
        %v2022 = vadd.s32 %v2017, %v2021
        %v2023 = vadd.s32 %v2022, 536870912
        %v2024 = vshrl.u32 %v2023, 30
        %v2025 = vshll.u32 %v2024, 30
        %v2026 = vsub.s32 %v2022, %v2025
        %vm2027 = vcmp.lt.s32.totalorder %v2026, 0
        %v2028 = vsub.s32 0, %v2026
        %v2029 = vsel %vm2027, %v2028, %v2026
        %v2030 = vclz %v2029
        %v2031 = vsub.s32 %v2030, 2
        %vm2032 = vcmp.gt.s32.totalorder 0, %v2031
        %v2033 = vsel %vm2032, 0, %v2031
        %v2034 = vsub.s32 32, %v2033
        %v2035 = vshll.u32 %v2026, %v2033
        %v2036 = vshrl.u32 %v2018, %v2034
        %v2037 = vor.u32 %v2035, %v2036
        %v2038 = vsub.s32 4294967266, %v2033
        %v2039 = vadd.s32 %v2038, 127
        %v2040 = vshll.u32 %v2039, 23
        %v2041 = vor.u32 4788187, %v2040
        %v2042 = vand.u32 2147483647, %v2041
        %v2044 = vcvt.s32.f32 %v2037
        %v2045 = vmul.f32 %v2044, %v2042
        %v2046 = vxor.u32 %v2045, 2147483648
        %v2047 = vsel %vm1964, %v2046, %v2045
        %v2048 = vsub.s32 4, %v2024
        %v2049 = vsel %vm1964, %v2048, %v2024
        %v2050 = vsel %vm1963, %v1647, %v2047
        %v2051 = vsel %vm1963, 0, %v2049
        %v2052 = vcosq.f32.pop %v2050
        %v2053 = vsinq.f32.pop %v2050
        %vm2054 = vweird.f32 %v1647
        %v2055 = vadd.s32 %v2051, 3
        %v2056 = vand.u32 %v2055, 3
        %vm2057 = vcmp.lt.s32.totalorder %v2056, 2
        %vm2058 = vcmp.eq.s32.totalorder %v2056, 0
        %v2059 = vxor.u32 %v2053, 2147483648
        %v2060 = vsel %vm2058, %v2052, %v2059
        %vm2061 = vcmp.eq.s32.totalorder %v2056, 2
        %v2062 = vxor.u32 %v2052, 2147483648
        %v2063 = vsel %vm2061, %v2062, %v2053
        %v2064 = vsel %vm2057, %v2060, %v2063
        %v2065 = vsel %vm2054, nan, %v2064
        %v2066 = vld [vmem:[%s7] sm:$0xff]
        %v2067 = vld [vmem:[%s7 + $0x8] sm:$0xff]
        %v2068 = vld [vmem:[%s7 + $0x10] sm:$0xff]
        %v2069 = vld [vmem:[%s7 + $0x18] sm:$0xff]
        %v2070 = vld [vmem:[%s8] sm:$0xff]
        %v2071 = vld [vmem:[%s8 + $0x8] sm:$0xff]
        %v2072 = vld [vmem:[%s8 + $0x10] sm:$0xff]
        %v2073 = vld [vmem:[%s8 + $0x18] sm:$0xff]
        %2075 = vset.pattern.permute.xlu0 0
        %2076 = vperm.xlu0 %2075, %v2070
        %v2077 = vpop.permute.xlu0 %2076
        %2080 = vset.pattern.permute.xlu0 0
        %2081 = vperm.xlu0 %2080, %v2071
        %v2082 = vpop.permute.xlu0 %2081
        %2085 = vset.pattern.permute.xlu0 0
        %2086 = vperm.xlu0 %2085, %v2072
        %v2087 = vpop.permute.xlu0 %2086
        %2090 = vset.pattern.permute.xlu0 0
        %2091 = vperm.xlu0 %2090, %v2073
        %v2092 = vpop.permute.xlu0 %2091
        %v2095 = vsel %vm1011, %v2066, 0
        %v2098 = vsel %vm1011, %v2067, 0
        %v2101 = vsel %vm1011, %v2068, 0
        %v2104 = vsel %vm1011, %v2069, 0
        %2106 = vmatprep.subr.mxu0 0.0
        %2107 = vmatpush1.msra.mxu0 %v1753
        %2108 = vmatprep.subr.mxu0 0.0
        %2109 = vmatpush1.msra.mxu0 %v1857
        %2110 = vmatprep.subr.mxu0 0.0
        %2111 = vmatpush1.msra.mxu0 %v1961
        %2112 = vmatprep.subr.mxu0 0.0
        %2113 = vmatpush1.msra.mxu0 %v2065
        %2114 = vmatprep.subr.mxu0 0.0
        %2115 = vmatpush1.msra.mxu0 0.0
        %2116 = vmatprep.subr.mxu0 0.0
        %2117 = vmatpush1.msra.mxu0 0.0
        %2118 = vmatprep.subr.mxu0 0.0
        %2119 = vmatpush1.msra.mxu0 0.0
        %2120 = vmatprep.subr.mxu0 0.0
        %2121 = vmatpush1.msra.mxu0 0.0
        %2122 = vmatprep.subr.mxu0 0.0
        %2123 = vmatpush1.msra.mxu0 0.0
        %2124 = vmatprep.subr.mxu0 0.0
        %2125 = vmatpush1.msra.mxu0 0.0
        %2126 = vmatprep.subr.mxu0 0.0
        %2127 = vmatpush1.msra.mxu0 0.0
        %2128 = vmatprep.subr.mxu0 0.0
        %2129 = vmatpush1.msra.mxu0 0.0
        %2130 = vmatprep.subr.mxu0 0.0
        %2131 = vmatpush1.msra.mxu0 0.0
        %2132 = vmatprep.subr.mxu0 0.0
        %2133 = vmatpush1.msra.mxu0 0.0
        %2134 = vmatprep.subr.mxu0 0.0
        %2135 = vmatpush1.msra.mxu0 0.0
        %2136 = vmatprep.subr.mxu0 0.0
        %2137 = vmatpush1.msra.mxu0 0.0
        %2138 = vmatprep.subr.mxu0 0.0
        %2139 = vmatpush1.msra.mxu0 0.0
        %2140 = vmatprep.subr.mxu0 0.0
        %2141 = vmatpush1.msra.mxu0 0.0
        %2142 = vmatprep.subr.mxu0 0.0
        %2143 = vmatpush1.msra.mxu0 0.0
        %2144 = vmatprep.subr.mxu0 0.0
        %2145 = vmatpush1.msra.mxu0 0.0
        %2146 = vmatprep.subr.mxu0 0.0
        %2147 = vmatpush1.msra.mxu0 0.0
        %2148 = vmatprep.subr.mxu0 0.0
        %2149 = vmatpush1.msra.mxu0 0.0
        %2150 = vmatprep.subr.mxu0 0.0
        %2151 = vmatpush1.msra.mxu0 0.0
        %2152 = vmatprep.subr.mxu0 0.0
        %2153 = vmatpush1.msra.mxu0 0.0
        %2154 = vmatprep.subr.mxu0 0.0
        %2155 = vmatpush1.msra.mxu0 0.0
        %2156 = vmatprep.subr.mxu0 0.0
        %2157 = vmatpush1.msra.mxu0 0.0
        %2158 = vmatprep.subr.mxu0 0.0
        %2159 = vmatpush1.msra.mxu0 0.0
        %2160 = vmatprep.subr.mxu0 0.0
        %2161 = vmatpush1.msra.mxu0 0.0
        %2162 = vmatprep.subr.mxu0 0.0
        %2163 = vmatpush1.msra.mxu0 0.0
        %2164 = vmatprep.subr.mxu0 0.0
        %2165 = vmatpush1.msra.mxu0 0.0
        %2166 = vmatprep.subr.mxu0 0.0
        %2167 = vmatpush1.msra.mxu0 0.0
        %2168 = vmatprep.subr.mxu0 0.0
        %2169 = vmatpush1.msra.mxu0 0.0
        %2170 = vmatprep.mubr.f32.mxu0 0.0
        %2171 = vmatmul.mubr.f32.gmra.mrb[0].mxu0 %v2095
        %v2172 = vpop.f32.mrb[0].mxu0
        %v2173 = vadd.f32 %v2077, %v2172
        %v2174 = vpop.f32.mrb[0].mxu0
        %2175 = vmatprep.mubr.f32.mxu0 0.0
        %2176 = vmatmul.mubr.f32.gmra.mrb[0].mxu0 %v2098
        %v2177 = vpop.f32.mrb[0].mxu0
        %v2178 = vadd.f32 %v2082, %v2177
        %v2179 = vpop.f32.mrb[0].mxu0
        %2180 = vmatprep.mubr.f32.mxu0 0.0
        %2181 = vmatmul.mubr.f32.gmra.mrb[0].mxu0 %v2101
        %v2182 = vpop.f32.mrb[0].mxu0
        %v2183 = vadd.f32 %v2087, %v2182
        %v2184 = vpop.f32.mrb[0].mxu0
        %2185 = vmatprep.mubr.f32.mxu0 0.0
        %2186 = vmatmul.mubr.f32.gmra.mrb[0].mxu0 %v2104
        %v2187 = vpop.f32.mrb[0].mxu0
        %v2188 = vadd.f32 %v2092, %v2187
        %v2189 = vpop.f32.mrb[0].mxu0
        %2190 = vdwg.mxu0
        %v2191 = vand.u32 2147483647, %v2173
        %vm2192 = vcmp.le.f32.partialorder %v2191, 0.7853982
        %vm2193 = vcmp.lt.s32.totalorder %v2173, 0
        %v2194 = vand.u32 %v2173, 2139095040
        %v2195 = vshrl.u32 %v2194, 23
        %v2196 = vsub.s32 %v2195, 127
        %v2197 = vand.u32 2147483647, %v2173
        %v2198 = vand.u32 %v2197, 8388607
        %v2199 = vor.u32 %v2198, 8388608
        %v2200 = vsub.s32 0, %v2199
        %v2201 = vadd.s32 %v2196, 1
        %vm2202 = vcmp.gt.s32.totalorder %v2201, 0
        %v2203 = vsel %vm2202, %v2201, 0
        %v2204 = vshrl.u32 %v2203, 5
        %v2205 = vand.u32 %v2203, 31
        %v2206 = vsub.s32 32, %v2205
        %v2207 = vshrl.u32 683565275, %v2206
        %v2208 = vshll.u32 683565275, %v2205
        %v2209 = vshrl.u32 2475754826, %v2206
        %v2210 = vor.u32 %v2208, %v2209
        %v2211 = vshll.u32 2475754826, %v2205
        %v2212 = vshrl.u32 2131351028, %v2206
        %v2213 = vor.u32 %v2211, %v2212
        %v2214 = vshll.u32 2131351028, %v2205
        %v2215 = vshrl.u32 2102212464, %v2206
        %v2216 = vor.u32 %v2214, %v2215
        %v2217 = vshll.u32 2102212464, %v2205
        %v2218 = vshrl.u32 920167782, %v2206
        %v2219 = vor.u32 %v2217, %v2218
        %v2220 = vshll.u32 920167782, %v2205
        %v2221 = vshrl.u32 1326507024, %v2206
        %v2222 = vor.u32 %v2220, %v2221
        %vm2223 = vcmp.lt.s32.totalorder %v2204, 1
        %vm2224 = vcmp.lt.s32.totalorder %v2204, 2
        %vm2225 = vcmp.lt.s32.totalorder %v2204, 3
        %vm2226 = vcmp.lt.s32.totalorder %v2204, 4
        %v2227 = vsel %vm2223, %v2207, %v2210
        %v2228 = vsel %vm2226, %v2216, 2102212464
        %v2229 = vsel %vm2225, %v2213, %v2228
        %v2230 = vsel %vm2224, %v2227, %v2229
        %v2231 = vsel %vm2223, %v2210, %v2213
        %v2232 = vsel %vm2226, %v2219, 920167782
        %v2233 = vsel %vm2225, %v2216, %v2232
        %v2234 = vsel %vm2224, %v2231, %v2233
        %v2235 = vsel %vm2223, %v2213, %v2216
        %v2236 = vsel %vm2226, %v2222, 1326507024
        %v2237 = vsel %vm2225, %v2219, %v2236
        %v2238 = vsel %vm2224, %v2235, %v2237
        %v2239 = vshll.u32 %v2199, 8
        %v2240 = vmul.u32.u64.compose %v2239, %v2238
        %v2241 = vextract.low.u32 %v2240
        %v2242 = vextract.high.u32 %v2240
        %v2243 = vmul.u32.u64.compose %v2239, %v2234
        %v2244 = vextract.low.u32 %v2243
        %v2245 = vextract.high.u32 %v2243
        %v2246 = vmul.u32 %v2239, %v2230
        %v2247 = vadd.s32 %v2242, %v2244
        %vm2248 = vc.u32 %v2242, %v2244
        %v2249 = vadd.s32 %v2245, 1
        %v2250 = vsel %vm2248, %v2249, %v2245
        %v2251 = vadd.s32 %v2246, %v2250
        %v2252 = vadd.s32 %v2251, 536870912
        %v2253 = vshrl.u32 %v2252, 30
        %v2254 = vshll.u32 %v2253, 30
        %v2255 = vsub.s32 %v2251, %v2254
        %vm2256 = vcmp.lt.s32.totalorder %v2255, 0
        %v2257 = vsub.s32 0, %v2255
        %v2258 = vsel %vm2256, %v2257, %v2255
        %v2259 = vclz %v2258
        %v2260 = vsub.s32 %v2259, 2
        %vm2261 = vcmp.gt.s32.totalorder 0, %v2260
        %v2262 = vsel %vm2261, 0, %v2260
        %v2263 = vsub.s32 32, %v2262
        %v2264 = vshll.u32 %v2255, %v2262
        %v2265 = vshrl.u32 %v2247, %v2263
        %v2266 = vor.u32 %v2264, %v2265
        %v2267 = vsub.s32 4294967266, %v2262
        %v2268 = vadd.s32 %v2267, 127
        %v2269 = vshll.u32 %v2268, 23
        %v2270 = vor.u32 4788187, %v2269
        %v2271 = vand.u32 2147483647, %v2270
        %v2273 = vcvt.s32.f32 %v2266
        %v2274 = vmul.f32 %v2273, %v2271
        %v2275 = vxor.u32 %v2274, 2147483648
        %v2276 = vsel %vm2193, %v2275, %v2274
        %v2277 = vsub.s32 4, %v2253
        %v2278 = vsel %vm2193, %v2277, %v2253
        %v2279 = vsel %vm2192, %v2173, %v2276
        %v2280 = vsel %vm2192, 0, %v2278
        %v2281 = vcosq.f32.pop %v2279
        %v2282 = vsinq.f32.pop %v2279
        %vm2283 = vweird.f32 %v2173
        %v2284 = vadd.s32 %v2280, 3
        %v2285 = vand.u32 %v2284, 3
        %vm2286 = vcmp.lt.s32.totalorder %v2285, 2
        %vm2287 = vcmp.eq.s32.totalorder %v2285, 0
        %v2288 = vxor.u32 %v2282, 2147483648
        %v2289 = vsel %vm2287, %v2281, %v2288
        %vm2290 = vcmp.eq.s32.totalorder %v2285, 2
        %v2291 = vxor.u32 %v2281, 2147483648
        %v2292 = vsel %vm2290, %v2291, %v2282
        %v2293 = vsel %vm2286, %v2289, %v2292
        %v2294 = vsel %vm2283, nan, %v2293
        %v2295 = vand.u32 2147483647, %v2178
        %vm2296 = vcmp.le.f32.partialorder %v2295, 0.7853982
        %vm2297 = vcmp.lt.s32.totalorder %v2178, 0
        %v2298 = vand.u32 %v2178, 2139095040
        %v2299 = vshrl.u32 %v2298, 23
        %v2300 = vsub.s32 %v2299, 127
        %v2301 = vand.u32 2147483647, %v2178
        %v2302 = vand.u32 %v2301, 8388607
        %v2303 = vor.u32 %v2302, 8388608
        %v2304 = vsub.s32 0, %v2303
        %v2305 = vadd.s32 %v2300, 1
        %vm2306 = vcmp.gt.s32.totalorder %v2305, 0
        %v2307 = vsel %vm2306, %v2305, 0
        %v2308 = vshrl.u32 %v2307, 5
        %v2309 = vand.u32 %v2307, 31
        %v2310 = vsub.s32 32, %v2309
        %v2311 = vshrl.u32 683565275, %v2310
        %v2312 = vshll.u32 683565275, %v2309
        %v2313 = vshrl.u32 2475754826, %v2310
        %v2314 = vor.u32 %v2312, %v2313
        %v2315 = vshll.u32 2475754826, %v2309
        %v2316 = vshrl.u32 2131351028, %v2310
        %v2317 = vor.u32 %v2315, %v2316
        %v2318 = vshll.u32 2131351028, %v2309
        %v2319 = vshrl.u32 2102212464, %v2310
        %v2320 = vor.u32 %v2318, %v2319
        %v2321 = vshll.u32 2102212464, %v2309
        %v2322 = vshrl.u32 920167782, %v2310
        %v2323 = vor.u32 %v2321, %v2322
        %v2324 = vshll.u32 920167782, %v2309
        %v2325 = vshrl.u32 1326507024, %v2310
        %v2326 = vor.u32 %v2324, %v2325
        %vm2327 = vcmp.lt.s32.totalorder %v2308, 1
        %vm2328 = vcmp.lt.s32.totalorder %v2308, 2
        %vm2329 = vcmp.lt.s32.totalorder %v2308, 3
        %vm2330 = vcmp.lt.s32.totalorder %v2308, 4
        %v2331 = vsel %vm2327, %v2311, %v2314
        %v2332 = vsel %vm2330, %v2320, 2102212464
        %v2333 = vsel %vm2329, %v2317, %v2332
        %v2334 = vsel %vm2328, %v2331, %v2333
        %v2335 = vsel %vm2327, %v2314, %v2317
        %v2336 = vsel %vm2330, %v2323, 920167782
        %v2337 = vsel %vm2329, %v2320, %v2336
        %v2338 = vsel %vm2328, %v2335, %v2337
        %v2339 = vsel %vm2327, %v2317, %v2320
        %v2340 = vsel %vm2330, %v2326, 1326507024
        %v2341 = vsel %vm2329, %v2323, %v2340
        %v2342 = vsel %vm2328, %v2339, %v2341
        %v2343 = vshll.u32 %v2303, 8
        %v2344 = vmul.u32.u64.compose %v2343, %v2342
        %v2345 = vextract.low.u32 %v2344
        %v2346 = vextract.high.u32 %v2344
        %v2347 = vmul.u32.u64.compose %v2343, %v2338
        %v2348 = vextract.low.u32 %v2347
        %v2349 = vextract.high.u32 %v2347
        %v2350 = vmul.u32 %v2343, %v2334
        %v2351 = vadd.s32 %v2346, %v2348
        %vm2352 = vc.u32 %v2346, %v2348
        %v2353 = vadd.s32 %v2349, 1
        %v2354 = vsel %vm2352, %v2353, %v2349
        %v2355 = vadd.s32 %v2350, %v2354
        %v2356 = vadd.s32 %v2355, 536870912
        %v2357 = vshrl.u32 %v2356, 30
        %v2358 = vshll.u32 %v2357, 30
        %v2359 = vsub.s32 %v2355, %v2358
        %vm2360 = vcmp.lt.s32.totalorder %v2359, 0
        %v2361 = vsub.s32 0, %v2359
        %v2362 = vsel %vm2360, %v2361, %v2359
        %v2363 = vclz %v2362
        %v2364 = vsub.s32 %v2363, 2
        %vm2365 = vcmp.gt.s32.totalorder 0, %v2364
        %v2366 = vsel %vm2365, 0, %v2364
        %v2367 = vsub.s32 32, %v2366
        %v2368 = vshll.u32 %v2359, %v2366
        %v2369 = vshrl.u32 %v2351, %v2367
        %v2370 = vor.u32 %v2368, %v2369
        %v2371 = vsub.s32 4294967266, %v2366
        %v2372 = vadd.s32 %v2371, 127
        %v2373 = vshll.u32 %v2372, 23
        %v2374 = vor.u32 4788187, %v2373
        %v2375 = vand.u32 2147483647, %v2374
        %v2377 = vcvt.s32.f32 %v2370
        %v2378 = vmul.f32 %v2377, %v2375
        %v2379 = vxor.u32 %v2378, 2147483648
        %v2380 = vsel %vm2297, %v2379, %v2378
        %v2381 = vsub.s32 4, %v2357
        %v2382 = vsel %vm2297, %v2381, %v2357
        %v2383 = vsel %vm2296, %v2178, %v2380
        %v2384 = vsel %vm2296, 0, %v2382
        %v2385 = vcosq.f32.pop %v2383
        %v2386 = vsinq.f32.pop %v2383
        %vm2387 = vweird.f32 %v2178
        %v2388 = vadd.s32 %v2384, 3
        %v2389 = vand.u32 %v2388, 3
        %vm2390 = vcmp.lt.s32.totalorder %v2389, 2
        %vm2391 = vcmp.eq.s32.totalorder %v2389, 0
        %v2392 = vxor.u32 %v2386, 2147483648
        %v2393 = vsel %vm2391, %v2385, %v2392
        %vm2394 = vcmp.eq.s32.totalorder %v2389, 2
        %v2395 = vxor.u32 %v2385, 2147483648
        %v2396 = vsel %vm2394, %v2395, %v2386
        %v2397 = vsel %vm2390, %v2393, %v2396
        %v2398 = vsel %vm2387, nan, %v2397
        %v2399 = vand.u32 2147483647, %v2183
        %vm2400 = vcmp.le.f32.partialorder %v2399, 0.7853982
        %vm2401 = vcmp.lt.s32.totalorder %v2183, 0
        %v2402 = vand.u32 %v2183, 2139095040
        %v2403 = vshrl.u32 %v2402, 23
        %v2404 = vsub.s32 %v2403, 127
        %v2405 = vand.u32 2147483647, %v2183
        %v2406 = vand.u32 %v2405, 8388607
        %v2407 = vor.u32 %v2406, 8388608
        %v2408 = vsub.s32 0, %v2407
        %v2409 = vadd.s32 %v2404, 1
        %vm2410 = vcmp.gt.s32.totalorder %v2409, 0
        %v2411 = vsel %vm2410, %v2409, 0
        %v2412 = vshrl.u32 %v2411, 5
        %v2413 = vand.u32 %v2411, 31
        %v2414 = vsub.s32 32, %v2413
        %v2415 = vshrl.u32 683565275, %v2414
        %v2416 = vshll.u32 683565275, %v2413
        %v2417 = vshrl.u32 2475754826, %v2414
        %v2418 = vor.u32 %v2416, %v2417
        %v2419 = vshll.u32 2475754826, %v2413
        %v2420 = vshrl.u32 2131351028, %v2414
        %v2421 = vor.u32 %v2419, %v2420
        %v2422 = vshll.u32 2131351028, %v2413
        %v2423 = vshrl.u32 2102212464, %v2414
        %v2424 = vor.u32 %v2422, %v2423
        %v2425 = vshll.u32 2102212464, %v2413
        %v2426 = vshrl.u32 920167782, %v2414
        %v2427 = vor.u32 %v2425, %v2426
        %v2428 = vshll.u32 920167782, %v2413
        %v2429 = vshrl.u32 1326507024, %v2414
        %v2430 = vor.u32 %v2428, %v2429
        %vm2431 = vcmp.lt.s32.totalorder %v2412, 1
        %vm2432 = vcmp.lt.s32.totalorder %v2412, 2
        %vm2433 = vcmp.lt.s32.totalorder %v2412, 3
        %vm2434 = vcmp.lt.s32.totalorder %v2412, 4
        %v2435 = vsel %vm2431, %v2415, %v2418
        %v2436 = vsel %vm2434, %v2424, 2102212464
        %v2437 = vsel %vm2433, %v2421, %v2436
        %v2438 = vsel %vm2432, %v2435, %v2437
        %v2439 = vsel %vm2431, %v2418, %v2421
        %v2440 = vsel %vm2434, %v2427, 920167782
        %v2441 = vsel %vm2433, %v2424, %v2440
        %v2442 = vsel %vm2432, %v2439, %v2441
        %v2443 = vsel %vm2431, %v2421, %v2424
        %v2444 = vsel %vm2434, %v2430, 1326507024
        %v2445 = vsel %vm2433, %v2427, %v2444
        %v2446 = vsel %vm2432, %v2443, %v2445
        %v2447 = vshll.u32 %v2407, 8
        %v2448 = vmul.u32.u64.compose %v2447, %v2446
        %v2449 = vextract.low.u32 %v2448
        %v2450 = vextract.high.u32 %v2448
        %v2451 = vmul.u32.u64.compose %v2447, %v2442
        %v2452 = vextract.low.u32 %v2451
        %v2453 = vextract.high.u32 %v2451
        %v2454 = vmul.u32 %v2447, %v2438
        %v2455 = vadd.s32 %v2450, %v2452
        %vm2456 = vc.u32 %v2450, %v2452
        %v2457 = vadd.s32 %v2453, 1
        %v2458 = vsel %vm2456, %v2457, %v2453
        %v2459 = vadd.s32 %v2454, %v2458
        %v2460 = vadd.s32 %v2459, 536870912
        %v2461 = vshrl.u32 %v2460, 30
        %v2462 = vshll.u32 %v2461, 30
        %v2463 = vsub.s32 %v2459, %v2462
        %vm2464 = vcmp.lt.s32.totalorder %v2463, 0
        %v2465 = vsub.s32 0, %v2463
        %v2466 = vsel %vm2464, %v2465, %v2463
        %v2467 = vclz %v2466
        %v2468 = vsub.s32 %v2467, 2
        %vm2469 = vcmp.gt.s32.totalorder 0, %v2468
        %v2470 = vsel %vm2469, 0, %v2468
        %v2471 = vsub.s32 32, %v2470
        %v2472 = vshll.u32 %v2463, %v2470
        %v2473 = vshrl.u32 %v2455, %v2471
        %v2474 = vor.u32 %v2472, %v2473
        %v2475 = vsub.s32 4294967266, %v2470
        %v2476 = vadd.s32 %v2475, 127
        %v2477 = vshll.u32 %v2476, 23
        %v2478 = vor.u32 4788187, %v2477
        %v2479 = vand.u32 2147483647, %v2478
        %v2481 = vcvt.s32.f32 %v2474
        %v2482 = vmul.f32 %v2481, %v2479
        %v2483 = vxor.u32 %v2482, 2147483648
        %v2484 = vsel %vm2401, %v2483, %v2482
        %v2485 = vsub.s32 4, %v2461
        %v2486 = vsel %vm2401, %v2485, %v2461
        %v2487 = vsel %vm2400, %v2183, %v2484
        %v2488 = vsel %vm2400, 0, %v2486
        %v2489 = vcosq.f32.pop %v2487
        %v2490 = vsinq.f32.pop %v2487
        %vm2491 = vweird.f32 %v2183
        %v2492 = vadd.s32 %v2488, 3
        %v2493 = vand.u32 %v2492, 3
        %vm2494 = vcmp.lt.s32.totalorder %v2493, 2
        %vm2495 = vcmp.eq.s32.totalorder %v2493, 0
        %v2496 = vxor.u32 %v2490, 2147483648
        %v2497 = vsel %vm2495, %v2489, %v2496
        %vm2498 = vcmp.eq.s32.totalorder %v2493, 2
        %v2499 = vxor.u32 %v2489, 2147483648
        %v2500 = vsel %vm2498, %v2499, %v2490
        %v2501 = vsel %vm2494, %v2497, %v2500
        %v2502 = vsel %vm2491, nan, %v2501
        %v2503 = vand.u32 2147483647, %v2188
        %vm2504 = vcmp.le.f32.partialorder %v2503, 0.7853982
        %vm2505 = vcmp.lt.s32.totalorder %v2188, 0
        %v2506 = vand.u32 %v2188, 2139095040
        %v2507 = vshrl.u32 %v2506, 23
        %v2508 = vsub.s32 %v2507, 127
        %v2509 = vand.u32 2147483647, %v2188
        %v2510 = vand.u32 %v2509, 8388607
        %v2511 = vor.u32 %v2510, 8388608
        %v2512 = vsub.s32 0, %v2511
        %v2513 = vadd.s32 %v2508, 1
        %vm2514 = vcmp.gt.s32.totalorder %v2513, 0
        %v2515 = vsel %vm2514, %v2513, 0
        %v2516 = vshrl.u32 %v2515, 5
        %v2517 = vand.u32 %v2515, 31
        %v2518 = vsub.s32 32, %v2517
        %v2519 = vshrl.u32 683565275, %v2518
        %v2520 = vshll.u32 683565275, %v2517
        %v2521 = vshrl.u32 2475754826, %v2518
        %v2522 = vor.u32 %v2520, %v2521
        %v2523 = vshll.u32 2475754826, %v2517
        %v2524 = vshrl.u32 2131351028, %v2518
        %v2525 = vor.u32 %v2523, %v2524
        %v2526 = vshll.u32 2131351028, %v2517
        %v2527 = vshrl.u32 2102212464, %v2518
        %v2528 = vor.u32 %v2526, %v2527
        %v2529 = vshll.u32 2102212464, %v2517
        %v2530 = vshrl.u32 920167782, %v2518
        %v2531 = vor.u32 %v2529, %v2530
        %v2532 = vshll.u32 920167782, %v2517
        %v2533 = vshrl.u32 1326507024, %v2518
        %v2534 = vor.u32 %v2532, %v2533
        %vm2535 = vcmp.lt.s32.totalorder %v2516, 1
        %vm2536 = vcmp.lt.s32.totalorder %v2516, 2
        %vm2537 = vcmp.lt.s32.totalorder %v2516, 3
        %vm2538 = vcmp.lt.s32.totalorder %v2516, 4
        %v2539 = vsel %vm2535, %v2519, %v2522
        %v2540 = vsel %vm2538, %v2528, 2102212464
        %v2541 = vsel %vm2537, %v2525, %v2540
        %v2542 = vsel %vm2536, %v2539, %v2541
        %v2543 = vsel %vm2535, %v2522, %v2525
        %v2544 = vsel %vm2538, %v2531, 920167782
        %v2545 = vsel %vm2537, %v2528, %v2544
        %v2546 = vsel %vm2536, %v2543, %v2545
        %v2547 = vsel %vm2535, %v2525, %v2528
        %v2548 = vsel %vm2538, %v2534, 1326507024
        %v2549 = vsel %vm2537, %v2531, %v2548
        %v2550 = vsel %vm2536, %v2547, %v2549
        %v2551 = vshll.u32 %v2511, 8
        %v2552 = vmul.u32.u64.compose %v2551, %v2550
        %v2553 = vextract.low.u32 %v2552
        %v2554 = vextract.high.u32 %v2552
        %v2555 = vmul.u32.u64.compose %v2551, %v2546
        %v2556 = vextract.low.u32 %v2555
        %v2557 = vextract.high.u32 %v2555
        %v2558 = vmul.u32 %v2551, %v2542
        %v2559 = vadd.s32 %v2554, %v2556
        %vm2560 = vc.u32 %v2554, %v2556
        %v2561 = vadd.s32 %v2557, 1
        %v2562 = vsel %vm2560, %v2561, %v2557
        %v2563 = vadd.s32 %v2558, %v2562
        %v2564 = vadd.s32 %v2563, 536870912
        %v2565 = vshrl.u32 %v2564, 30
        %v2566 = vshll.u32 %v2565, 30
        %v2567 = vsub.s32 %v2563, %v2566
        %vm2568 = vcmp.lt.s32.totalorder %v2567, 0
        %v2569 = vsub.s32 0, %v2567
        %v2570 = vsel %vm2568, %v2569, %v2567
        %v2571 = vclz %v2570
        %v2572 = vsub.s32 %v2571, 2
        %vm2573 = vcmp.gt.s32.totalorder 0, %v2572
        %v2574 = vsel %vm2573, 0, %v2572
        %v2575 = vsub.s32 32, %v2574
        %v2576 = vshll.u32 %v2567, %v2574
        %v2577 = vshrl.u32 %v2559, %v2575
        %v2578 = vor.u32 %v2576, %v2577
        %v2579 = vsub.s32 4294967266, %v2574
        %v2580 = vadd.s32 %v2579, 127
        %v2581 = vshll.u32 %v2580, 23
        %v2582 = vor.u32 4788187, %v2581
        %v2583 = vand.u32 2147483647, %v2582
        %v2585 = vcvt.s32.f32 %v2578
        %v2586 = vmul.f32 %v2585, %v2583
        %v2587 = vxor.u32 %v2586, 2147483648
        %v2588 = vsel %vm2505, %v2587, %v2586
        %v2589 = vsub.s32 4, %v2565
        %v2590 = vsel %vm2505, %v2589, %v2565
        %v2591 = vsel %vm2504, %v2188, %v2588
        %v2592 = vsel %vm2504, 0, %v2590
        %v2593 = vcosq.f32.pop %v2591
        %v2594 = vsinq.f32.pop %v2591
        %vm2595 = vweird.f32 %v2188
        %v2596 = vadd.s32 %v2592, 3
        %v2597 = vand.u32 %v2596, 3
        %vm2598 = vcmp.lt.s32.totalorder %v2597, 2
        %vm2599 = vcmp.eq.s32.totalorder %v2597, 0
        %v2600 = vxor.u32 %v2594, 2147483648
        %v2601 = vsel %vm2599, %v2593, %v2600
        %vm2602 = vcmp.eq.s32.totalorder %v2597, 2
        %v2603 = vxor.u32 %v2593, 2147483648
        %v2604 = vsel %vm2602, %v2603, %v2594
        %v2605 = vsel %vm2598, %v2601, %v2604
        %v2606 = vsel %vm2595, nan, %v2605
        %v2607 = vld [vmem:[%s9] sm:$0xff]
        %v2608 = vld [vmem:[%s9 + $0x8] sm:$0xff]
        %v2609 = vld [vmem:[%s9 + $0x10] sm:$0xff]
        %v2610 = vld [vmem:[%s9 + $0x18] sm:$0xff]
        %v2611 = vld [vmem:[%s10] sm:$0xff]
        %v2612 = vld [vmem:[%s10 + $0x8] sm:$0xff]
        %v2613 = vld [vmem:[%s10 + $0x10] sm:$0xff]
        %v2614 = vld [vmem:[%s10 + $0x18] sm:$0xff]
        %2616 = vset.pattern.permute.xlu0 0
        %2617 = vperm.xlu0 %2616, %v2611
        %v2618 = vpop.permute.xlu0 %2617
        %2621 = vset.pattern.permute.xlu0 0
        %2622 = vperm.xlu0 %2621, %v2612
        %v2623 = vpop.permute.xlu0 %2622
        %2626 = vset.pattern.permute.xlu0 0
        %2627 = vperm.xlu0 %2626, %v2613
        %v2628 = vpop.permute.xlu0 %2627
        %2631 = vset.pattern.permute.xlu0 0
        %2632 = vperm.xlu0 %2631, %v2614
        %v2633 = vpop.permute.xlu0 %2632
        %v2636 = vsel %vm1011, %v2607, 0
        %v2639 = vsel %vm1011, %v2608, 0
        %v2642 = vsel %vm1011, %v2609, 0
        %v2645 = vsel %vm1011, %v2610, 0
        %2647 = vmatprep.subr.mxu0 0.0
        %2648 = vmatpush1.msra.mxu0 %v2294
        %2649 = vmatprep.subr.mxu0 0.0
        %2650 = vmatpush1.msra.mxu0 %v2398
        %2651 = vmatprep.subr.mxu0 0.0
        %2652 = vmatpush1.msra.mxu0 %v2502
        %2653 = vmatprep.subr.mxu0 0.0
        %2654 = vmatpush1.msra.mxu0 %v2606
        %2655 = vmatprep.subr.mxu0 0.0
        %2656 = vmatpush1.msra.mxu0 0.0
        %2657 = vmatprep.subr.mxu0 0.0
        %2658 = vmatpush1.msra.mxu0 0.0
        %2659 = vmatprep.subr.mxu0 0.0
        %2660 = vmatpush1.msra.mxu0 0.0
        %2661 = vmatprep.subr.mxu0 0.0
        %2662 = vmatpush1.msra.mxu0 0.0
        %2663 = vmatprep.subr.mxu0 0.0
        %2664 = vmatpush1.msra.mxu0 0.0
        %2665 = vmatprep.subr.mxu0 0.0
        %2666 = vmatpush1.msra.mxu0 0.0
        %2667 = vmatprep.subr.mxu0 0.0
        %2668 = vmatpush1.msra.mxu0 0.0
        %2669 = vmatprep.subr.mxu0 0.0
        %2670 = vmatpush1.msra.mxu0 0.0
        %2671 = vmatprep.subr.mxu0 0.0
        %2672 = vmatpush1.msra.mxu0 0.0
        %2673 = vmatprep.subr.mxu0 0.0
        %2674 = vmatpush1.msra.mxu0 0.0
        %2675 = vmatprep.subr.mxu0 0.0
        %2676 = vmatpush1.msra.mxu0 0.0
        %2677 = vmatprep.subr.mxu0 0.0
        %2678 = vmatpush1.msra.mxu0 0.0
        %2679 = vmatprep.subr.mxu0 0.0
        %2680 = vmatpush1.msra.mxu0 0.0
        %2681 = vmatprep.subr.mxu0 0.0
        %2682 = vmatpush1.msra.mxu0 0.0
        %2683 = vmatprep.subr.mxu0 0.0
        %2684 = vmatpush1.msra.mxu0 0.0
        %2685 = vmatprep.subr.mxu0 0.0
        %2686 = vmatpush1.msra.mxu0 0.0
        %2687 = vmatprep.subr.mxu0 0.0
        %2688 = vmatpush1.msra.mxu0 0.0
        %2689 = vmatprep.subr.mxu0 0.0
        %2690 = vmatpush1.msra.mxu0 0.0
        %2691 = vmatprep.subr.mxu0 0.0
        %2692 = vmatpush1.msra.mxu0 0.0
        %2693 = vmatprep.subr.mxu0 0.0
        %2694 = vmatpush1.msra.mxu0 0.0
        %2695 = vmatprep.subr.mxu0 0.0
        %2696 = vmatpush1.msra.mxu0 0.0
        %2697 = vmatprep.subr.mxu0 0.0
        %2698 = vmatpush1.msra.mxu0 0.0
        %2699 = vmatprep.subr.mxu0 0.0
        %2700 = vmatpush1.msra.mxu0 0.0
        %2701 = vmatprep.subr.mxu0 0.0
        %2702 = vmatpush1.msra.mxu0 0.0
        %2703 = vmatprep.subr.mxu0 0.0
        %2704 = vmatpush1.msra.mxu0 0.0
        %2705 = vmatprep.subr.mxu0 0.0
        %2706 = vmatpush1.msra.mxu0 0.0
        %2707 = vmatprep.subr.mxu0 0.0
        %2708 = vmatpush1.msra.mxu0 0.0
        %2709 = vmatprep.subr.mxu0 0.0
        %2710 = vmatpush1.msra.mxu0 0.0
        %2711 = vmatprep.mubr.f32.mxu0 0.0
        %2712 = vmatmul.mubr.f32.gmra.mrb[0].mxu0 %v2636
        %v2713 = vpop.f32.mrb[0].mxu0
        %v2714 = vadd.f32 %v2618, %v2713
        %v2715 = vpop.f32.mrb[0].mxu0
        %2716 = vmatprep.mubr.f32.mxu0 0.0
        %2717 = vmatmul.mubr.f32.gmra.mrb[0].mxu0 %v2639
        %v2718 = vpop.f32.mrb[0].mxu0
        %v2719 = vadd.f32 %v2623, %v2718
        %v2720 = vpop.f32.mrb[0].mxu0
        %2721 = vmatprep.mubr.f32.mxu0 0.0
        %2722 = vmatmul.mubr.f32.gmra.mrb[0].mxu0 %v2642
        %v2723 = vpop.f32.mrb[0].mxu0
        %v2724 = vadd.f32 %v2628, %v2723
        %v2725 = vpop.f32.mrb[0].mxu0
        %2726 = vmatprep.mubr.f32.mxu0 0.0
        %2727 = vmatmul.mubr.f32.gmra.mrb[0].mxu0 %v2645
        %v2728 = vpop.f32.mrb[0].mxu0
        %v2729 = vadd.f32 %v2633, %v2728
        %v2730 = vpop.f32.mrb[0].mxu0
        %2731 = vdwg.mxu0
        %v2732 = vand.u32 2147483647, %v2714
        %vm2733 = vcmp.le.f32.partialorder %v2732, 0.7853982
        %vm2734 = vcmp.lt.s32.totalorder %v2714, 0
        %v2735 = vand.u32 %v2714, 2139095040
        %v2736 = vshrl.u32 %v2735, 23
        %v2737 = vsub.s32 %v2736, 127
        %v2738 = vand.u32 2147483647, %v2714
        %v2739 = vand.u32 %v2738, 8388607
        %v2740 = vor.u32 %v2739, 8388608
        %v2741 = vsub.s32 0, %v2740
        %v2742 = vadd.s32 %v2737, 1
        %vm2743 = vcmp.gt.s32.totalorder %v2742, 0
        %v2744 = vsel %vm2743, %v2742, 0
        %v2745 = vshrl.u32 %v2744, 5
        %v2746 = vand.u32 %v2744, 31
        %v2747 = vsub.s32 32, %v2746
        %v2748 = vshrl.u32 683565275, %v2747
        %v2749 = vshll.u32 683565275, %v2746
        %v2750 = vshrl.u32 2475754826, %v2747
        %v2751 = vor.u32 %v2749, %v2750
        %v2752 = vshll.u32 2475754826, %v2746
        %v2753 = vshrl.u32 2131351028, %v2747
        %v2754 = vor.u32 %v2752, %v2753
        %v2755 = vshll.u32 2131351028, %v2746
        %v2756 = vshrl.u32 2102212464, %v2747
        %v2757 = vor.u32 %v2755, %v2756
        %v2758 = vshll.u32 2102212464, %v2746
        %v2759 = vshrl.u32 920167782, %v2747
        %v2760 = vor.u32 %v2758, %v2759
        %v2761 = vshll.u32 920167782, %v2746
        %v2762 = vshrl.u32 1326507024, %v2747
        %v2763 = vor.u32 %v2761, %v2762
        %vm2764 = vcmp.lt.s32.totalorder %v2745, 1
        %vm2765 = vcmp.lt.s32.totalorder %v2745, 2
        %vm2766 = vcmp.lt.s32.totalorder %v2745, 3
        %vm2767 = vcmp.lt.s32.totalorder %v2745, 4
        %v2768 = vsel %vm2764, %v2748, %v2751
        %v2769 = vsel %vm2767, %v2757, 2102212464
        %v2770 = vsel %vm2766, %v2754, %v2769
        %v2771 = vsel %vm2765, %v2768, %v2770
        %v2772 = vsel %vm2764, %v2751, %v2754
        %v2773 = vsel %vm2767, %v2760, 920167782
        %v2774 = vsel %vm2766, %v2757, %v2773
        %v2775 = vsel %vm2765, %v2772, %v2774
        %v2776 = vsel %vm2764, %v2754, %v2757
        %v2777 = vsel %vm2767, %v2763, 1326507024
        %v2778 = vsel %vm2766, %v2760, %v2777
        %v2779 = vsel %vm2765, %v2776, %v2778
        %v2780 = vshll.u32 %v2740, 8
        %v2781 = vmul.u32.u64.compose %v2780, %v2779
        %v2782 = vextract.low.u32 %v2781
        %v2783 = vextract.high.u32 %v2781
        %v2784 = vmul.u32.u64.compose %v2780, %v2775
        %v2785 = vextract.low.u32 %v2784
        %v2786 = vextract.high.u32 %v2784
        %v2787 = vmul.u32 %v2780, %v2771
        %v2788 = vadd.s32 %v2783, %v2785
        %vm2789 = vc.u32 %v2783, %v2785
        %v2790 = vadd.s32 %v2786, 1
        %v2791 = vsel %vm2789, %v2790, %v2786
        %v2792 = vadd.s32 %v2787, %v2791
        %v2793 = vadd.s32 %v2792, 536870912
        %v2794 = vshrl.u32 %v2793, 30
        %v2795 = vshll.u32 %v2794, 30
        %v2796 = vsub.s32 %v2792, %v2795
        %vm2797 = vcmp.lt.s32.totalorder %v2796, 0
        %v2798 = vsub.s32 0, %v2796
        %v2799 = vsel %vm2797, %v2798, %v2796
        %v2800 = vclz %v2799
        %v2801 = vsub.s32 %v2800, 2
        %vm2802 = vcmp.gt.s32.totalorder 0, %v2801
        %v2803 = vsel %vm2802, 0, %v2801
        %v2804 = vsub.s32 32, %v2803
        %v2805 = vshll.u32 %v2796, %v2803
        %v2806 = vshrl.u32 %v2788, %v2804
        %v2807 = vor.u32 %v2805, %v2806
        %v2808 = vsub.s32 4294967266, %v2803
        %v2809 = vadd.s32 %v2808, 127
        %v2810 = vshll.u32 %v2809, 23
        %v2811 = vor.u32 4788187, %v2810
        %v2812 = vand.u32 2147483647, %v2811
        %v2814 = vcvt.s32.f32 %v2807
        %v2815 = vmul.f32 %v2814, %v2812
        %v2816 = vxor.u32 %v2815, 2147483648
        %v2817 = vsel %vm2734, %v2816, %v2815
        %v2818 = vsub.s32 4, %v2794
        %v2819 = vsel %vm2734, %v2818, %v2794
        %v2820 = vsel %vm2733, %v2714, %v2817
        %v2821 = vsel %vm2733, 0, %v2819
        %v2822 = vcosq.f32.pop %v2820
        %v2823 = vsinq.f32.pop %v2820
        %vm2824 = vweird.f32 %v2714
        %v2825 = vadd.s32 %v2821, 3
        %v2826 = vand.u32 %v2825, 3
        %vm2827 = vcmp.lt.s32.totalorder %v2826, 2
        %vm2828 = vcmp.eq.s32.totalorder %v2826, 0
        %v2829 = vxor.u32 %v2823, 2147483648
        %v2830 = vsel %vm2828, %v2822, %v2829
        %vm2831 = vcmp.eq.s32.totalorder %v2826, 2
        %v2832 = vxor.u32 %v2822, 2147483648
        %v2833 = vsel %vm2831, %v2832, %v2823
        %v2834 = vsel %vm2827, %v2830, %v2833
        %v2835 = vsel %vm2824, nan, %v2834
        %v2836 = vand.u32 2147483647, %v2719
        %vm2837 = vcmp.le.f32.partialorder %v2836, 0.7853982
        %vm2838 = vcmp.lt.s32.totalorder %v2719, 0
        %v2839 = vand.u32 %v2719, 2139095040
        %v2840 = vshrl.u32 %v2839, 23
        %v2841 = vsub.s32 %v2840, 127
        %v2842 = vand.u32 2147483647, %v2719
        %v2843 = vand.u32 %v2842, 8388607
        %v2844 = vor.u32 %v2843, 8388608
        %v2845 = vsub.s32 0, %v2844
        %v2846 = vadd.s32 %v2841, 1
        %vm2847 = vcmp.gt.s32.totalorder %v2846, 0
        %v2848 = vsel %vm2847, %v2846, 0
        %v2849 = vshrl.u32 %v2848, 5
        %v2850 = vand.u32 %v2848, 31
        %v2851 = vsub.s32 32, %v2850
        %v2852 = vshrl.u32 683565275, %v2851
        %v2853 = vshll.u32 683565275, %v2850
        %v2854 = vshrl.u32 2475754826, %v2851
        %v2855 = vor.u32 %v2853, %v2854
        %v2856 = vshll.u32 2475754826, %v2850
        %v2857 = vshrl.u32 2131351028, %v2851
        %v2858 = vor.u32 %v2856, %v2857
        %v2859 = vshll.u32 2131351028, %v2850
        %v2860 = vshrl.u32 2102212464, %v2851
        %v2861 = vor.u32 %v2859, %v2860
        %v2862 = vshll.u32 2102212464, %v2850
        %v2863 = vshrl.u32 920167782, %v2851
        %v2864 = vor.u32 %v2862, %v2863
        %v2865 = vshll.u32 920167782, %v2850
        %v2866 = vshrl.u32 1326507024, %v2851
        %v2867 = vor.u32 %v2865, %v2866
        %vm2868 = vcmp.lt.s32.totalorder %v2849, 1
        %vm2869 = vcmp.lt.s32.totalorder %v2849, 2
        %vm2870 = vcmp.lt.s32.totalorder %v2849, 3
        %vm2871 = vcmp.lt.s32.totalorder %v2849, 4
        %v2872 = vsel %vm2868, %v2852, %v2855
        %v2873 = vsel %vm2871, %v2861, 2102212464
        %v2874 = vsel %vm2870, %v2858, %v2873
        %v2875 = vsel %vm2869, %v2872, %v2874
        %v2876 = vsel %vm2868, %v2855, %v2858
        %v2877 = vsel %vm2871, %v2864, 920167782
        %v2878 = vsel %vm2870, %v2861, %v2877
        %v2879 = vsel %vm2869, %v2876, %v2878
        %v2880 = vsel %vm2868, %v2858, %v2861
        %v2881 = vsel %vm2871, %v2867, 1326507024
        %v2882 = vsel %vm2870, %v2864, %v2881
        %v2883 = vsel %vm2869, %v2880, %v2882
        %v2884 = vshll.u32 %v2844, 8
        %v2885 = vmul.u32.u64.compose %v2884, %v2883
        %v2886 = vextract.low.u32 %v2885
        %v2887 = vextract.high.u32 %v2885
        %v2888 = vmul.u32.u64.compose %v2884, %v2879
        %v2889 = vextract.low.u32 %v2888
        %v2890 = vextract.high.u32 %v2888
        %v2891 = vmul.u32 %v2884, %v2875
        %v2892 = vadd.s32 %v2887, %v2889
        %vm2893 = vc.u32 %v2887, %v2889
        %v2894 = vadd.s32 %v2890, 1
        %v2895 = vsel %vm2893, %v2894, %v2890
        %v2896 = vadd.s32 %v2891, %v2895
        %v2897 = vadd.s32 %v2896, 536870912
        %v2898 = vshrl.u32 %v2897, 30
        %v2899 = vshll.u32 %v2898, 30
        %v2900 = vsub.s32 %v2896, %v2899
        %vm2901 = vcmp.lt.s32.totalorder %v2900, 0
        %v2902 = vsub.s32 0, %v2900
        %v2903 = vsel %vm2901, %v2902, %v2900
        %v2904 = vclz %v2903
        %v2905 = vsub.s32 %v2904, 2
        %vm2906 = vcmp.gt.s32.totalorder 0, %v2905
        %v2907 = vsel %vm2906, 0, %v2905
        %v2908 = vsub.s32 32, %v2907
        %v2909 = vshll.u32 %v2900, %v2907
        %v2910 = vshrl.u32 %v2892, %v2908
        %v2911 = vor.u32 %v2909, %v2910
        %v2912 = vsub.s32 4294967266, %v2907
        %v2913 = vadd.s32 %v2912, 127
        %v2914 = vshll.u32 %v2913, 23
        %v2915 = vor.u32 4788187, %v2914
        %v2916 = vand.u32 2147483647, %v2915
        %v2918 = vcvt.s32.f32 %v2911
        %v2919 = vmul.f32 %v2918, %v2916
        %v2920 = vxor.u32 %v2919, 2147483648
        %v2921 = vsel %vm2838, %v2920, %v2919
        %v2922 = vsub.s32 4, %v2898
        %v2923 = vsel %vm2838, %v2922, %v2898
        %v2924 = vsel %vm2837, %v2719, %v2921
        %v2925 = vsel %vm2837, 0, %v2923
        %v2926 = vcosq.f32.pop %v2924
        %v2927 = vsinq.f32.pop %v2924
        %vm2928 = vweird.f32 %v2719
        %v2929 = vadd.s32 %v2925, 3
        %v2930 = vand.u32 %v2929, 3
        %vm2931 = vcmp.lt.s32.totalorder %v2930, 2
        %vm2932 = vcmp.eq.s32.totalorder %v2930, 0
        %v2933 = vxor.u32 %v2927, 2147483648
        %v2934 = vsel %vm2932, %v2926, %v2933
        %vm2935 = vcmp.eq.s32.totalorder %v2930, 2
        %v2936 = vxor.u32 %v2926, 2147483648
        %v2937 = vsel %vm2935, %v2936, %v2927
        %v2938 = vsel %vm2931, %v2934, %v2937
        %v2939 = vsel %vm2928, nan, %v2938
        %v2940 = vand.u32 2147483647, %v2724
        %vm2941 = vcmp.le.f32.partialorder %v2940, 0.7853982
        %vm2942 = vcmp.lt.s32.totalorder %v2724, 0
        %v2943 = vand.u32 %v2724, 2139095040
        %v2944 = vshrl.u32 %v2943, 23
        %v2945 = vsub.s32 %v2944, 127
        %v2946 = vand.u32 2147483647, %v2724
        %v2947 = vand.u32 %v2946, 8388607
        %v2948 = vor.u32 %v2947, 8388608
        %v2949 = vsub.s32 0, %v2948
        %v2950 = vadd.s32 %v2945, 1
        %vm2951 = vcmp.gt.s32.totalorder %v2950, 0
        %v2952 = vsel %vm2951, %v2950, 0
        %v2953 = vshrl.u32 %v2952, 5
        %v2954 = vand.u32 %v2952, 31
        %v2955 = vsub.s32 32, %v2954
        %v2956 = vshrl.u32 683565275, %v2955
        %v2957 = vshll.u32 683565275, %v2954
        %v2958 = vshrl.u32 2475754826, %v2955
        %v2959 = vor.u32 %v2957, %v2958
        %v2960 = vshll.u32 2475754826, %v2954
        %v2961 = vshrl.u32 2131351028, %v2955
        %v2962 = vor.u32 %v2960, %v2961
        %v2963 = vshll.u32 2131351028, %v2954
        %v2964 = vshrl.u32 2102212464, %v2955
        %v2965 = vor.u32 %v2963, %v2964
        %v2966 = vshll.u32 2102212464, %v2954
        %v2967 = vshrl.u32 920167782, %v2955
        %v2968 = vor.u32 %v2966, %v2967
        %v2969 = vshll.u32 920167782, %v2954
        %v2970 = vshrl.u32 1326507024, %v2955
        %v2971 = vor.u32 %v2969, %v2970
        %vm2972 = vcmp.lt.s32.totalorder %v2953, 1
        %vm2973 = vcmp.lt.s32.totalorder %v2953, 2
        %vm2974 = vcmp.lt.s32.totalorder %v2953, 3
        %vm2975 = vcmp.lt.s32.totalorder %v2953, 4
        %v2976 = vsel %vm2972, %v2956, %v2959
        %v2977 = vsel %vm2975, %v2965, 2102212464
        %v2978 = vsel %vm2974, %v2962, %v2977
        %v2979 = vsel %vm2973, %v2976, %v2978
        %v2980 = vsel %vm2972, %v2959, %v2962
        %v2981 = vsel %vm2975, %v2968, 920167782
        %v2982 = vsel %vm2974, %v2965, %v2981
        %v2983 = vsel %vm2973, %v2980, %v2982
        %v2984 = vsel %vm2972, %v2962, %v2965
        %v2985 = vsel %vm2975, %v2971, 1326507024
        %v2986 = vsel %vm2974, %v2968, %v2985
        %v2987 = vsel %vm2973, %v2984, %v2986
        %v2988 = vshll.u32 %v2948, 8
        %v2989 = vmul.u32.u64.compose %v2988, %v2987
        %v2990 = vextract.low.u32 %v2989
        %v2991 = vextract.high.u32 %v2989
        %v2992 = vmul.u32.u64.compose %v2988, %v2983
        %v2993 = vextract.low.u32 %v2992
        %v2994 = vextract.high.u32 %v2992
        %v2995 = vmul.u32 %v2988, %v2979
        %v2996 = vadd.s32 %v2991, %v2993
        %vm2997 = vc.u32 %v2991, %v2993
        %v2998 = vadd.s32 %v2994, 1
        %v2999 = vsel %vm2997, %v2998, %v2994
        %v3000 = vadd.s32 %v2995, %v2999
        %v3001 = vadd.s32 %v3000, 536870912
        %v3002 = vshrl.u32 %v3001, 30
        %v3003 = vshll.u32 %v3002, 30
        %v3004 = vsub.s32 %v3000, %v3003
        %vm3005 = vcmp.lt.s32.totalorder %v3004, 0
        %v3006 = vsub.s32 0, %v3004
        %v3007 = vsel %vm3005, %v3006, %v3004
        %v3008 = vclz %v3007
        %v3009 = vsub.s32 %v3008, 2
        %vm3010 = vcmp.gt.s32.totalorder 0, %v3009
        %v3011 = vsel %vm3010, 0, %v3009
        %v3012 = vsub.s32 32, %v3011
        %v3013 = vshll.u32 %v3004, %v3011
        %v3014 = vshrl.u32 %v2996, %v3012
        %v3015 = vor.u32 %v3013, %v3014
        %v3016 = vsub.s32 4294967266, %v3011
        %v3017 = vadd.s32 %v3016, 127
        %v3018 = vshll.u32 %v3017, 23
        %v3019 = vor.u32 4788187, %v3018
        %v3020 = vand.u32 2147483647, %v3019
        %v3022 = vcvt.s32.f32 %v3015
        %v3023 = vmul.f32 %v3022, %v3020
        %v3024 = vxor.u32 %v3023, 2147483648
        %v3025 = vsel %vm2942, %v3024, %v3023
        %v3026 = vsub.s32 4, %v3002
        %v3027 = vsel %vm2942, %v3026, %v3002
        %v3028 = vsel %vm2941, %v2724, %v3025
        %v3029 = vsel %vm2941, 0, %v3027
        %v3030 = vcosq.f32.pop %v3028
        %v3031 = vsinq.f32.pop %v3028
        %vm3032 = vweird.f32 %v2724
        %v3033 = vadd.s32 %v3029, 3
        %v3034 = vand.u32 %v3033, 3
        %vm3035 = vcmp.lt.s32.totalorder %v3034, 2
        %vm3036 = vcmp.eq.s32.totalorder %v3034, 0
        %v3037 = vxor.u32 %v3031, 2147483648
        %v3038 = vsel %vm3036, %v3030, %v3037
        %vm3039 = vcmp.eq.s32.totalorder %v3034, 2
        %v3040 = vxor.u32 %v3030, 2147483648
        %v3041 = vsel %vm3039, %v3040, %v3031
        %v3042 = vsel %vm3035, %v3038, %v3041
        %v3043 = vsel %vm3032, nan, %v3042
        %v3044 = vand.u32 2147483647, %v2729
        %vm3045 = vcmp.le.f32.partialorder %v3044, 0.7853982
        %vm3046 = vcmp.lt.s32.totalorder %v2729, 0
        %v3047 = vand.u32 %v2729, 2139095040
        %v3048 = vshrl.u32 %v3047, 23
        %v3049 = vsub.s32 %v3048, 127
        %v3050 = vand.u32 2147483647, %v2729
        %v3051 = vand.u32 %v3050, 8388607
        %v3052 = vor.u32 %v3051, 8388608
        %v3053 = vsub.s32 0, %v3052
        %v3054 = vadd.s32 %v3049, 1
        %vm3055 = vcmp.gt.s32.totalorder %v3054, 0
        %v3056 = vsel %vm3055, %v3054, 0
        %v3057 = vshrl.u32 %v3056, 5
        %v3058 = vand.u32 %v3056, 31
        %v3059 = vsub.s32 32, %v3058
        %v3060 = vshrl.u32 683565275, %v3059
        %v3061 = vshll.u32 683565275, %v3058
        %v3062 = vshrl.u32 2475754826, %v3059
        %v3063 = vor.u32 %v3061, %v3062
        %v3064 = vshll.u32 2475754826, %v3058
        %v3065 = vshrl.u32 2131351028, %v3059
        %v3066 = vor.u32 %v3064, %v3065
        %v3067 = vshll.u32 2131351028, %v3058
        %v3068 = vshrl.u32 2102212464, %v3059
        %v3069 = vor.u32 %v3067, %v3068
        %v3070 = vshll.u32 2102212464, %v3058
        %v3071 = vshrl.u32 920167782, %v3059
        %v3072 = vor.u32 %v3070, %v3071
        %v3073 = vshll.u32 920167782, %v3058
        %v3074 = vshrl.u32 1326507024, %v3059
        %v3075 = vor.u32 %v3073, %v3074
        %vm3076 = vcmp.lt.s32.totalorder %v3057, 1
        %vm3077 = vcmp.lt.s32.totalorder %v3057, 2
        %vm3078 = vcmp.lt.s32.totalorder %v3057, 3
        %vm3079 = vcmp.lt.s32.totalorder %v3057, 4
        %v3080 = vsel %vm3076, %v3060, %v3063
        %v3081 = vsel %vm3079, %v3069, 2102212464
        %v3082 = vsel %vm3078, %v3066, %v3081
        %v3083 = vsel %vm3077, %v3080, %v3082
        %v3084 = vsel %vm3076, %v3063, %v3066
        %v3085 = vsel %vm3079, %v3072, 920167782
        %v3086 = vsel %vm3078, %v3069, %v3085
        %v3087 = vsel %vm3077, %v3084, %v3086
        %v3088 = vsel %vm3076, %v3066, %v3069
        %v3089 = vsel %vm3079, %v3075, 1326507024
        %v3090 = vsel %vm3078, %v3072, %v3089
        %v3091 = vsel %vm3077, %v3088, %v3090
        %v3092 = vshll.u32 %v3052, 8
        %v3093 = vmul.u32.u64.compose %v3092, %v3091
        %v3094 = vextract.low.u32 %v3093
        %v3095 = vextract.high.u32 %v3093
        %v3096 = vmul.u32.u64.compose %v3092, %v3087
        %v3097 = vextract.low.u32 %v3096
        %v3098 = vextract.high.u32 %v3096
        %v3099 = vmul.u32 %v3092, %v3083
        %v3100 = vadd.s32 %v3095, %v3097
        %vm3101 = vc.u32 %v3095, %v3097
        %v3102 = vadd.s32 %v3098, 1
        %v3103 = vsel %vm3101, %v3102, %v3098
        %v3104 = vadd.s32 %v3099, %v3103
        %v3105 = vadd.s32 %v3104, 536870912
        %v3106 = vshrl.u32 %v3105, 30
        %v3107 = vshll.u32 %v3106, 30
        %v3108 = vsub.s32 %v3104, %v3107
        %vm3109 = vcmp.lt.s32.totalorder %v3108, 0
        %v3110 = vsub.s32 0, %v3108
        %v3111 = vsel %vm3109, %v3110, %v3108
        %v3112 = vclz %v3111
        %v3113 = vsub.s32 %v3112, 2
        %vm3114 = vcmp.gt.s32.totalorder 0, %v3113
        %v3115 = vsel %vm3114, 0, %v3113
        %v3116 = vsub.s32 32, %v3115
        %v3117 = vshll.u32 %v3108, %v3115
        %v3118 = vshrl.u32 %v3100, %v3116
        %v3119 = vor.u32 %v3117, %v3118
        %v3120 = vsub.s32 4294967266, %v3115
        %v3121 = vadd.s32 %v3120, 127
        %v3122 = vshll.u32 %v3121, 23
        %v3123 = vor.u32 4788187, %v3122
        %v3124 = vand.u32 2147483647, %v3123
        %v3126 = vcvt.s32.f32 %v3119
        %v3127 = vmul.f32 %v3126, %v3124
        %v3128 = vxor.u32 %v3127, 2147483648
        %v3129 = vsel %vm3046, %v3128, %v3127
        %v3130 = vsub.s32 4, %v3106
        %v3131 = vsel %vm3046, %v3130, %v3106
        %v3132 = vsel %vm3045, %v2729, %v3129
        %v3133 = vsel %vm3045, 0, %v3131
        %v3134 = vcosq.f32.pop %v3132
        %v3135 = vsinq.f32.pop %v3132
        %vm3136 = vweird.f32 %v2729
        %v3137 = vadd.s32 %v3133, 3
        %v3138 = vand.u32 %v3137, 3
        %vm3139 = vcmp.lt.s32.totalorder %v3138, 2
        %vm3140 = vcmp.eq.s32.totalorder %v3138, 0
        %v3141 = vxor.u32 %v3135, 2147483648
        %v3142 = vsel %vm3140, %v3134, %v3141
        %vm3143 = vcmp.eq.s32.totalorder %v3138, 2
        %v3144 = vxor.u32 %v3134, 2147483648
        %v3145 = vsel %vm3143, %v3144, %v3135
        %v3146 = vsel %vm3139, %v3142, %v3145
        %v3147 = vsel %vm3136, nan, %v3146
        %v3148 = vld [vmem:[%s11] sm:$0x7]
        %v3149 = vld [vmem:[%s12] sm:$0x7]
        %3151 = vset.pattern.permute.xlu0 0
        %3152 = vperm.xlu0 %3151, %v3149
        %v3153 = vpop.permute.xlu0 %3152
        %v3156 = vsel %vm1011, %v3148, 0
        %3158 = vmatprep.subr.mxu0 0.0
        %3159 = vmatpush1.msra.mxu0 %v2835
        %3160 = vmatprep.subr.mxu0 0.0
        %3161 = vmatpush1.msra.mxu0 %v2939
        %3162 = vmatprep.subr.mxu0 0.0
        %3163 = vmatpush1.msra.mxu0 %v3043
        %3164 = vmatprep.subr.mxu0 0.0
        %3165 = vmatpush1.msra.mxu0 %v3147
        %3166 = vmatprep.subr.mxu0 0.0
        %3167 = vmatpush1.msra.mxu0 0.0
        %3168 = vmatprep.subr.mxu0 0.0
        %3169 = vmatpush1.msra.mxu0 0.0
        %3170 = vmatprep.subr.mxu0 0.0
        %3171 = vmatpush1.msra.mxu0 0.0
        %3172 = vmatprep.subr.mxu0 0.0
        %3173 = vmatpush1.msra.mxu0 0.0
        %3174 = vmatprep.subr.mxu0 0.0
        %3175 = vmatpush1.msra.mxu0 0.0
        %3176 = vmatprep.subr.mxu0 0.0
        %3177 = vmatpush1.msra.mxu0 0.0
        %3178 = vmatprep.subr.mxu0 0.0
        %3179 = vmatpush1.msra.mxu0 0.0
        %3180 = vmatprep.subr.mxu0 0.0
        %3181 = vmatpush1.msra.mxu0 0.0
        %3182 = vmatprep.subr.mxu0 0.0
        %3183 = vmatpush1.msra.mxu0 0.0
        %3184 = vmatprep.subr.mxu0 0.0
        %3185 = vmatpush1.msra.mxu0 0.0
        %3186 = vmatprep.subr.mxu0 0.0
        %3187 = vmatpush1.msra.mxu0 0.0
        %3188 = vmatprep.subr.mxu0 0.0
        %3189 = vmatpush1.msra.mxu0 0.0
        %3190 = vmatprep.subr.mxu0 0.0
        %3191 = vmatpush1.msra.mxu0 0.0
        %3192 = vmatprep.subr.mxu0 0.0
        %3193 = vmatpush1.msra.mxu0 0.0
        %3194 = vmatprep.subr.mxu0 0.0
        %3195 = vmatpush1.msra.mxu0 0.0
        %3196 = vmatprep.subr.mxu0 0.0
        %3197 = vmatpush1.msra.mxu0 0.0
        %3198 = vmatprep.subr.mxu0 0.0
        %3199 = vmatpush1.msra.mxu0 0.0
        %3200 = vmatprep.subr.mxu0 0.0
        %3201 = vmatpush1.msra.mxu0 0.0
        %3202 = vmatprep.subr.mxu0 0.0
        %3203 = vmatpush1.msra.mxu0 0.0
        %3204 = vmatprep.subr.mxu0 0.0
        %3205 = vmatpush1.msra.mxu0 0.0
        %3206 = vmatprep.subr.mxu0 0.0
        %3207 = vmatpush1.msra.mxu0 0.0
        %3208 = vmatprep.subr.mxu0 0.0
        %3209 = vmatpush1.msra.mxu0 0.0
        %3210 = vmatprep.subr.mxu0 0.0
        %3211 = vmatpush1.msra.mxu0 0.0
        %3212 = vmatprep.subr.mxu0 0.0
        %3213 = vmatpush1.msra.mxu0 0.0
        %3214 = vmatprep.subr.mxu0 0.0
        %3215 = vmatpush1.msra.mxu0 0.0
        %3216 = vmatprep.subr.mxu0 0.0
        %3217 = vmatpush1.msra.mxu0 0.0
        %3218 = vmatprep.subr.mxu0 0.0
        %3219 = vmatpush1.msra.mxu0 0.0
        %3220 = vmatprep.subr.mxu0 0.0
        %3221 = vmatpush1.msra.mxu0 0.0
        %3222 = vmatprep.mubr.f32.mxu0 0.0
        %3223 = vmatmul.mubr.f32.gmra.mrb[0].mxu0 %v3156
        %v3224 = vpop.f32.mrb[0].mxu0
        %v3225 = vadd.f32 %v3153, %v3224
        %v3226 = vpop.f32.mrb[0].mxu0
        %3227 = vdwg.mxu0
        %v3228 = vand.u32 2147483647, %v3225
        %vm3229 = vcmp.le.f32.partialorder %v3228, 0.7853982
        %vm3230 = vcmp.lt.s32.totalorder %v3225, 0
        %v3231 = vand.u32 %v3225, 2139095040
        %v3232 = vshrl.u32 %v3231, 23
        %v3233 = vsub.s32 %v3232, 127
        %v3234 = vand.u32 2147483647, %v3225
        %v3235 = vand.u32 %v3234, 8388607
        %v3236 = vor.u32 %v3235, 8388608
        %v3237 = vsub.s32 0, %v3236
        %v3238 = vadd.s32 %v3233, 1
        %vm3239 = vcmp.gt.s32.totalorder %v3238, 0
        %v3240 = vsel %vm3239, %v3238, 0
        %v3241 = vshrl.u32 %v3240, 5
        %v3242 = vand.u32 %v3240, 31
        %v3243 = vsub.s32 32, %v3242
        %v3244 = vshrl.u32 683565275, %v3243
        %v3245 = vshll.u32 683565275, %v3242
        %v3246 = vshrl.u32 2475754826, %v3243
        %v3247 = vor.u32 %v3245, %v3246
        %v3248 = vshll.u32 2475754826, %v3242
        %v3249 = vshrl.u32 2131351028, %v3243
        %v3250 = vor.u32 %v3248, %v3249
        %v3251 = vshll.u32 2131351028, %v3242
        %v3252 = vshrl.u32 2102212464, %v3243
        %v3253 = vor.u32 %v3251, %v3252
        %v3254 = vshll.u32 2102212464, %v3242
        %v3255 = vshrl.u32 920167782, %v3243
        %v3256 = vor.u32 %v3254, %v3255
        %v3257 = vshll.u32 920167782, %v3242
        %v3258 = vshrl.u32 1326507024, %v3243
        %v3259 = vor.u32 %v3257, %v3258
        %vm3260 = vcmp.lt.s32.totalorder %v3241, 1
        %vm3261 = vcmp.lt.s32.totalorder %v3241, 2
        %vm3262 = vcmp.lt.s32.totalorder %v3241, 3
        %vm3263 = vcmp.lt.s32.totalorder %v3241, 4
        %v3264 = vsel %vm3260, %v3244, %v3247
        %v3265 = vsel %vm3263, %v3253, 2102212464
        %v3266 = vsel %vm3262, %v3250, %v3265
        %v3267 = vsel %vm3261, %v3264, %v3266
        %v3268 = vsel %vm3260, %v3247, %v3250
        %v3269 = vsel %vm3263, %v3256, 920167782
        %v3270 = vsel %vm3262, %v3253, %v3269
        %v3271 = vsel %vm3261, %v3268, %v3270
        %v3272 = vsel %vm3260, %v3250, %v3253
        %v3273 = vsel %vm3263, %v3259, 1326507024
        %v3274 = vsel %vm3262, %v3256, %v3273
        %v3275 = vsel %vm3261, %v3272, %v3274
        %v3276 = vshll.u32 %v3236, 8
        %v3277 = vmul.u32.u64.compose %v3276, %v3275
        %v3278 = vextract.low.u32 %v3277
        %v3279 = vextract.high.u32 %v3277
        %v3280 = vmul.u32.u64.compose %v3276, %v3271
        %v3281 = vextract.low.u32 %v3280
        %v3282 = vextract.high.u32 %v3280
        %v3283 = vmul.u32 %v3276, %v3267
        %v3284 = vadd.s32 %v3279, %v3281
        %vm3285 = vc.u32 %v3279, %v3281
        %v3286 = vadd.s32 %v3282, 1
        %v3287 = vsel %vm3285, %v3286, %v3282
        %v3288 = vadd.s32 %v3283, %v3287
        %v3289 = vadd.s32 %v3288, 536870912
        %v3290 = vshrl.u32 %v3289, 30
        %v3291 = vshll.u32 %v3290, 30
        %v3292 = vsub.s32 %v3288, %v3291
        %vm3293 = vcmp.lt.s32.totalorder %v3292, 0
        %v3294 = vsub.s32 0, %v3292
        %v3295 = vsel %vm3293, %v3294, %v3292
        %v3296 = vclz %v3295
        %v3297 = vsub.s32 %v3296, 2
        %vm3298 = vcmp.gt.s32.totalorder 0, %v3297
        %v3299 = vsel %vm3298, 0, %v3297
        %v3300 = vsub.s32 32, %v3299
        %v3301 = vshll.u32 %v3292, %v3299
        %v3302 = vshrl.u32 %v3284, %v3300
        %v3303 = vor.u32 %v3301, %v3302
        %v3304 = vsub.s32 4294967266, %v3299
        %v3305 = vadd.s32 %v3304, 127
        %v3306 = vshll.u32 %v3305, 23
        %v3307 = vor.u32 4788187, %v3306
        %v3308 = vand.u32 2147483647, %v3307
        %v3310 = vcvt.s32.f32 %v3303
        %v3311 = vmul.f32 %v3310, %v3308
        %v3312 = vxor.u32 %v3311, 2147483648
        %v3313 = vsel %vm3230, %v3312, %v3311
        %v3314 = vsub.s32 4, %v3290
        %v3315 = vsel %vm3230, %v3314, %v3290
        %v3316 = vsel %vm3229, %v3225, %v3313
        %v3317 = vsel %vm3229, 0, %v3315
        %v3318 = vcosq.f32.pop %v3316
        %v3319 = vsinq.f32.pop %v3316
        %vm3320 = vweird.f32 %v3225
        %v3321 = vadd.s32 %v3317, 3
        %v3322 = vand.u32 %v3321, 3
        %vm3323 = vcmp.lt.s32.totalorder %v3322, 2
        %vm3324 = vcmp.eq.s32.totalorder %v3322, 0
        %v3325 = vxor.u32 %v3319, 2147483648
        %v3326 = vsel %vm3324, %v3318, %v3325
        %vm3327 = vcmp.eq.s32.totalorder %v3322, 2
        %v3328 = vxor.u32 %v3318, 2147483648
        %v3329 = vsel %vm3327, %v3328, %v3319
        %v3330 = vsel %vm3323, %v3326, %v3329
        %v3331 = vsel %vm3320, nan, %v3330
        %3332 = vst [vmem:[%s431] sm:$0x7] %v3331
        %s3333 = sand.u32 %s313, 1
        %s3334 = scalar_lea.sflag [#allocation3], %s3333
        %s3335 = sand.u32 %s313, 1
        %s3336 = smul.addr %s3335, 4
        %s3337 = scalar_lea.vmem [#allocation2], %s3336
        // Predicated region
        $region73: #{tpu_custom_call.1} parent=71 // pred_check
          %p3338 = pneg %p323
        $region74: #{tpu_custom_call.1} parent=71 // pred_check_branch
          %3340 = sbr.rel (%p3338) target = $region76
        $region75: #{tpu_custom_call.1} parent=71 // pred_region
          %s3342 = ssub.s32 64, 64
          %3343 = vsyncadd %s3334, %s3342
          %s3344 = smul.addr %s27, 64
          %s3345 = scalar_lea.hbm %s13, %s3344
          %s3347 = sshll.u32 %s3337, 4
          %s3348 = int_to_ptr.vmem [resolvable:$true] %s3347
          %3350 = dma.vmem_to_hbm [thread:$0]  %s3348, 64, %s3345, %s3334
        $region76: #{tpu_custom_call.1} parent=71 // pred_fallthru
          _
      $region72: #{tpu_custom_call.1} parent=5 // pred_fallthru
        _
      %p3351 = scmp.le.s32.totalorder 2, %s22
      // Predicated region
      $region77: #{tpu_custom_call.1} parent=5 // pred_check
        %p3352 = pneg %p3351
      $region78: #{tpu_custom_call.1} parent=5 // pred_check_branch
        %3354 = sbr.rel (%p3352) target = $region80
      $region79: #{tpu_custom_call.1} parent=5 // pred_region
        %s3355 = ssub.s32 %s22, 2
        // Predicated region
        $region81: #{tpu_custom_call.1} parent=79 // pred_check
          %p3356 = pneg %p329
        $region82: #{tpu_custom_call.1} parent=79 // pred_check_branch
          %3358 = sbr.rel (%p3356) target = $region84
        $region83: #{tpu_custom_call.1} parent=79 // pred_region
          %s3359 = sand.u32 %s314, 1
          %s3360 = scalar_lea.sflag [#allocation3], %s3359
          %s3361 = sand.u32 %s314, 1
          %s3362 = smul.addr %s3361, 4
          %s3363 = scalar_lea.vmem [#allocation2], %s3362
          %3364 = dma.done %s3360, 64
        $region84: #{tpu_custom_call.1} parent=79 // pred_fallthru
          _
      $region80: #{tpu_custom_call.1} parent=5 // pred_fallthru
        _
    $region6: #{tpu_custom_call.1} parent=1 // loop_footer
      %s26 = sadd.s32 1, %s22
    $region7: #{tpu_custom_call.1} parent=1 // loop_footer_branch
      %21 = sbr.rel target = $region3
    $region8: #{tpu_custom_call.1} parent=1 // loop_exit
      _
    %3365 = vsyncpa [#allocation3], 1
    %s3366 = scalar_lea.sflag [#allocation3], 1
    %3367 = vsyncpa %s3366, 1

</llo_original>
